<compile_context>
chip_gen: v5e
topology: v5e:2x2
jax: 0.10.0
libtpu: 0.0.40
codegen_flags: <defaults>
</compile_context>

<pallas_src>
import functools
import math

import jax
import jax.numpy as jnp
from jax.experimental import pallas as pl
from jax.experimental.pallas import tpu as pltpu

# Flip to jnp.bfloat16 on v6e/v7x for MXU peak; activations/state/outputs stay f32.
MXU_DTYPE = jnp.float32


# ----------------------------- Pallas kernel ------------------------------- #
def bidir_lstm_kernel(
    # inputs
    x_f_ref, x_b_ref,            # (TS*B, D)  fwd time-chunk i / bwd time-chunk nc-1-i
    wih_f_ref, wih_b_ref,        # (D, 4H)    input weights (pre-transposed)
    whh_f_ref, whh_b_ref,        # (H, 4H)    dense recurrent weights (no block-diag)
    b_f_ref, b_b_ref,            # (1, 4H)    biases (b_ih + b_hh)
    # outputs
    out_f_ref, out_b_ref,        # (TS*B, H)  per-direction hiddens, natural time order
    hN_ref, cN_ref,              # (2B, H)    final state: rows [0:B]=fwd, [B:2B]=bwd
    # scratch
    xg_f_ref, xg_b_ref,          # (TS*B, 4H) hoisted input projections
    *, ts, bsz,
):
    hdim = out_f_ref.shape[-1]
    mxu = wih_f_ref.dtype

    # ---- init the persistent state (resident output blocks) at chunk 0 ----
    @pl.when(pl.program_id(0) == 0)
    def _():
        hN_ref[...] = jnp.zeros_like(hN_ref)
        cN_ref[...] = jnp.zeros_like(cN_ref)

    # ---- hoisted input projection: one (TS*B, D) @ (D, 4H) matmul per direction ----
    xg_f_ref[...] = (
        jnp.dot(x_f_ref[...].astype(mxu), wih_f_ref[...],
                preferred_element_type=jnp.float32) + b_f_ref[...])
    xg_b_ref[...] = (
        jnp.dot(x_b_ref[...].astype(mxu), wih_b_ref[...],
                preferred_element_type=jnp.float32) + b_b_ref[...])

    w_hh_f = whh_f_ref[...]      # resident, loaded once per chunk
    w_hh_b = whh_b_ref[...]

    def step(s, carry):
        h, c = carry                                   # (2B, H) stacked [fwd ; bwd]
        rf = pl.multiple_of(s * bsz, bsz)              # fwd rows (local time s)
        rb = pl.multiple_of((ts - 1 - s) * bsz, bsz)   # bwd rows (natural time order)
        # Two dense recurrent matmuls -- no zero-padded block-diagonal weight.
        gh_f = jnp.dot(h[:bsz].astype(mxu), w_hh_f,
                       preferred_element_type=jnp.float32)          # (B, 4H)
        gh_b = jnp.dot(h[bsz:].astype(mxu), w_hh_b,
                       preferred_element_type=jnp.float32)          # (B, 4H)
        # Stack both directions on the sublane axis so the 5 sigmoid/tanh groups
        # run once on packed vregs (EUP slot is the per-step bottleneck).
        g = jnp.concatenate(
            [xg_f_ref[pl.ds(rf, bsz)] + gh_f,
             xg_b_ref[pl.ds(rb, bsz)] + gh_b], axis=0)              # (2B, 4H)
        # PyTorch gate order: i, f, g, o
        i_g = jax.nn.sigmoid(g[:, 0 * hdim:1 * hdim])
        f_g = jax.nn.sigmoid(g[:, 1 * hdim:2 * hdim])
        g_g = jnp.tanh(g[:, 2 * hdim:3 * hdim])
        o_g = jax.nn.sigmoid(g[:, 3 * hdim:4 * hdim])
        c_new = f_g * c + i_g * g_g
        h_new = o_g * jnp.tanh(c_new)
        out_f_ref[pl.ds(rf, bsz)] = h_new[:bsz]
        out_b_ref[pl.ds(rb, bsz)] = h_new[bsz:]
        return h_new, c_new

    h0 = hN_ref[...]
    c0 = cN_ref[...]
    hN, cN = jax.lax.fori_loop(0, ts, step, (h0, c0),
                               unroll=True if ts <= 8 else 8)
    # Resident (constant-index) output blocks double as the cross-chunk carry;
    # at the last chunk they hold the PyTorch final (h, c) per direction.
    hN_ref[...] = hN
    cN_ref[...] = cN


def bidir_lstm_layer(x_flat, w_ih_f, w_ih_b, w_hh_f, w_hh_b, b_f, b_b,
                     *, batch, time_chunk):
    """Fused bidirectional LSTM layer over a flat time-major (S*B, D) sequence."""
    SB, D = x_flat.shape
    B = batch
    S = SB // B
    H = w_hh_f.shape[0]
    ts = min(time_chunk, S)
    assert S % ts == 0, "seq_len must be divisible by time_chunk"
    assert (ts * B) % 8 == 0 or ts == S, "time_chunk*batch should be a multiple of 8"
    nc = S // ts
    f32 = jnp.float32

    def _resident(shape):
        # Constant-index weight blocks: single-buffered -> one VMEM copy only.
        return pl.BlockSpec(shape, lambda i: (0, 0), pipeline_mode=pl.Buffered(1))

    in_specs = [
        pl.BlockSpec((ts * B, D), lambda i: (i, 0)),             # fwd time chunk
        pl.BlockSpec((ts * B, D), lambda i: (nc - 1 - i, 0)),    # bwd time chunk
        _resident((D, 4 * H)), _resident((D, 4 * H)),            # W_ih fwd / bwd
        _resident((H, 4 * H)), _resident((H, 4 * H)),            # W_hh fwd / bwd
        _resident((1, 4 * H)), _resident((1, 4 * H)),            # bias fwd / bwd
    ]
    out_specs = (
        pl.BlockSpec((ts * B, H), lambda i: (i, 0)),             # fwd outputs
        pl.BlockSpec((ts * B, H), lambda i: (nc - 1 - i, 0)),    # bwd outputs
        pl.BlockSpec((2 * B, H), lambda i: (0, 0)),              # final h (resident carry)
        pl.BlockSpec((2 * B, H), lambda i: (0, 0)),              # final c (resident carry)
    )
    out_shapes = (
        jax.ShapeDtypeStruct((SB, H), f32),
        jax.ShapeDtypeStruct((SB, H), f32),
        jax.ShapeDtypeStruct((2 * B, H), f32),
        jax.ShapeDtypeStruct((2 * B, H), f32),
    )
    scratch = [
        pltpu.VMEM((ts * B, 4 * H), f32),   # hoisted input gates, fwd
        pltpu.VMEM((ts * B, 4 * H), f32),   # hoisted input gates, bwd
    ]

    # Explicit scoped-VMEM budget: streamed blocks double-buffered, weights single-
    # buffered; capped under the v7x 64 MiB per-TC physical limit.
    wbytes = jnp.dtype(w_ih_f.dtype).itemsize
    est = (2 * 2 * ts * B * D * 4            # x chunks (fwd+bwd), double-buffered
           + 2 * 2 * ts * B * H * 4          # output chunks, double-buffered
           + 2 * 2 * 2 * B * H * 4           # final-state blocks
           + 2 * (D + H) * 4 * H * wbytes    # resident weights (single copy)
           + 2 * 4 * H * 4                   # biases
           + 2 * ts * B * 4 * H * 4)         # xg scratch
    vmem_limit = int(min(48 * 2**20, max(2 * est, 32 * 2**20)))

    kernel = functools.partial(bidir_lstm_kernel, ts=ts, bsz=B)
    return pl.pallas_call(
        kernel,
        out_shape=out_shapes,
        grid_spec=pltpu.PrefetchScalarGridSpec(
            num_scalar_prefetch=0,
            grid=(nc,),
            in_specs=in_specs,
            out_specs=out_specs,
            scratch_shapes=scratch,
        ),
        compiler_params=pltpu.CompilerParams(
            dimension_semantics=("arbitrary",),   # serial recurrence over time chunks
            vmem_limit_bytes=vmem_limit,
        ),
    )(x_flat, x_flat, w_ih_f, w_ih_b, w_hh_f, w_hh_b, b_f, b_b)


# ----------------------------- Parameter init ------------------------------ #
def xavier_normal(key, shape):
    fan_out, fan_in = shape
    std = math.sqrt(2.0 / (fan_in + fan_out))
    return std * jax.random.normal(key, shape, dtype=jnp.float32)


def init_params(key, vocab_size, input_size, hidden_size, num_layers):
    """Weights stored once in kernel layout: transposed + MXU dtype; biases zero."""
    H = hidden_size
    keys = jax.random.split(key, 1 + num_layers * 4)
    embed = jax.random.normal(keys[0], (vocab_size, input_size), dtype=jnp.float32)
    layers = []
    k = 1
    for layer in range(num_layers):
        d_in = input_size if layer == 0 else 2 * H
        w_ih_f = xavier_normal(keys[k], (4 * H, d_in)).T.astype(MXU_DTYPE); k += 1  # (D, 4H)
        w_hh_f = xavier_normal(keys[k], (4 * H, H)).T.astype(MXU_DTYPE);    k += 1  # (H, 4H)
        w_ih_b = xavier_normal(keys[k], (4 * H, d_in)).T.astype(MXU_DTYPE); k += 1
        w_hh_b = xavier_normal(keys[k], (4 * H, H)).T.astype(MXU_DTYPE);    k += 1
        b_f = jnp.zeros((1, 4 * H), jnp.float32)    # b_ih + b_hh, zero-initialized
        b_b = jnp.zeros((1, 4 * H), jnp.float32)
        layers.append((w_ih_f, w_ih_b, w_hh_f, w_hh_b, b_f, b_b))
    return embed, layers


# ----------------------------- Forward pass -------------------------------- #
def seq2seq_encoder_forward(params, tokens, *, time_chunk=128):
    embed, layers = params
    B, S = tokens.shape
    # Embedding gather directly into the flat time-major (S*B, D) layout.
    # TODO(synk): fuse this gather into the layer-0 kernel (scalar-prefetched ids).
    x = jnp.take(embed, tokens.T.reshape(-1), axis=0)                # (S*B, D)
    h_all, c_all = [], []
    for (w_ih_f, w_ih_b, w_hh_f, w_hh_b, b_f, b_b) in layers:
        out_f, out_b, hN, cN = bidir_lstm_layer(
            x, w_ih_f, w_ih_b, w_hh_f, w_hh_b, b_f, b_b,
            batch=B, time_chunk=time_chunk)
        h_all.append(hN.reshape(2, B, -1))                           # (2, B, H)
        c_all.append(cN.reshape(2, B, -1))
        x = jnp.concatenate([out_f, out_b], axis=-1)                 # (S*B, 2H)
    return jnp.concatenate(h_all, 0), jnp.concatenate(c_all, 0)


# ------------------------- Pure-JAX reference (check) ----------------------- #
def _ref_direction(x_seq, w_ih_t, w_hh_t, bias):
    """x_seq (S,B,D), w_ih_t (D,4H), w_hh_t (H,4H), bias (1,4H)."""
    _, B, _ = x_seq.shape
    H = w_hh_t.shape[0]

    def step(carry, x_t):
        h, c = carry
        gates = x_t @ w_ih_t + h @ w_hh_t + bias
        i_g = jax.nn.sigmoid(gates[:, 0 * H:1 * H])
        f_g = jax.nn.sigmoid(gates[:, 1 * H:2 * H])
        g_g = jnp.tanh(gates[:, 2 * H:3 * H])
        o_g = jax.nn.sigmoid(gates[:, 3 * H:4 * H])
        c_new = f_g * c + i_g * g_g
        h_new = o_g * jnp.tanh(c_new)
        return (h_new, c_new), h_new

    init = (jnp.zeros((B, H), jnp.float32), jnp.zeros((B, H), jnp.float32))
    (hN, cN), out = jax.lax.scan(step, init, x_seq)
    return out, hN, cN


def seq2seq_encoder_ref(params, tokens):
    embed, layers = params
    x_seq = jnp.take(embed, tokens.T, axis=0)                        # (S, B, D)
    f32 = jnp.float32
    h_all, c_all = [], []
    for (w_ih_f, w_ih_b, w_hh_f, w_hh_b, b_f, b_b) in layers:
        out_f, h_f, c_f = _ref_direction(x_seq, w_ih_f.astype(f32), w_hh_f.astype(f32), b_f)
        out_b_rev, h_b, c_b = _ref_direction(x_seq[::-1], w_ih_b.astype(f32),
                                             w_hh_b.astype(f32), b_b)
        out_b = out_b_rev[::-1]
        h_all += [h_f, h_b]
        c_all += [c_f, c_b]
        x_seq = jnp.concatenate([out_f, out_b], axis=-1)
    return jnp.stack(h_all, 0), jnp.stack(c_all, 0)


# --------------------------------- Main ------------------------------------ #
if __name__ == "__main__":
    batch, seq_len = 2, 8
    vocab_size, input_size, hidden_size, num_layers = 50, 32, 32, 2

    key = jax.random.PRNGKey(0)
    pkey, tkey = jax.random.split(key)
    params = init_params(pkey, vocab_size, input_size, hidden_size, num_layers)
    tokens = jax.random.randint(tkey, (batch, seq_len), 0, vocab_size, dtype=jnp.int32)

    h_ref, c_ref = seq2seq_encoder_ref(params, tokens)
    # f32 MXU path keeps a tight tolerance; widen automatically for bf16 MXU weights.
    tol = 1e-3 if jnp.dtype(MXU_DTYPE) == jnp.dtype(jnp.float32) else 3e-2

    # time_chunk=seq_len exercises the single-chunk (large-ts) path;
    # time_chunk=4 exercises the multi-chunk persistent-state carry.
    for tc in (seq_len, 4):
        run = jax.jit(lambda p, t, tc=tc: seq2seq_encoder_forward(p, t, time_chunk=tc))
        h, c = run(params, tokens)
        jax.block_until_ready((h, c))
        assert h.shape == (num_layers * 2, batch, hidden_size)
        assert c.shape == (num_layers * 2, batch, hidden_size)
        assert jnp.allclose(h, h_ref, atol=tol), f"h mismatch vs reference (time_chunk={tc})"
        assert jnp.allclose(c, c_ref, atol=tol), f"c mismatch vs reference (time_chunk={tc})"

    print("KERNEL_OK")
</pallas_src>

<mosaic_0001>
module attributes {stable_mosaic.version = 11 : i64} {
  func.func @bidir_lstm_kernel(%arg0: i32, %arg1: memref<16x32xf32, #tpu.memory_space<vmem>>, %arg2: memref<16x32xf32, #tpu.memory_space<vmem>>, %arg3: memref<32x128xf32, #tpu.memory_space<vmem>>, %arg4: memref<32x128xf32, #tpu.memory_space<vmem>>, %arg5: memref<32x128xf32, #tpu.memory_space<vmem>>, %arg6: memref<32x128xf32, #tpu.memory_space<vmem>>, %arg7: memref<1x128xf32, #tpu.memory_space<vmem>>, %arg8: memref<1x128xf32, #tpu.memory_space<vmem>>, %arg9: memref<16x32xf32, #tpu.memory_space<vmem>>, %arg10: memref<16x32xf32, #tpu.memory_space<vmem>>, %arg11: memref<4x32xf32, #tpu.memory_space<vmem>>, %arg12: memref<4x32xf32, #tpu.memory_space<vmem>>, %arg13: memref<16x128xf32, #tpu.memory_space<vmem>>, %arg14: memref<16x128xf32, #tpu.memory_space<vmem>>) attributes {dimension_semantics = [#tpu.dimension_semantics<arbitrary>], iteration_bounds = array<i64: 1>, scalar_prefetch = 0 : i64, scratch_operands = 2 : i64, tpu.core_type = #tpu.core_type<tc>, window_params = [{transform_indices = @transform_0, window_bounds = array<i64: 16, 32>}, {transform_indices = @transform_1, window_bounds = array<i64: 16, 32>}, {pipeline_mode = #tpu.pipeline_mode<synchronous>, transform_indices = @transform_2, window_bounds = array<i64: 32, 128>}, {pipeline_mode = #tpu.pipeline_mode<synchronous>, transform_indices = @transform_3, window_bounds = array<i64: 32, 128>}, {pipeline_mode = #tpu.pipeline_mode<synchronous>, transform_indices = @transform_4, window_bounds = array<i64: 32, 128>}, {pipeline_mode = #tpu.pipeline_mode<synchronous>, transform_indices = @transform_5, window_bounds = array<i64: 32, 128>}, {pipeline_mode = #tpu.pipeline_mode<synchronous>, transform_indices = @transform_6, window_bounds = array<i64: 1, 128>}, {pipeline_mode = #tpu.pipeline_mode<synchronous>, transform_indices = @transform_7, window_bounds = array<i64: 1, 128>}, {transform_indices = @transform_8, window_bounds = array<i64: 16, 32>}, {transform_indices = @transform_9, window_bounds = array<i64: 16, 32>}, {pipeline_mode = #tpu.pipeline_mode<synchronous>, transform_indices = @transform_10, window_bounds = array<i64: 4, 32>}, {pipeline_mode = #tpu.pipeline_mode<synchronous>, transform_indices = @transform_11, window_bounds = array<i64: 4, 32>}]} {
    %c0_i32 = arith.constant 0 : i32
    %0 = arith.cmpi eq, %arg0, %c0_i32 : i32
    %1 = arith.extui %0 : i1 to i32
    %c0_i32_0 = arith.constant 0 : i32
    %2 = arith.cmpi ne, %1, %c0_i32_0 : i32
    scf.if %2 {
      %cst_126 = arith.constant 0.000000e+00 : f32
      %399 = vector.broadcast %cst_126 : f32 to vector<4x32xf32>
      %c0_127 = arith.constant 0 : index
      %c0_128 = arith.constant 0 : index
      %400 = vector.load %arg11[%c0_127, %c0_128] : memref<4x32xf32, #tpu.memory_space<vmem>>, vector<4x32xf32>
      tpu.vector_store %arg11[%c0_127, %c0_128], %399 {strides = array<i32>} : memref<4x32xf32, #tpu.memory_space<vmem>>, vector<4x32xf32>,
      %cst_129 = arith.constant 0.000000e+00 : f32
      %401 = vector.broadcast %cst_129 : f32 to vector<4x32xf32>
      %c0_130 = arith.constant 0 : index
      %c0_131 = arith.constant 0 : index
      %402 = vector.load %arg12[%c0_130, %c0_131] : memref<4x32xf32, #tpu.memory_space<vmem>>, vector<4x32xf32>
      tpu.vector_store %arg12[%c0_130, %c0_131], %401 {strides = array<i32>} : memref<4x32xf32, #tpu.memory_space<vmem>>, vector<4x32xf32>,
    } else {
    }
    %c0 = arith.constant 0 : index
    %c0_1 = arith.constant 0 : index
    %3 = vector.load %arg1[%c0, %c0_1] : memref<16x32xf32, #tpu.memory_space<vmem>>, vector<16x32xf32>
    %c0_2 = arith.constant 0 : index
    %c0_3 = arith.constant 0 : index
    %4 = vector.load %arg3[%c0_2, %c0_3] : memref<32x128xf32, #tpu.memory_space<vmem>>, vector<32x128xf32>
    %cst = arith.constant dense<0.000000e+00> : vector<16x128xf32>
    %5 = tpu.matmul %3, %4, %cst {dimension_numbers = #tpu.dot_dimension_numbers<[1], [0], [0], [1], [0, 0, 1, 1], [], []>} : vector<16x32xf32>, vector<32x128xf32>, vector<16x128xf32> -> vector<16x128xf32>
    %c0_4 = arith.constant 0 : index
    %c0_5 = arith.constant 0 : index
    %6 = vector.load %arg7[%c0_4, %c0_5] : memref<1x128xf32, #tpu.memory_space<vmem>>, vector<1x128xf32>
    %7 = vector.broadcast %6 : vector<1x128xf32> to vector<16x128xf32>
    %8 = arith.addf %5, %7 : vector<16x128xf32>
    %c0_6 = arith.constant 0 : index
    %c0_7 = arith.constant 0 : index
    %9 = vector.load %arg13[%c0_6, %c0_7] : memref<16x128xf32, #tpu.memory_space<vmem>>, vector<16x128xf32>
    tpu.vector_store %arg13[%c0_6, %c0_7], %8 {strides = array<i32>} : memref<16x128xf32, #tpu.memory_space<vmem>>, vector<16x128xf32>,
    %c0_8 = arith.constant 0 : index
    %c0_9 = arith.constant 0 : index
    %10 = vector.load %arg2[%c0_8, %c0_9] : memref<16x32xf32, #tpu.memory_space<vmem>>, vector<16x32xf32>
    %c0_10 = arith.constant 0 : index
    %c0_11 = arith.constant 0 : index
    %11 = vector.load %arg4[%c0_10, %c0_11] : memref<32x128xf32, #tpu.memory_space<vmem>>, vector<32x128xf32>
    %cst_12 = arith.constant dense<0.000000e+00> : vector<16x128xf32>
    %12 = tpu.matmul %10, %11, %cst_12 {dimension_numbers = #tpu.dot_dimension_numbers<[1], [0], [0], [1], [0, 0, 1, 1], [], []>} : vector<16x32xf32>, vector<32x128xf32>, vector<16x128xf32> -> vector<16x128xf32>
    %c0_13 = arith.constant 0 : index
    %c0_14 = arith.constant 0 : index
    %13 = vector.load %arg8[%c0_13, %c0_14] : memref<1x128xf32, #tpu.memory_space<vmem>>, vector<1x128xf32>
    %14 = vector.broadcast %13 : vector<1x128xf32> to vector<16x128xf32>
    %15 = arith.addf %12, %14 : vector<16x128xf32>
    %c0_15 = arith.constant 0 : index
    %c0_16 = arith.constant 0 : index
    %16 = vector.load %arg14[%c0_15, %c0_16] : memref<16x128xf32, #tpu.memory_space<vmem>>, vector<16x128xf32>
    tpu.vector_store %arg14[%c0_15, %c0_16], %15 {strides = array<i32>} : memref<16x128xf32, #tpu.memory_space<vmem>>, vector<16x128xf32>,
    %c0_17 = arith.constant 0 : index
    %c0_18 = arith.constant 0 : index
    %17 = vector.load %arg5[%c0_17, %c0_18] : memref<32x128xf32, #tpu.memory_space<vmem>>, vector<32x128xf32>
    %c0_19 = arith.constant 0 : index
    %c0_20 = arith.constant 0 : index
    %18 = vector.load %arg6[%c0_19, %c0_20] : memref<32x128xf32, #tpu.memory_space<vmem>>, vector<32x128xf32>
    %c0_21 = arith.constant 0 : index
    %c0_22 = arith.constant 0 : index
    %19 = vector.load %arg11[%c0_21, %c0_22] : memref<4x32xf32, #tpu.memory_space<vmem>>, vector<4x32xf32>
    %c0_23 = arith.constant 0 : index
    %c0_24 = arith.constant 0 : index
    %20 = vector.load %arg12[%c0_23, %c0_24] : memref<4x32xf32, #tpu.memory_space<vmem>>, vector<4x32xf32>
    %c0_i32_25 = arith.constant 0 : i32
    %c2_i32 = arith.constant 2 : i32
    %21 = arith.muli %c0_i32_25, %c2_i32 : i32
    %22 = tpu.assume_multiple %21, 2 : i32
    %c7_i32 = arith.constant 7 : i32
    %23 = arith.subi %c7_i32, %c0_i32_25 : i32
    %c2_i32_26 = arith.constant 2 : i32
    %24 = arith.muli %23, %c2_i32_26 : i32
    %25 = tpu.assume_multiple %24, 2 : i32
    %26 = vector.extract_strided_slice %19 {offsets = [0, 0], sizes = [2, 32], strides = [1, 1]} : vector<4x32xf32> to vector<2x32xf32>
    %cst_27 = arith.constant dense<0.000000e+00> : vector<2x128xf32>
    %27 = tpu.matmul %26, %17, %cst_27 {dimension_numbers = #tpu.dot_dimension_numbers<[1], [0], [0], [1], [0, 0, 1, 1], [], []>} : vector<2x32xf32>, vector<32x128xf32>, vector<2x128xf32> -> vector<2x128xf32>
    %28 = vector.extract_strided_slice %19 {offsets = [2, 0], sizes = [2, 32], strides = [1, 1]} : vector<4x32xf32> to vector<2x32xf32>
    %cst_28 = arith.constant dense<0.000000e+00> : vector<2x128xf32>
    %29 = tpu.matmul %28, %18, %cst_28 {dimension_numbers = #tpu.dot_dimension_numbers<[1], [0], [0], [1], [0, 0, 1, 1], [], []>} : vector<2x32xf32>, vector<32x128xf32>, vector<2x128xf32> -> vector<2x128xf32>
    %30 = arith.index_cast %22 : i32 to index
    %c0_29 = arith.constant 0 : index
    %31 = vector.load %arg13[%30, %c0_29] : memref<16x128xf32, #tpu.memory_space<vmem>>, vector<2x128xf32>
    %32 = arith.addf %31, %27 : vector<2x128xf32>
    %33 = arith.index_cast %25 : i32 to index
    %c0_30 = arith.constant 0 : index
    %34 = vector.load %arg14[%33, %c0_30] : memref<16x128xf32, #tpu.memory_space<vmem>>, vector<2x128xf32>
    %35 = arith.addf %34, %29 : vector<2x128xf32>
    %36 = tpu.concatenate %32, %35 in 0 : vector<2x128xf32>, vector<2x128xf32> -> vector<4x128xf32>
    %37 = vector.extract_strided_slice %36 {offsets = [0, 0], sizes = [4, 32], strides = [1, 1]} : vector<4x128xf32> to vector<4x32xf32>
    %38 = arith.negf %37 : vector<4x32xf32>
    %39 = math.exp %38 : vector<4x32xf32>
    %cst_31 = arith.constant 1.000000e+00 : f32
    %40 = vector.broadcast %cst_31 : f32 to vector<4x32xf32>
    %41 = arith.addf %40, %39 : vector<4x32xf32>
    %42 = arith.divf %40, %41 : vector<4x32xf32>
    %43 = vector.extract_strided_slice %36 {offsets = [0, 32], sizes = [4, 32], strides = [1, 1]} : vector<4x128xf32> to vector<4x32xf32>
    %44 = arith.negf %43 : vector<4x32xf32>
    %45 = math.exp %44 : vector<4x32xf32>
    %cst_32 = arith.constant 1.000000e+00 : f32
    %46 = vector.broadcast %cst_32 : f32 to vector<4x32xf32>
    %47 = arith.addf %46, %45 : vector<4x32xf32>
    %48 = arith.divf %46, %47 : vector<4x32xf32>
    %49 = vector.extract_strided_slice %36 {offsets = [0, 64], sizes = [4, 32], strides = [1, 1]} : vector<4x128xf32> to vector<4x32xf32>
    %50 = math.tanh %49 : vector<4x32xf32>
    %51 = vector.extract_strided_slice %36 {offsets = [0, 96], sizes = [4, 32], strides = [1, 1]} : vector<4x128xf32> to vector<4x32xf32>
    %52 = arith.negf %51 : vector<4x32xf32>
    %53 = math.exp %52 : vector<4x32xf32>
    %cst_33 = arith.constant 1.000000e+00 : f32
    %54 = vector.broadcast %cst_33 : f32 to vector<4x32xf32>
    %55 = arith.addf %54, %53 : vector<4x32xf32>
    %56 = arith.divf %54, %55 : vector<4x32xf32>
    %57 = arith.mulf %48, %20 : vector<4x32xf32>
    %58 = arith.mulf %42, %50 : vector<4x32xf32>
    %59 = arith.addf %57, %58 : vector<4x32xf32>
    %60 = math.tanh %59 : vector<4x32xf32>
    %61 = arith.mulf %56, %60 : vector<4x32xf32>
    %62 = vector.extract_strided_slice %61 {offsets = [0, 0], sizes = [2, 32], strides = [1, 1]} : vector<4x32xf32> to vector<2x32xf32>
    %63 = arith.index_cast %22 : i32 to index
    %c0_34 = arith.constant 0 : index
    %64 = vector.load %arg9[%63, %c0_34] : memref<16x32xf32, #tpu.memory_space<vmem>>, vector<2x32xf32>
    tpu.vector_store %arg9[%63, %c0_34], %62 {strides = array<i32>} : memref<16x32xf32, #tpu.memory_space<vmem>>, vector<2x32xf32>,
    %65 = vector.extract_strided_slice %61 {offsets = [2, 0], sizes = [2, 32], strides = [1, 1]} : vector<4x32xf32> to vector<2x32xf32>
    %66 = arith.index_cast %25 : i32 to index
    %c0_35 = arith.constant 0 : index
    %67 = vector.load %arg10[%66, %c0_35] : memref<16x32xf32, #tpu.memory_space<vmem>>, vector<2x32xf32>
    tpu.vector_store %arg10[%66, %c0_35], %65 {strides = array<i32>} : memref<16x32xf32, #tpu.memory_space<vmem>>, vector<2x32xf32>,
    %c1_i32 = arith.constant 1 : i32
    %c2_i32_36 = arith.constant 2 : i32
    %68 = arith.muli %c1_i32, %c2_i32_36 : i32
    %69 = tpu.assume_multiple %68, 2 : i32
    %c7_i32_37 = arith.constant 7 : i32
    %70 = arith.subi %c7_i32_37, %c1_i32 : i32
    %c2_i32_38 = arith.constant 2 : i32
    %71 = arith.muli %70, %c2_i32_38 : i32
    %72 = tpu.assume_multiple %71, 2 : i32
    %73 = vector.extract_strided_slice %61 {offsets = [0, 0], sizes = [2, 32], strides = [1, 1]} : vector<4x32xf32> to vector<2x32xf32>
    %cst_39 = arith.constant dense<0.000000e+00> : vector<2x128xf32>
    %74 = tpu.matmul %73, %17, %cst_39 {dimension_numbers = #tpu.dot_dimension_numbers<[1], [0], [0], [1], [0, 0, 1, 1], [], []>} : vector<2x32xf32>, vector<32x128xf32>, vector<2x128xf32> -> vector<2x128xf32>
    %75 = vector.extract_strided_slice %61 {offsets = [2, 0], sizes = [2, 32], strides = [1, 1]} : vector<4x32xf32> to vector<2x32xf32>
    %cst_40 = arith.constant dense<0.000000e+00> : vector<2x128xf32>
    %76 = tpu.matmul %75, %18, %cst_40 {dimension_numbers = #tpu.dot_dimension_numbers<[1], [0], [0], [1], [0, 0, 1, 1], [], []>} : vector<2x32xf32>, vector<32x128xf32>, vector<2x128xf32> -> vector<2x128xf32>
    %77 = arith.index_cast %69 : i32 to index
    %c0_41 = arith.constant 0 : index
    %78 = vector.load %arg13[%77, %c0_41] : memref<16x128xf32, #tpu.memory_space<vmem>>, vector<2x128xf32>
    %79 = arith.addf %78, %74 : vector<2x128xf32>
    %80 = arith.index_cast %72 : i32 to index
    %c0_42 = arith.constant 0 : index
    %81 = vector.load %arg14[%80, %c0_42] : memref<16x128xf32, #tpu.memory_space<vmem>>, vector<2x128xf32>
    %82 = arith.addf %81, %76 : vector<2x128xf32>
    %83 = tpu.concatenate %79, %82 in 0 : vector<2x128xf32>, vector<2x128xf32> -> vector<4x128xf32>
    %84 = vector.extract_strided_slice %83 {offsets = [0, 0], sizes = [4, 32], strides = [1, 1]} : vector<4x128xf32> to vector<4x32xf32>
    %85 = arith.negf %84 : vector<4x32xf32>
    %86 = math.exp %85 : vector<4x32xf32>
    %cst_43 = arith.constant 1.000000e+00 : f32
    %87 = vector.broadcast %cst_43 : f32 to vector<4x32xf32>
    %88 = arith.addf %87, %86 : vector<4x32xf32>
    %89 = arith.divf %87, %88 : vector<4x32xf32>
    %90 = vector.extract_strided_slice %83 {offsets = [0, 32], sizes = [4, 32], strides = [1, 1]} : vector<4x128xf32> to vector<4x32xf32>
    %91 = arith.negf %90 : vector<4x32xf32>
    %92 = math.exp %91 : vector<4x32xf32>
    %cst_44 = arith.constant 1.000000e+00 : f32
    %93 = vector.broadcast %cst_44 : f32 to vector<4x32xf32>
    %94 = arith.addf %93, %92 : vector<4x32xf32>
    %95 = arith.divf %93, %94 : vector<4x32xf32>
    %96 = vector.extract_strided_slice %83 {offsets = [0, 64], sizes = [4, 32], strides = [1, 1]} : vector<4x128xf32> to vector<4x32xf32>
    %97 = math.tanh %96 : vector<4x32xf32>
    %98 = vector.extract_strided_slice %83 {offsets = [0, 96], sizes = [4, 32], strides = [1, 1]} : vector<4x128xf32> to vector<4x32xf32>
    %99 = arith.negf %98 : vector<4x32xf32>
    %100 = math.exp %99 : vector<4x32xf32>
    %cst_45 = arith.constant 1.000000e+00 : f32
    %101 = vector.broadcast %cst_45 : f32 to vector<4x32xf32>
    %102 = arith.addf %101, %100 : vector<4x32xf32>
    %103 = arith.divf %101, %102 : vector<4x32xf32>
    %104 = arith.mulf %95, %59 : vector<4x32xf32>
    %105 = arith.mulf %89, %97 : vector<4x32xf32>
    %106 = arith.addf %104, %105 : vector<4x32xf32>
    %107 = math.tanh %106 : vector<4x32xf32>
    %108 = arith.mulf %103, %107 : vector<4x32xf32>
    %109 = vector.extract_strided_slice %108 {offsets = [0, 0], sizes = [2, 32], strides = [1, 1]} : vector<4x32xf32> to vector<2x32xf32>
    %110 = arith.index_cast %69 : i32 to index
    %c0_46 = arith.constant 0 : index
    %111 = vector.load %arg9[%110, %c0_46] : memref<16x32xf32, #tpu.memory_space<vmem>>, vector<2x32xf32>
    tpu.vector_store %arg9[%110, %c0_46], %109 {strides = array<i32>} : memref<16x32xf32, #tpu.memory_space<vmem>>, vector<2x32xf32>,
    %112 = vector.extract_strided_slice %108 {offsets = [2, 0], sizes = [2, 32], strides = [1, 1]} : vector<4x32xf32> to vector<2x32xf32>
    %113 = arith.index_cast %72 : i32 to index
    %c0_47 = arith.constant 0 : index
    %114 = vector.load %arg10[%113, %c0_47] : memref<16x32xf32, #tpu.memory_space<vmem>>, vector<2x32xf32>
    tpu.vector_store %arg10[%113, %c0_47], %112 {strides = array<i32>} : memref<16x32xf32, #tpu.memory_space<vmem>>, vector<2x32xf32>,
    %c2_i32_48 = arith.constant 2 : i32
    %c2_i32_49 = arith.constant 2 : i32
    %115 = arith.muli %c2_i32_48, %c2_i32_49 : i32
    %116 = tpu.assume_multiple %115, 2 : i32
    %c7_i32_50 = arith.constant 7 : i32
    %117 = arith.subi %c7_i32_50, %c2_i32_48 : i32
    %c2_i32_51 = arith.constant 2 : i32
    %118 = arith.muli %117, %c2_i32_51 : i32
    %119 = tpu.assume_multiple %118, 2 : i32
    %120 = vector.extract_strided_slice %108 {offsets = [0, 0], sizes = [2, 32], strides = [1, 1]} : vector<4x32xf32> to vector<2x32xf32>
    %cst_52 = arith.constant dense<0.000000e+00> : vector<2x128xf32>
    %121 = tpu.matmul %120, %17, %cst_52 {dimension_numbers = #tpu.dot_dimension_numbers<[1], [0], [0], [1], [0, 0, 1, 1], [], []>} : vector<2x32xf32>, vector<32x128xf32>, vector<2x128xf32> -> vector<2x128xf32>
    %122 = vector.extract_strided_slice %108 {offsets = [2, 0], sizes = [2, 32], strides = [1, 1]} : vector<4x32xf32> to vector<2x32xf32>
    %cst_53 = arith.constant dense<0.000000e+00> : vector<2x128xf32>
    %123 = tpu.matmul %122, %18, %cst_53 {dimension_numbers = #tpu.dot_dimension_numbers<[1], [0], [0], [1], [0, 0, 1, 1], [], []>} : vector<2x32xf32>, vector<32x128xf32>, vector<2x128xf32> -> vector<2x128xf32>
    %124 = arith.index_cast %116 : i32 to index
    %c0_54 = arith.constant 0 : index
    %125 = vector.load %arg13[%124, %c0_54] : memref<16x128xf32, #tpu.memory_space<vmem>>, vector<2x128xf32>
    %126 = arith.addf %125, %121 : vector<2x128xf32>
    %127 = arith.index_cast %119 : i32 to index
    %c0_55 = arith.constant 0 : index
    %128 = vector.load %arg14[%127, %c0_55] : memref<16x128xf32, #tpu.memory_space<vmem>>, vector<2x128xf32>
    %129 = arith.addf %128, %123 : vector<2x128xf32>
    %130 = tpu.concatenate %126, %129 in 0 : vector<2x128xf32>, vector<2x128xf32> -> vector<4x128xf32>
    %131 = vector.extract_strided_slice %130 {offsets = [0, 0], sizes = [4, 32], strides = [1, 1]} : vector<4x128xf32> to vector<4x32xf32>
    %132 = arith.negf %131 : vector<4x32xf32>
    %133 = math.exp %132 : vector<4x32xf32>
    %cst_56 = arith.constant 1.000000e+00 : f32
    %134 = vector.broadcast %cst_56 : f32 to vector<4x32xf32>
    %135 = arith.addf %134, %133 : vector<4x32xf32>
    %136 = arith.divf %134, %135 : vector<4x32xf32>
    %137 = vector.extract_strided_slice %130 {offsets = [0, 32], sizes = [4, 32], strides = [1, 1]} : vector<4x128xf32> to vector<4x32xf32>
    %138 = arith.negf %137 : vector<4x32xf32>
    %139 = math.exp %138 : vector<4x32xf32>
    %cst_57 = arith.constant 1.000000e+00 : f32
    %140 = vector.broadcast %cst_57 : f32 to vector<4x32xf32>
    %141 = arith.addf %140, %139 : vector<4x32xf32>
    %142 = arith.divf %140, %141 : vector<4x32xf32>
    %143 = vector.extract_strided_slice %130 {offsets = [0, 64], sizes = [4, 32], strides = [1, 1]} : vector<4x128xf32> to vector<4x32xf32>
    %144 = math.tanh %143 : vector<4x32xf32>
    %145 = vector.extract_strided_slice %130 {offsets = [0, 96], sizes = [4, 32], strides = [1, 1]} : vector<4x128xf32> to vector<4x32xf32>
    %146 = arith.negf %145 : vector<4x32xf32>
    %147 = math.exp %146 : vector<4x32xf32>
    %cst_58 = arith.constant 1.000000e+00 : f32
    %148 = vector.broadcast %cst_58 : f32 to vector<4x32xf32>
    %149 = arith.addf %148, %147 : vector<4x32xf32>
    %150 = arith.divf %148, %149 : vector<4x32xf32>
    %151 = arith.mulf %142, %106 : vector<4x32xf32>
    %152 = arith.mulf %136, %144 : vector<4x32xf32>
    %153 = arith.addf %151, %152 : vector<4x32xf32>
    %154 = math.tanh %153 : vector<4x32xf32>
    %155 = arith.mulf %150, %154 : vector<4x32xf32>
    %156 = vector.extract_strided_slice %155 {offsets = [0, 0], sizes = [2, 32], strides = [1, 1]} : vector<4x32xf32> to vector<2x32xf32>
    %157 = arith.index_cast %116 : i32 to index
    %c0_59 = arith.constant 0 : index
    %158 = vector.load %arg9[%157, %c0_59] : memref<16x32xf32, #tpu.memory_space<vmem>>, vector<2x32xf32>
    tpu.vector_store %arg9[%157, %c0_59], %156 {strides = array<i32>} : memref<16x32xf32, #tpu.memory_space<vmem>>, vector<2x32xf32>,
    %159 = vector.extract_strided_slice %155 {offsets = [2, 0], sizes = [2, 32], strides = [1, 1]} : vector<4x32xf32> to vector<2x32xf32>
    %160 = arith.index_cast %119 : i32 to index
    %c0_60 = arith.constant 0 : index
    %161 = vector.load %arg10[%160, %c0_60] : memref<16x32xf32, #tpu.memory_space<vmem>>, vector<2x32xf32>
    tpu.vector_store %arg10[%160, %c0_60], %159 {strides = array<i32>} : memref<16x32xf32, #tpu.memory_space<vmem>>, vector<2x32xf32>,
    %c3_i32 = arith.constant 3 : i32
    %c2_i32_61 = arith.constant 2 : i32
    %162 = arith.muli %c3_i32, %c2_i32_61 : i32
    %163 = tpu.assume_multiple %162, 2 : i32
    %c7_i32_62 = arith.constant 7 : i32
    %164 = arith.subi %c7_i32_62, %c3_i32 : i32
    %c2_i32_63 = arith.constant 2 : i32
    %165 = arith.muli %164, %c2_i32_63 : i32
    %166 = tpu.assume_multiple %165, 2 : i32
    %167 = vector.extract_strided_slice %155 {offsets = [0, 0], sizes = [2, 32], strides = [1, 1]} : vector<4x32xf32> to vector<2x32xf32>
    %cst_64 = arith.constant dense<0.000000e+00> : vector<2x128xf32>
    %168 = tpu.matmul %167, %17, %cst_64 {dimension_numbers = #tpu.dot_dimension_numbers<[1], [0], [0], [1], [0, 0, 1, 1], [], []>} : vector<2x32xf32>, vector<32x128xf32>, vector<2x128xf32> -> vector<2x128xf32>
    %169 = vector.extract_strided_slice %155 {offsets = [2, 0], sizes = [2, 32], strides = [1, 1]} : vector<4x32xf32> to vector<2x32xf32>
    %cst_65 = arith.constant dense<0.000000e+00> : vector<2x128xf32>
    %170 = tpu.matmul %169, %18, %cst_65 {dimension_numbers = #tpu.dot_dimension_numbers<[1], [0], [0], [1], [0, 0, 1, 1], [], []>} : vector<2x32xf32>, vector<32x128xf32>, vector<2x128xf32> -> vector<2x128xf32>
    %171 = arith.index_cast %163 : i32 to index
    %c0_66 = arith.constant 0 : index
    %172 = vector.load %arg13[%171, %c0_66] : memref<16x128xf32, #tpu.memory_space<vmem>>, vector<2x128xf32>
    %173 = arith.addf %172, %168 : vector<2x128xf32>
    %174 = arith.index_cast %166 : i32 to index
    %c0_67 = arith.constant 0 : index
    %175 = vector.load %arg14[%174, %c0_67] : memref<16x128xf32, #tpu.memory_space<vmem>>, vector<2x128xf32>
    %176 = arith.addf %175, %170 : vector<2x128xf32>
    %177 = tpu.concatenate %173, %176 in 0 : vector<2x128xf32>, vector<2x128xf32> -> vector<4x128xf32>
    %178 = vector.extract_strided_slice %177 {offsets = [0, 0], sizes = [4, 32], strides = [1, 1]} : vector<4x128xf32> to vector<4x32xf32>
    %179 = arith.negf %178 : vector<4x32xf32>
    %180 = math.exp %179 : vector<4x32xf32>
    %cst_68 = arith.constant 1.000000e+00 : f32
    %181 = vector.broadcast %cst_68 : f32 to vector<4x32xf32>
    %182 = arith.addf %181, %180 : vector<4x32xf32>
    %183 = arith.divf %181, %182 : vector<4x32xf32>
    %184 = vector.extract_strided_slice %177 {offsets = [0, 32], sizes = [4, 32], strides = [1, 1]} : vector<4x128xf32> to vector<4x32xf32>
    %185 = arith.negf %184 : vector<4x32xf32>
    %186 = math.exp %185 : vector<4x32xf32>
    %cst_69 = arith.constant 1.000000e+00 : f32
    %187 = vector.broadcast %cst_69 : f32 to vector<4x32xf32>
    %188 = arith.addf %187, %186 : vector<4x32xf32>
    %189 = arith.divf %187, %188 : vector<4x32xf32>
    %190 = vector.extract_strided_slice %177 {offsets = [0, 64], sizes = [4, 32], strides = [1, 1]} : vector<4x128xf32> to vector<4x32xf32>
    %191 = math.tanh %190 : vector<4x32xf32>
    %192 = vector.extract_strided_slice %177 {offsets = [0, 96], sizes = [4, 32], strides = [1, 1]} : vector<4x128xf32> to vector<4x32xf32>
    %193 = arith.negf %192 : vector<4x32xf32>
    %194 = math.exp %193 : vector<4x32xf32>
    %cst_70 = arith.constant 1.000000e+00 : f32
    %195 = vector.broadcast %cst_70 : f32 to vector<4x32xf32>
    %196 = arith.addf %195, %194 : vector<4x32xf32>
    %197 = arith.divf %195, %196 : vector<4x32xf32>
    %198 = arith.mulf %189, %153 : vector<4x32xf32>
    %199 = arith.mulf %183, %191 : vector<4x32xf32>
    %200 = arith.addf %198, %199 : vector<4x32xf32>
    %201 = math.tanh %200 : vector<4x32xf32>
    %202 = arith.mulf %197, %201 : vector<4x32xf32>
    %203 = vector.extract_strided_slice %202 {offsets = [0, 0], sizes = [2, 32], strides = [1, 1]} : vector<4x32xf32> to vector<2x32xf32>
    %204 = arith.index_cast %163 : i32 to index
    %c0_71 = arith.constant 0 : index
    %205 = vector.load %arg9[%204, %c0_71] : memref<16x32xf32, #tpu.memory_space<vmem>>, vector<2x32xf32>
    tpu.vector_store %arg9[%204, %c0_71], %203 {strides = array<i32>} : memref<16x32xf32, #tpu.memory_space<vmem>>, vector<2x32xf32>,
    %206 = vector.extract_strided_slice %202 {offsets = [2, 0], sizes = [2, 32], strides = [1, 1]} : vector<4x32xf32> to vector<2x32xf32>
    %207 = arith.index_cast %166 : i32 to index
    %c0_72 = arith.constant 0 : index
    %208 = vector.load %arg10[%207, %c0_72] : memref<16x32xf32, #tpu.memory_space<vmem>>, vector<2x32xf32>
    tpu.vector_store %arg10[%207, %c0_72], %206 {strides = array<i32>} : memref<16x32xf32, #tpu.memory_space<vmem>>, vector<2x32xf32>,
    %c4_i32 = arith.constant 4 : i32
    %c2_i32_73 = arith.constant 2 : i32
    %209 = arith.muli %c4_i32, %c2_i32_73 : i32
    %210 = tpu.assume_multiple %209, 2 : i32
    %c7_i32_74 = arith.constant 7 : i32
    %211 = arith.subi %c7_i32_74, %c4_i32 : i32
    %c2_i32_75 = arith.constant 2 : i32
    %212 = arith.muli %211, %c2_i32_75 : i32
    %213 = tpu.assume_multiple %212, 2 : i32
    %214 = vector.extract_strided_slice %202 {offsets = [0, 0], sizes = [2, 32], strides = [1, 1]} : vector<4x32xf32> to vector<2x32xf32>
    %cst_76 = arith.constant dense<0.000000e+00> : vector<2x128xf32>
    %215 = tpu.matmul %214, %17, %cst_76 {dimension_numbers = #tpu.dot_dimension_numbers<[1], [0], [0], [1], [0, 0, 1, 1], [], []>} : vector<2x32xf32>, vector<32x128xf32>, vector<2x128xf32> -> vector<2x128xf32>
    %216 = vector.extract_strided_slice %202 {offsets = [2, 0], sizes = [2, 32], strides = [1, 1]} : vector<4x32xf32> to vector<2x32xf32>
    %cst_77 = arith.constant dense<0.000000e+00> : vector<2x128xf32>
    %217 = tpu.matmul %216, %18, %cst_77 {dimension_numbers = #tpu.dot_dimension_numbers<[1], [0], [0], [1], [0, 0, 1, 1], [], []>} : vector<2x32xf32>, vector<32x128xf32>, vector<2x128xf32> -> vector<2x128xf32>
    %218 = arith.index_cast %210 : i32 to index
    %c0_78 = arith.constant 0 : index
    %219 = vector.load %arg13[%218, %c0_78] : memref<16x128xf32, #tpu.memory_space<vmem>>, vector<2x128xf32>
    %220 = arith.addf %219, %215 : vector<2x128xf32>
    %221 = arith.index_cast %213 : i32 to index
    %c0_79 = arith.constant 0 : index
    %222 = vector.load %arg14[%221, %c0_79] : memref<16x128xf32, #tpu.memory_space<vmem>>, vector<2x128xf32>
    %223 = arith.addf %222, %217 : vector<2x128xf32>
    %224 = tpu.concatenate %220, %223 in 0 : vector<2x128xf32>, vector<2x128xf32> -> vector<4x128xf32>
    %225 = vector.extract_strided_slice %224 {offsets = [0, 0], sizes = [4, 32], strides = [1, 1]} : vector<4x128xf32> to vector<4x32xf32>
    %226 = arith.negf %225 : vector<4x32xf32>
    %227 = math.exp %226 : vector<4x32xf32>
    %cst_80 = arith.constant 1.000000e+00 : f32
    %228 = vector.broadcast %cst_80 : f32 to vector<4x32xf32>
    %229 = arith.addf %228, %227 : vector<4x32xf32>
    %230 = arith.divf %228, %229 : vector<4x32xf32>
    %231 = vector.extract_strided_slice %224 {offsets = [0, 32], sizes = [4, 32], strides = [1, 1]} : vector<4x128xf32> to vector<4x32xf32>
    %232 = arith.negf %231 : vector<4x32xf32>
    %233 = math.exp %232 : vector<4x32xf32>
    %cst_81 = arith.constant 1.000000e+00 : f32
    %234 = vector.broadcast %cst_81 : f32 to vector<4x32xf32>
    %235 = arith.addf %234, %233 : vector<4x32xf32>
    %236 = arith.divf %234, %235 : vector<4x32xf32>
    %237 = vector.extract_strided_slice %224 {offsets = [0, 64], sizes = [4, 32], strides = [1, 1]} : vector<4x128xf32> to vector<4x32xf32>
    %238 = math.tanh %237 : vector<4x32xf32>
    %239 = vector.extract_strided_slice %224 {offsets = [0, 96], sizes = [4, 32], strides = [1, 1]} : vector<4x128xf32> to vector<4x32xf32>
    %240 = arith.negf %239 : vector<4x32xf32>
    %241 = math.exp %240 : vector<4x32xf32>
    %cst_82 = arith.constant 1.000000e+00 : f32
    %242 = vector.broadcast %cst_82 : f32 to vector<4x32xf32>
    %243 = arith.addf %242, %241 : vector<4x32xf32>
    %244 = arith.divf %242, %243 : vector<4x32xf32>
    %245 = arith.mulf %236, %200 : vector<4x32xf32>
    %246 = arith.mulf %230, %238 : vector<4x32xf32>
    %247 = arith.addf %245, %246 : vector<4x32xf32>
    %248 = math.tanh %247 : vector<4x32xf32>
    %249 = arith.mulf %244, %248 : vector<4x32xf32>
    %250 = vector.extract_strided_slice %249 {offsets = [0, 0], sizes = [2, 32], strides = [1, 1]} : vector<4x32xf32> to vector<2x32xf32>
    %251 = arith.index_cast %210 : i32 to index
    %c0_83 = arith.constant 0 : index
    %252 = vector.load %arg9[%251, %c0_83] : memref<16x32xf32, #tpu.memory_space<vmem>>, vector<2x32xf32>
    tpu.vector_store %arg9[%251, %c0_83], %250 {strides = array<i32>} : memref<16x32xf32, #tpu.memory_space<vmem>>, vector<2x32xf32>,
    %253 = vector.extract_strided_slice %249 {offsets = [2, 0], sizes = [2, 32], strides = [1, 1]} : vector<4x32xf32> to vector<2x32xf32>
    %254 = arith.index_cast %213 : i32 to index
    %c0_84 = arith.constant 0 : index
    %255 = vector.load %arg10[%254, %c0_84] : memref<16x32xf32, #tpu.memory_space<vmem>>, vector<2x32xf32>
    tpu.vector_store %arg10[%254, %c0_84], %253 {strides = array<i32>} : memref<16x32xf32, #tpu.memory_space<vmem>>, vector<2x32xf32>,
    %c5_i32 = arith.constant 5 : i32
    %c2_i32_85 = arith.constant 2 : i32
    %256 = arith.muli %c5_i32, %c2_i32_85 : i32
    %257 = tpu.assume_multiple %256, 2 : i32
    %c7_i32_86 = arith.constant 7 : i32
    %258 = arith.subi %c7_i32_86, %c5_i32 : i32
    %c2_i32_87 = arith.constant 2 : i32
    %259 = arith.muli %258, %c2_i32_87 : i32
    %260 = tpu.assume_multiple %259, 2 : i32
    %261 = vector.extract_strided_slice %249 {offsets = [0, 0], sizes = [2, 32], strides = [1, 1]} : vector<4x32xf32> to vector<2x32xf32>
    %cst_88 = arith.constant dense<0.000000e+00> : vector<2x128xf32>
    %262 = tpu.matmul %261, %17, %cst_88 {dimension_numbers = #tpu.dot_dimension_numbers<[1], [0], [0], [1], [0, 0, 1, 1], [], []>} : vector<2x32xf32>, vector<32x128xf32>, vector<2x128xf32> -> vector<2x128xf32>
    %263 = vector.extract_strided_slice %249 {offsets = [2, 0], sizes = [2, 32], strides = [1, 1]} : vector<4x32xf32> to vector<2x32xf32>
    %cst_89 = arith.constant dense<0.000000e+00> : vector<2x128xf32>
    %264 = tpu.matmul %263, %18, %cst_89 {dimension_numbers = #tpu.dot_dimension_numbers<[1], [0], [0], [1], [0, 0, 1, 1], [], []>} : vector<2x32xf32>, vector<32x128xf32>, vector<2x128xf32> -> vector<2x128xf32>
    %265 = arith.index_cast %257 : i32 to index
    %c0_90 = arith.constant 0 : index
    %266 = vector.load %arg13[%265, %c0_90] : memref<16x128xf32, #tpu.memory_space<vmem>>, vector<2x128xf32>
    %267 = arith.addf %266, %262 : vector<2x128xf32>
    %268 = arith.index_cast %260 : i32 to index
    %c0_91 = arith.constant 0 : index
    %269 = vector.load %arg14[%268, %c0_91] : memref<16x128xf32, #tpu.memory_space<vmem>>, vector<2x128xf32>
    %270 = arith.addf %269, %264 : vector<2x128xf32>
    %271 = tpu.concatenate %267, %270 in 0 : vector<2x128xf32>, vector<2x128xf32> -> vector<4x128xf32>
    %272 = vector.extract_strided_slice %271 {offsets = [0, 0], sizes = [4, 32], strides = [1, 1]} : vector<4x128xf32> to vector<4x32xf32>
    %273 = arith.negf %272 : vector<4x32xf32>
    %274 = math.exp %273 : vector<4x32xf32>
    %cst_92 = arith.constant 1.000000e+00 : f32
    %275 = vector.broadcast %cst_92 : f32 to vector<4x32xf32>
    %276 = arith.addf %275, %274 : vector<4x32xf32>
    %277 = arith.divf %275, %276 : vector<4x32xf32>
    %278 = vector.extract_strided_slice %271 {offsets = [0, 32], sizes = [4, 32], strides = [1, 1]} : vector<4x128xf32> to vector<4x32xf32>
    %279 = arith.negf %278 : vector<4x32xf32>
    %280 = math.exp %279 : vector<4x32xf32>
    %cst_93 = arith.constant 1.000000e+00 : f32
    %281 = vector.broadcast %cst_93 : f32 to vector<4x32xf32>
    %282 = arith.addf %281, %280 : vector<4x32xf32>
    %283 = arith.divf %281, %282 : vector<4x32xf32>
    %284 = vector.extract_strided_slice %271 {offsets = [0, 64], sizes = [4, 32], strides = [1, 1]} : vector<4x128xf32> to vector<4x32xf32>
    %285 = math.tanh %284 : vector<4x32xf32>
    %286 = vector.extract_strided_slice %271 {offsets = [0, 96], sizes = [4, 32], strides = [1, 1]} : vector<4x128xf32> to vector<4x32xf32>
    %287 = arith.negf %286 : vector<4x32xf32>
    %288 = math.exp %287 : vector<4x32xf32>
    %cst_94 = arith.constant 1.000000e+00 : f32
    %289 = vector.broadcast %cst_94 : f32 to vector<4x32xf32>
    %290 = arith.addf %289, %288 : vector<4x32xf32>
    %291 = arith.divf %289, %290 : vector<4x32xf32>
    %292 = arith.mulf %283, %247 : vector<4x32xf32>
    %293 = arith.mulf %277, %285 : vector<4x32xf32>
    %294 = arith.addf %292, %293 : vector<4x32xf32>
    %295 = math.tanh %294 : vector<4x32xf32>
    %296 = arith.mulf %291, %295 : vector<4x32xf32>
    %297 = vector.extract_strided_slice %296 {offsets = [0, 0], sizes = [2, 32], strides = [1, 1]} : vector<4x32xf32> to vector<2x32xf32>
    %298 = arith.index_cast %257 : i32 to index
    %c0_95 = arith.constant 0 : index
    %299 = vector.load %arg9[%298, %c0_95] : memref<16x32xf32, #tpu.memory_space<vmem>>, vector<2x32xf32>
    tpu.vector_store %arg9[%298, %c0_95], %297 {strides = array<i32>} : memref<16x32xf32, #tpu.memory_space<vmem>>, vector<2x32xf32>,
    %300 = vector.extract_strided_slice %296 {offsets = [2, 0], sizes = [2, 32], strides = [1, 1]} : vector<4x32xf32> to vector<2x32xf32>
    %301 = arith.index_cast %260 : i32 to index
    %c0_96 = arith.constant 0 : index
    %302 = vector.load %arg10[%301, %c0_96] : memref<16x32xf32, #tpu.memory_space<vmem>>, vector<2x32xf32>
    tpu.vector_store %arg10[%301, %c0_96], %300 {strides = array<i32>} : memref<16x32xf32, #tpu.memory_space<vmem>>, vector<2x32xf32>,
    %c6_i32 = arith.constant 6 : i32
    %c2_i32_97 = arith.constant 2 : i32
    %303 = arith.muli %c6_i32, %c2_i32_97 : i32
    %304 = tpu.assume_multiple %303, 2 : i32
    %c7_i32_98 = arith.constant 7 : i32
    %305 = arith.subi %c7_i32_98, %c6_i32 : i32
    %c2_i32_99 = arith.constant 2 : i32
    %306 = arith.muli %305, %c2_i32_99 : i32
    %307 = tpu.assume_multiple %306, 2 : i32
    %308 = vector.extract_strided_slice %296 {offsets = [0, 0], sizes = [2, 32], strides = [1, 1]} : vector<4x32xf32> to vector<2x32xf32>
    %cst_100 = arith.constant dense<0.000000e+00> : vector<2x128xf32>
    %309 = tpu.matmul %308, %17, %cst_100 {dimension_numbers = #tpu.dot_dimension_numbers<[1], [0], [0], [1], [0, 0, 1, 1], [], []>} : vector<2x32xf32>, vector<32x128xf32>, vector<2x128xf32> -> vector<2x128xf32>
    %310 = vector.extract_strided_slice %296 {offsets = [2, 0], sizes = [2, 32], strides = [1, 1]} : vector<4x32xf32> to vector<2x32xf32>
    %cst_101 = arith.constant dense<0.000000e+00> : vector<2x128xf32>
    %311 = tpu.matmul %310, %18, %cst_101 {dimension_numbers = #tpu.dot_dimension_numbers<[1], [0], [0], [1], [0, 0, 1, 1], [], []>} : vector<2x32xf32>, vector<32x128xf32>, vector<2x128xf32> -> vector<2x128xf32>
    %312 = arith.index_cast %304 : i32 to index
    %c0_102 = arith.constant 0 : index
    %313 = vector.load %arg13[%312, %c0_102] : memref<16x128xf32, #tpu.memory_space<vmem>>, vector<2x128xf32>
    %314 = arith.addf %313, %309 : vector<2x128xf32>
    %315 = arith.index_cast %307 : i32 to index
    %c0_103 = arith.constant 0 : index
    %316 = vector.load %arg14[%315, %c0_103] : memref<16x128xf32, #tpu.memory_space<vmem>>, vector<2x128xf32>
    %317 = arith.addf %316, %311 : vector<2x128xf32>
    %318 = tpu.concatenate %314, %317 in 0 : vector<2x128xf32>, vector<2x128xf32> -> vector<4x128xf32>
    %319 = vector.extract_strided_slice %318 {offsets = [0, 0], sizes = [4, 32], strides = [1, 1]} : vector<4x128xf32> to vector<4x32xf32>
    %320 = arith.negf %319 : vector<4x32xf32>
    %321 = math.exp %320 : vector<4x32xf32>
    %cst_104 = arith.constant 1.000000e+00 : f32
    %322 = vector.broadcast %cst_104 : f32 to vector<4x32xf32>
    %323 = arith.addf %322, %321 : vector<4x32xf32>
    %324 = arith.divf %322, %323 : vector<4x32xf32>
    %325 = vector.extract_strided_slice %318 {offsets = [0, 32], sizes = [4, 32], strides = [1, 1]} : vector<4x128xf32> to vector<4x32xf32>
    %326 = arith.negf %325 : vector<4x32xf32>
    %327 = math.exp %326 : vector<4x32xf32>
    %cst_105 = arith.constant 1.000000e+00 : f32
    %328 = vector.broadcast %cst_105 : f32 to vector<4x32xf32>
    %329 = arith.addf %328, %327 : vector<4x32xf32>
    %330 = arith.divf %328, %329 : vector<4x32xf32>
    %331 = vector.extract_strided_slice %318 {offsets = [0, 64], sizes = [4, 32], strides = [1, 1]} : vector<4x128xf32> to vector<4x32xf32>
    %332 = math.tanh %331 : vector<4x32xf32>
    %333 = vector.extract_strided_slice %318 {offsets = [0, 96], sizes = [4, 32], strides = [1, 1]} : vector<4x128xf32> to vector<4x32xf32>
    %334 = arith.negf %333 : vector<4x32xf32>
    %335 = math.exp %334 : vector<4x32xf32>
    %cst_106 = arith.constant 1.000000e+00 : f32
    %336 = vector.broadcast %cst_106 : f32 to vector<4x32xf32>
    %337 = arith.addf %336, %335 : vector<4x32xf32>
    %338 = arith.divf %336, %337 : vector<4x32xf32>
    %339 = arith.mulf %330, %294 : vector<4x32xf32>
    %340 = arith.mulf %324, %332 : vector<4x32xf32>
    %341 = arith.addf %339, %340 : vector<4x32xf32>
    %342 = math.tanh %341 : vector<4x32xf32>
    %343 = arith.mulf %338, %342 : vector<4x32xf32>
    %344 = vector.extract_strided_slice %343 {offsets = [0, 0], sizes = [2, 32], strides = [1, 1]} : vector<4x32xf32> to vector<2x32xf32>
    %345 = arith.index_cast %304 : i32 to index
    %c0_107 = arith.constant 0 : index
    %346 = vector.load %arg9[%345, %c0_107] : memref<16x32xf32, #tpu.memory_space<vmem>>, vector<2x32xf32>
    tpu.vector_store %arg9[%345, %c0_107], %344 {strides = array<i32>} : memref<16x32xf32, #tpu.memory_space<vmem>>, vector<2x32xf32>,
    %347 = vector.extract_strided_slice %343 {offsets = [2, 0], sizes = [2, 32], strides = [1, 1]} : vector<4x32xf32> to vector<2x32xf32>
    %348 = arith.index_cast %307 : i32 to index
    %c0_108 = arith.constant 0 : index
    %349 = vector.load %arg10[%348, %c0_108] : memref<16x32xf32, #tpu.memory_space<vmem>>, vector<2x32xf32>
    tpu.vector_store %arg10[%348, %c0_108], %347 {strides = array<i32>} : memref<16x32xf32, #tpu.memory_space<vmem>>, vector<2x32xf32>,
    %c7_i32_109 = arith.constant 7 : i32
    %c2_i32_110 = arith.constant 2 : i32
    %350 = arith.muli %c7_i32_109, %c2_i32_110 : i32
    %351 = tpu.assume_multiple %350, 2 : i32
    %c7_i32_111 = arith.constant 7 : i32
    %352 = arith.subi %c7_i32_111, %c7_i32_109 : i32
    %c2_i32_112 = arith.constant 2 : i32
    %353 = arith.muli %352, %c2_i32_112 : i32
    %354 = tpu.assume_multiple %353, 2 : i32
    %355 = vector.extract_strided_slice %343 {offsets = [0, 0], sizes = [2, 32], strides = [1, 1]} : vector<4x32xf32> to vector<2x32xf32>
    %cst_113 = arith.constant dense<0.000000e+00> : vector<2x128xf32>
    %356 = tpu.matmul %355, %17, %cst_113 {dimension_numbers = #tpu.dot_dimension_numbers<[1], [0], [0], [1], [0, 0, 1, 1], [], []>} : vector<2x32xf32>, vector<32x128xf32>, vector<2x128xf32> -> vector<2x128xf32>
    %357 = vector.extract_strided_slice %343 {offsets = [2, 0], sizes = [2, 32], strides = [1, 1]} : vector<4x32xf32> to vector<2x32xf32>
    %cst_114 = arith.constant dense<0.000000e+00> : vector<2x128xf32>
    %358 = tpu.matmul %357, %18, %cst_114 {dimension_numbers = #tpu.dot_dimension_numbers<[1], [0], [0], [1], [0, 0, 1, 1], [], []>} : vector<2x32xf32>, vector<32x128xf32>, vector<2x128xf32> -> vector<2x128xf32>
    %359 = arith.index_cast %351 : i32 to index
    %c0_115 = arith.constant 0 : index
    %360 = vector.load %arg13[%359, %c0_115] : memref<16x128xf32, #tpu.memory_space<vmem>>, vector<2x128xf32>
    %361 = arith.addf %360, %356 : vector<2x128xf32>
    %362 = arith.index_cast %354 : i32 to index
    %c0_116 = arith.constant 0 : index
    %363 = vector.load %arg14[%362, %c0_116] : memref<16x128xf32, #tpu.memory_space<vmem>>, vector<2x128xf32>
    %364 = arith.addf %363, %358 : vector<2x128xf32>
    %365 = tpu.concatenate %361, %364 in 0 : vector<2x128xf32>, vector<2x128xf32> -> vector<4x128xf32>
    %366 = vector.extract_strided_slice %365 {offsets = [0, 0], sizes = [4, 32], strides = [1, 1]} : vector<4x128xf32> to vector<4x32xf32>
    %367 = arith.negf %366 : vector<4x32xf32>
    %368 = math.exp %367 : vector<4x32xf32>
    %cst_117 = arith.constant 1.000000e+00 : f32
    %369 = vector.broadcast %cst_117 : f32 to vector<4x32xf32>
    %370 = arith.addf %369, %368 : vector<4x32xf32>
    %371 = arith.divf %369, %370 : vector<4x32xf32>
    %372 = vector.extract_strided_slice %365 {offsets = [0, 32], sizes = [4, 32], strides = [1, 1]} : vector<4x128xf32> to vector<4x32xf32>
    %373 = arith.negf %372 : vector<4x32xf32>
    %374 = math.exp %373 : vector<4x32xf32>
    %cst_118 = arith.constant 1.000000e+00 : f32
    %375 = vector.broadcast %cst_118 : f32 to vector<4x32xf32>
    %376 = arith.addf %375, %374 : vector<4x32xf32>
    %377 = arith.divf %375, %376 : vector<4x32xf32>
    %378 = vector.extract_strided_slice %365 {offsets = [0, 64], sizes = [4, 32], strides = [1, 1]} : vector<4x128xf32> to vector<4x32xf32>
    %379 = math.tanh %378 : vector<4x32xf32>
    %380 = vector.extract_strided_slice %365 {offsets = [0, 96], sizes = [4, 32], strides = [1, 1]} : vector<4x128xf32> to vector<4x32xf32>
    %381 = arith.negf %380 : vector<4x32xf32>
    %382 = math.exp %381 : vector<4x32xf32>
    %cst_119 = arith.constant 1.000000e+00 : f32
    %383 = vector.broadcast %cst_119 : f32 to vector<4x32xf32>
    %384 = arith.addf %383, %382 : vector<4x32xf32>
    %385 = arith.divf %383, %384 : vector<4x32xf32>
    %386 = arith.mulf %377, %341 : vector<4x32xf32>
    %387 = arith.mulf %371, %379 : vector<4x32xf32>
    %388 = arith.addf %386, %387 : vector<4x32xf32>
    %389 = math.tanh %388 : vector<4x32xf32>
    %390 = arith.mulf %385, %389 : vector<4x32xf32>
    %391 = vector.extract_strided_slice %390 {offsets = [0, 0], sizes = [2, 32], strides = [1, 1]} : vector<4x32xf32> to vector<2x32xf32>
    %392 = arith.index_cast %351 : i32 to index
    %c0_120 = arith.constant 0 : index
    %393 = vector.load %arg9[%392, %c0_120] : memref<16x32xf32, #tpu.memory_space<vmem>>, vector<2x32xf32>
    tpu.vector_store %arg9[%392, %c0_120], %391 {strides = array<i32>} : memref<16x32xf32, #tpu.memory_space<vmem>>, vector<2x32xf32>,
    %394 = vector.extract_strided_slice %390 {offsets = [2, 0], sizes = [2, 32], strides = [1, 1]} : vector<4x32xf32> to vector<2x32xf32>
    %395 = arith.index_cast %354 : i32 to index
    %c0_121 = arith.constant 0 : index
    %396 = vector.load %arg10[%395, %c0_121] : memref<16x32xf32, #tpu.memory_space<vmem>>, vector<2x32xf32>
    tpu.vector_store %arg10[%395, %c0_121], %394 {strides = array<i32>} : memref<16x32xf32, #tpu.memory_space<vmem>>, vector<2x32xf32>,
    %c8_i32 = arith.constant 8 : i32
    %c0_122 = arith.constant 0 : index
    %c0_123 = arith.constant 0 : index
    %397 = vector.load %arg11[%c0_122, %c0_123] : memref<4x32xf32, #tpu.memory_space<vmem>>, vector<4x32xf32>
    tpu.vector_store %arg11[%c0_122, %c0_123], %390 {strides = array<i32>} : memref<4x32xf32, #tpu.memory_space<vmem>>, vector<4x32xf32>,
    %c0_124 = arith.constant 0 : index
    %c0_125 = arith.constant 0 : index
    %398 = vector.load %arg12[%c0_124, %c0_125] : memref<4x32xf32, #tpu.memory_space<vmem>>, vector<4x32xf32>
    tpu.vector_store %arg12[%c0_124, %c0_125], %388 {strides = array<i32>} : memref<4x32xf32, #tpu.memory_space<vmem>>, vector<4x32xf32>,
    return
  }
  func.func @transform_0(%arg0: i32) -> (i32, i32) {
    %c0_i32 = arith.constant 0 : i32
    %c0_i32_0 = arith.constant 0 : i32
    return %arg0, %c0_i32 : i32, i32
  }
  func.func @transform_1(%arg0: i32) -> (i32, i32) {
    %c0_i32 = arith.constant 0 : i32
    %0 = arith.subi %c0_i32, %arg0 : i32
    %c0_i32_0 = arith.constant 0 : i32
    %c0_i32_1 = arith.constant 0 : i32
    return %0, %c0_i32_0 : i32, i32
  }
  func.func @transform_2(%arg0: i32) -> (i32, i32) {
    %c0_i32 = arith.constant 0 : i32
    %c0_i32_0 = arith.constant 0 : i32
    %c0_i32_1 = arith.constant 0 : i32
    return %c0_i32, %c0_i32_0 : i32, i32
  }
  func.func @transform_3(%arg0: i32) -> (i32, i32) {
    %c0_i32 = arith.constant 0 : i32
    %c0_i32_0 = arith.constant 0 : i32
    %c0_i32_1 = arith.constant 0 : i32
    return %c0_i32, %c0_i32_0 : i32, i32
  }
  func.func @transform_4(%arg0: i32) -> (i32, i32) {
    %c0_i32 = arith.constant 0 : i32
    %c0_i32_0 = arith.constant 0 : i32
    %c0_i32_1 = arith.constant 0 : i32
    return %c0_i32, %c0_i32_0 : i32, i32
  }
  func.func @transform_5(%arg0: i32) -> (i32, i32) {
    %c0_i32 = arith.constant 0 : i32
    %c0_i32_0 = arith.constant 0 : i32
    %c0_i32_1 = arith.constant 0 : i32
    return %c0_i32, %c0_i32_0 : i32, i32
  }
  func.func @transform_6(%arg0: i32) -> (i32, i32) {
    %c0_i32 = arith.constant 0 : i32
    %c0_i32_0 = arith.constant 0 : i32
    %c0_i32_1 = arith.constant 0 : i32
    return %c0_i32, %c0_i32_0 : i32, i32
  }
  func.func @transform_7(%arg0: i32) -> (i32, i32) {
    %c0_i32 = arith.constant 0 : i32
    %c0_i32_0 = arith.constant 0 : i32
    %c0_i32_1 = arith.constant 0 : i32
    return %c0_i32, %c0_i32_0 : i32, i32
  }
  func.func @transform_8(%arg0: i32) -> (i32, i32) {
    %c0_i32 = arith.constant 0 : i32
    %c0_i32_0 = arith.constant 0 : i32
    return %arg0, %c0_i32 : i32, i32
  }
  func.func @transform_9(%arg0: i32) -> (i32, i32) {
    %c0_i32 = arith.constant 0 : i32
    %0 = arith.subi %c0_i32, %arg0 : i32
    %c0_i32_0 = arith.constant 0 : i32
    %c0_i32_1 = arith.constant 0 : i32
    return %0, %c0_i32_0 : i32, i32
  }
  func.func @transform_10(%arg0: i32) -> (i32, i32) {
    %c0_i32 = arith.constant 0 : i32
    %c0_i32_0 = arith.constant 0 : i32
    %c0_i32_1 = arith.constant 0 : i32
    return %c0_i32, %c0_i32_0 : i32, i32
  }
  func.func @transform_11(%arg0: i32) -> (i32, i32) {
    %c0_i32 = arith.constant 0 : i32
    %c0_i32_0 = arith.constant 0 : i32
    %c0_i32_1 = arith.constant 0 : i32
    return %c0_i32, %c0_i32_0 : i32, i32
  }
}

module attributes {stable_mosaic.version = 11 : i64} {
  func.func @bidir_lstm_kernel(%arg0: i32, %arg1: memref<16x64xf32, #tpu.memory_space<vmem>>, %arg2: memref<16x64xf32, #tpu.memory_space<vmem>>, %arg3: memref<64x128xf32, #tpu.memory_space<vmem>>, %arg4: memref<64x128xf32, #tpu.memory_space<vmem>>, %arg5: memref<32x128xf32, #tpu.memory_space<vmem>>, %arg6: memref<32x128xf32, #tpu.memory_space<vmem>>, %arg7: memref<1x128xf32, #tpu.memory_space<vmem>>, %arg8: memref<1x128xf32, #tpu.memory_space<vmem>>, %arg9: memref<16x32xf32, #tpu.memory_space<vmem>>, %arg10: memref<16x32xf32, #tpu.memory_space<vmem>>, %arg11: memref<4x32xf32, #tpu.memory_space<vmem>>, %arg12: memref<4x32xf32, #tpu.memory_space<vmem>>, %arg13: memref<16x128xf32, #tpu.memory_space<vmem>>, %arg14: memref<16x128xf32, #tpu.memory_space<vmem>>) attributes {dimension_semantics = [#tpu.dimension_semantics<arbitrary>], iteration_bounds = array<i64: 1>, scalar_prefetch = 0 : i64, scratch_operands = 2 : i64, tpu.core_type = #tpu.core_type<tc>, window_params = [{transform_indices = @transform_0, window_bounds = array<i64: 16, 64>}, {transform_indices = @transform_1, window_bounds = array<i64: 16, 64>}, {pipeline_mode = #tpu.pipeline_mode<synchronous>, transform_indices = @transform_2, window_bounds = array<i64: 64, 128>}, {pipeline_mode = #tpu.pipeline_mode<synchronous>, transform_indices = @transform_3, window_bounds = array<i64: 64, 128>}, {pipeline_mode = #tpu.pipeline_mode<synchronous>, transform_indices = @transform_4, window_bounds = array<i64: 32, 128>}, {pipeline_mode = #tpu.pipeline_mode<synchronous>, transform_indices = @transform_5, window_bounds = array<i64: 32, 128>}, {pipeline_mode = #tpu.pipeline_mode<synchronous>, transform_indices = @transform_6, window_bounds = array<i64: 1, 128>}, {pipeline_mode = #tpu.pipeline_mode<synchronous>, transform_indices = @transform_7, window_bounds = array<i64: 1, 128>}, {transform_indices = @transform_8, window_bounds = array<i64: 16, 32>}, {transform_indices = @transform_9, window_bounds = array<i64: 16, 32>}, {pipeline_mode = #tpu.pipeline_mode<synchronous>, transform_indices = @transform_10, window_bounds = array<i64: 4, 32>}, {pipeline_mode = #tpu.pipeline_mode<synchronous>, transform_indices = @transform_11, window_bounds = array<i64: 4, 32>}]} {
    %c0_i32 = arith.constant 0 : i32
    %0 = arith.cmpi eq, %arg0, %c0_i32 : i32
    %1 = arith.extui %0 : i1 to i32
    %c0_i32_0 = arith.constant 0 : i32
    %2 = arith.cmpi ne, %1, %c0_i32_0 : i32
    scf.if %2 {
      %cst_126 = arith.constant 0.000000e+00 : f32
      %399 = vector.broadcast %cst_126 : f32 to vector<4x32xf32>
      %c0_127 = arith.constant 0 : index
      %c0_128 = arith.constant 0 : index
      %400 = vector.load %arg11[%c0_127, %c0_128] : memref<4x32xf32, #tpu.memory_space<vmem>>, vector<4x32xf32>
      tpu.vector_store %arg11[%c0_127, %c0_128], %399 {strides = array<i32>} : memref<4x32xf32, #tpu.memory_space<vmem>>, vector<4x32xf32>,
      %cst_129 = arith.constant 0.000000e+00 : f32
      %401 = vector.broadcast %cst_129 : f32 to vector<4x32xf32>
      %c0_130 = arith.constant 0 : index
      %c0_131 = arith.constant 0 : index
      %402 = vector.load %arg12[%c0_130, %c0_131] : memref<4x32xf32, #tpu.memory_space<vmem>>, vector<4x32xf32>
      tpu.vector_store %arg12[%c0_130, %c0_131], %401 {strides = array<i32>} : memref<4x32xf32, #tpu.memory_space<vmem>>, vector<4x32xf32>,
    } else {
    }
    %c0 = arith.constant 0 : index
    %c0_1 = arith.constant 0 : index
    %3 = vector.load %arg1[%c0, %c0_1] : memref<16x64xf32, #tpu.memory_space<vmem>>, vector<16x64xf32>
    %c0_2 = arith.constant 0 : index
    %c0_3 = arith.constant 0 : index
    %4 = vector.load %arg3[%c0_2, %c0_3] : memref<64x128xf32, #tpu.memory_space<vmem>>, vector<64x128xf32>
    %cst = arith.constant dense<0.000000e+00> : vector<16x128xf32>
    %5 = tpu.matmul %3, %4, %cst {dimension_numbers = #tpu.dot_dimension_numbers<[1], [0], [0], [1], [0, 0, 1, 1], [], []>} : vector<16x64xf32>, vector<64x128xf32>, vector<16x128xf32> -> vector<16x128xf32>
    %c0_4 = arith.constant 0 : index
    %c0_5 = arith.constant 0 : index
    %6 = vector.load %arg7[%c0_4, %c0_5] : memref<1x128xf32, #tpu.memory_space<vmem>>, vector<1x128xf32>
    %7 = vector.broadcast %6 : vector<1x128xf32> to vector<16x128xf32>
    %8 = arith.addf %5, %7 : vector<16x128xf32>
    %c0_6 = arith.constant 0 : index
    %c0_7 = arith.constant 0 : index
    %9 = vector.load %arg13[%c0_6, %c0_7] : memref<16x128xf32, #tpu.memory_space<vmem>>, vector<16x128xf32>
    tpu.vector_store %arg13[%c0_6, %c0_7], %8 {strides = array<i32>} : memref<16x128xf32, #tpu.memory_space<vmem>>, vector<16x128xf32>,
    %c0_8 = arith.constant 0 : index
    %c0_9 = arith.constant 0 : index
    %10 = vector.load %arg2[%c0_8, %c0_9] : memref<16x64xf32, #tpu.memory_space<vmem>>, vector<16x64xf32>
    %c0_10 = arith.constant 0 : index
    %c0_11 = arith.constant 0 : index
    %11 = vector.load %arg4[%c0_10, %c0_11] : memref<64x128xf32, #tpu.memory_space<vmem>>, vector<64x128xf32>
    %cst_12 = arith.constant dense<0.000000e+00> : vector<16x128xf32>
    %12 = tpu.matmul %10, %11, %cst_12 {dimension_numbers = #tpu.dot_dimension_numbers<[1], [0], [0], [1], [0, 0, 1, 1], [], []>} : vector<16x64xf32>, vector<64x128xf32>, vector<16x128xf32> -> vector<16x128xf32>
    %c0_13 = arith.constant 0 : index
    %c0_14 = arith.constant 0 : index
    %13 = vector.load %arg8[%c0_13, %c0_14] : memref<1x128xf32, #tpu.memory_space<vmem>>, vector<1x128xf32>
    %14 = vector.broadcast %13 : vector<1x128xf32> to vector<16x128xf32>
    %15 = arith.addf %12, %14 : vector<16x128xf32>
    %c0_15 = arith.constant 0 : index
    %c0_16 = arith.constant 0 : index
    %16 = vector.load %arg14[%c0_15, %c0_16] : memref<16x128xf32, #tpu.memory_space<vmem>>, vector<16x128xf32>
    tpu.vector_store %arg14[%c0_15, %c0_16], %15 {strides = array<i32>} : memref<16x128xf32, #tpu.memory_space<vmem>>, vector<16x128xf32>,
    %c0_17 = arith.constant 0 : index
    %c0_18 = arith.constant 0 : index
    %17 = vector.load %arg5[%c0_17, %c0_18] : memref<32x128xf32, #tpu.memory_space<vmem>>, vector<32x128xf32>
    %c0_19 = arith.constant 0 : index
    %c0_20 = arith.constant 0 : index
    %18 = vector.load %arg6[%c0_19, %c0_20] : memref<32x128xf32, #tpu.memory_space<vmem>>, vector<32x128xf32>
    %c0_21 = arith.constant 0 : index
    %c0_22 = arith.constant 0 : index
    %19 = vector.load %arg11[%c0_21, %c0_22] : memref<4x32xf32, #tpu.memory_space<vmem>>, vector<4x32xf32>
    %c0_23 = arith.constant 0 : index
    %c0_24 = arith.constant 0 : index
    %20 = vector.load %arg12[%c0_23, %c0_24] : memref<4x32xf32, #tpu.memory_space<vmem>>, vector<4x32xf32>
    %c0_i32_25 = arith.constant 0 : i32
    %c2_i32 = arith.constant 2 : i32
    %21 = arith.muli %c0_i32_25, %c2_i32 : i32
    %22 = tpu.assume_multiple %21, 2 : i32
    %c7_i32 = arith.constant 7 : i32
    %23 = arith.subi %c7_i32, %c0_i32_25 : i32
    %c2_i32_26 = arith.constant 2 : i32
    %24 = arith.muli %23, %c2_i32_26 : i32
    %25 = tpu.assume_multiple %24, 2 : i32
    %26 = vector.extract_strided_slice %19 {offsets = [0, 0], sizes = [2, 32], strides = [1, 1]} : vector<4x32xf32> to vector<2x32xf32>
    %cst_27 = arith.constant dense<0.000000e+00> : vector<2x128xf32>
    %27 = tpu.matmul %26, %17, %cst_27 {dimension_numbers = #tpu.dot_dimension_numbers<[1], [0], [0], [1], [0, 0, 1, 1], [], []>} : vector<2x32xf32>, vector<32x128xf32>, vector<2x128xf32> -> vector<2x128xf32>
    %28 = vector.extract_strided_slice %19 {offsets = [2, 0], sizes = [2, 32], strides = [1, 1]} : vector<4x32xf32> to vector<2x32xf32>
    %cst_28 = arith.constant dense<0.000000e+00> : vector<2x128xf32>
    %29 = tpu.matmul %28, %18, %cst_28 {dimension_numbers = #tpu.dot_dimension_numbers<[1], [0], [0], [1], [0, 0, 1, 1], [], []>} : vector<2x32xf32>, vector<32x128xf32>, vector<2x128xf32> -> vector<2x128xf32>
    %30 = arith.index_cast %22 : i32 to index
    %c0_29 = arith.constant 0 : index
    %31 = vector.load %arg13[%30, %c0_29] : memref<16x128xf32, #tpu.memory_space<vmem>>, vector<2x128xf32>
    %32 = arith.addf %31, %27 : vector<2x128xf32>
    %33 = arith.index_cast %25 : i32 to index
    %c0_30 = arith.constant 0 : index
    %34 = vector.load %arg14[%33, %c0_30] : memref<16x128xf32, #tpu.memory_space<vmem>>, vector<2x128xf32>
    %35 = arith.addf %34, %29 : vector<2x128xf32>
    %36 = tpu.concatenate %32, %35 in 0 : vector<2x128xf32>, vector<2x128xf32> -> vector<4x128xf32>
    %37 = vector.extract_strided_slice %36 {offsets = [0, 0], sizes = [4, 32], strides = [1, 1]} : vector<4x128xf32> to vector<4x32xf32>
    %38 = arith.negf %37 : vector<4x32xf32>
    %39 = math.exp %38 : vector<4x32xf32>
    %cst_31 = arith.constant 1.000000e+00 : f32
    %40 = vector.broadcast %cst_31 : f32 to vector<4x32xf32>
    %41 = arith.addf %40, %39 : vector<4x32xf32>
    %42 = arith.divf %40, %41 : vector<4x32xf32>
    %43 = vector.extract_strided_slice %36 {offsets = [0, 32], sizes = [4, 32], strides = [1, 1]} : vector<4x128xf32> to vector<4x32xf32>
    %44 = arith.negf %43 : vector<4x32xf32>
    %45 = math.exp %44 : vector<4x32xf32>
    %cst_32 = arith.constant 1.000000e+00 : f32
    %46 = vector.broadcast %cst_32 : f32 to vector<4x32xf32>
    %47 = arith.addf %46, %45 : vector<4x32xf32>
    %48 = arith.divf %46, %47 : vector<4x32xf32>
    %49 = vector.extract_strided_slice %36 {offsets = [0, 64], sizes = [4, 32], strides = [1, 1]} : vector<4x128xf32> to vector<4x32xf32>
    %50 = math.tanh %49 : vector<4x32xf32>
    %51 = vector.extract_strided_slice %36 {offsets = [0, 96], sizes = [4, 32], strides = [1, 1]} : vector<4x128xf32> to vector<4x32xf32>
    %52 = arith.negf %51 : vector<4x32xf32>
    %53 = math.exp %52 : vector<4x32xf32>
    %cst_33 = arith.constant 1.000000e+00 : f32
    %54 = vector.broadcast %cst_33 : f32 to vector<4x32xf32>
    %55 = arith.addf %54, %53 : vector<4x32xf32>
    %56 = arith.divf %54, %55 : vector<4x32xf32>
    %57 = arith.mulf %48, %20 : vector<4x32xf32>
    %58 = arith.mulf %42, %50 : vector<4x32xf32>
    %59 = arith.addf %57, %58 : vector<4x32xf32>
    %60 = math.tanh %59 : vector<4x32xf32>
    %61 = arith.mulf %56, %60 : vector<4x32xf32>
    %62 = vector.extract_strided_slice %61 {offsets = [0, 0], sizes = [2, 32], strides = [1, 1]} : vector<4x32xf32> to vector<2x32xf32>
    %63 = arith.index_cast %22 : i32 to index
    %c0_34 = arith.constant 0 : index
    %64 = vector.load %arg9[%63, %c0_34] : memref<16x32xf32, #tpu.memory_space<vmem>>, vector<2x32xf32>
    tpu.vector_store %arg9[%63, %c0_34], %62 {strides = array<i32>} : memref<16x32xf32, #tpu.memory_space<vmem>>, vector<2x32xf32>,
    %65 = vector.extract_strided_slice %61 {offsets = [2, 0], sizes = [2, 32], strides = [1, 1]} : vector<4x32xf32> to vector<2x32xf32>
    %66 = arith.index_cast %25 : i32 to index
    %c0_35 = arith.constant 0 : index
    %67 = vector.load %arg10[%66, %c0_35] : memref<16x32xf32, #tpu.memory_space<vmem>>, vector<2x32xf32>
    tpu.vector_store %arg10[%66, %c0_35], %65 {strides = array<i32>} : memref<16x32xf32, #tpu.memory_space<vmem>>, vector<2x32xf32>,
    %c1_i32 = arith.constant 1 : i32
    %c2_i32_36 = arith.constant 2 : i32
    %68 = arith.muli %c1_i32, %c2_i32_36 : i32
    %69 = tpu.assume_multiple %68, 2 : i32
    %c7_i32_37 = arith.constant 7 : i32
    %70 = arith.subi %c7_i32_37, %c1_i32 : i32
    %c2_i32_38 = arith.constant 2 : i32
    %71 = arith.muli %70, %c2_i32_38 : i32
    %72 = tpu.assume_multiple %71, 2 : i32
    %73 = vector.extract_strided_slice %61 {offsets = [0, 0], sizes = [2, 32], strides = [1, 1]} : vector<4x32xf32> to vector<2x32xf32>
    %cst_39 = arith.constant dense<0.000000e+00> : vector<2x128xf32>
    %74 = tpu.matmul %73, %17, %cst_39 {dimension_numbers = #tpu.dot_dimension_numbers<[1], [0], [0], [1], [0, 0, 1, 1], [], []>} : vector<2x32xf32>, vector<32x128xf32>, vector<2x128xf32> -> vector<2x128xf32>
    %75 = vector.extract_strided_slice %61 {offsets = [2, 0], sizes = [2, 32], strides = [1, 1]} : vector<4x32xf32> to vector<2x32xf32>
    %cst_40 = arith.constant dense<0.000000e+00> : vector<2x128xf32>
    %76 = tpu.matmul %75, %18, %cst_40 {dimension_numbers = #tpu.dot_dimension_numbers<[1], [0], [0], [1], [0, 0, 1, 1], [], []>} : vector<2x32xf32>, vector<32x128xf32>, vector<2x128xf32> -> vector<2x128xf32>
    %77 = arith.index_cast %69 : i32 to index
    %c0_41 = arith.constant 0 : index
    %78 = vector.load %arg13[%77, %c0_41] : memref<16x128xf32, #tpu.memory_space<vmem>>, vector<2x128xf32>
    %79 = arith.addf %78, %74 : vector<2x128xf32>
    %80 = arith.index_cast %72 : i32 to index
    %c0_42 = arith.constant 0 : index
    %81 = vector.load %arg14[%80, %c0_42] : memref<16x128xf32, #tpu.memory_space<vmem>>, vector<2x128xf32>
    %82 = arith.addf %81, %76 : vector<2x128xf32>
    %83 = tpu.concatenate %79, %82 in 0 : vector<2x128xf32>, vector<2x128xf32> -> vector<4x128xf32>
    %84 = vector.extract_strided_slice %83 {offsets = [0, 0], sizes = [4, 32], strides = [1, 1]} : vector<4x128xf32> to vector<4x32xf32>
    %85 = arith.negf %84 : vector<4x32xf32>
    %86 = math.exp %85 : vector<4x32xf32>
    %cst_43 = arith.constant 1.000000e+00 : f32
    %87 = vector.broadcast %cst_43 : f32 to vector<4x32xf32>
    %88 = arith.addf %87, %86 : vector<4x32xf32>
    %89 = arith.divf %87, %88 : vector<4x32xf32>
    %90 = vector.extract_strided_slice %83 {offsets = [0, 32], sizes = [4, 32], strides = [1, 1]} : vector<4x128xf32> to vector<4x32xf32>
    %91 = arith.negf %90 : vector<4x32xf32>
    %92 = math.exp %91 : vector<4x32xf32>
    %cst_44 = arith.constant 1.000000e+00 : f32
    %93 = vector.broadcast %cst_44 : f32 to vector<4x32xf32>
    %94 = arith.addf %93, %92 : vector<4x32xf32>
    %95 = arith.divf %93, %94 : vector<4x32xf32>
    %96 = vector.extract_strided_slice %83 {offsets = [0, 64], sizes = [4, 32], strides = [1, 1]} : vector<4x128xf32> to vector<4x32xf32>
    %97 = math.tanh %96 : vector<4x32xf32>
    %98 = vector.extract_strided_slice %83 {offsets = [0, 96], sizes = [4, 32], strides = [1, 1]} : vector<4x128xf32> to vector<4x32xf32>
    %99 = arith.negf %98 : vector<4x32xf32>
    %100 = math.exp %99 : vector<4x32xf32>
    %cst_45 = arith.constant 1.000000e+00 : f32
    %101 = vector.broadcast %cst_45 : f32 to vector<4x32xf32>
    %102 = arith.addf %101, %100 : vector<4x32xf32>
    %103 = arith.divf %101, %102 : vector<4x32xf32>
    %104 = arith.mulf %95, %59 : vector<4x32xf32>
    %105 = arith.mulf %89, %97 : vector<4x32xf32>
    %106 = arith.addf %104, %105 : vector<4x32xf32>
    %107 = math.tanh %106 : vector<4x32xf32>
    %108 = arith.mulf %103, %107 : vector<4x32xf32>
    %109 = vector.extract_strided_slice %108 {offsets = [0, 0], sizes = [2, 32], strides = [1, 1]} : vector<4x32xf32> to vector<2x32xf32>
    %110 = arith.index_cast %69 : i32 to index
    %c0_46 = arith.constant 0 : index
    %111 = vector.load %arg9[%110, %c0_46] : memref<16x32xf32, #tpu.memory_space<vmem>>, vector<2x32xf32>
    tpu.vector_store %arg9[%110, %c0_46], %109 {strides = array<i32>} : memref<16x32xf32, #tpu.memory_space<vmem>>, vector<2x32xf32>,
    %112 = vector.extract_strided_slice %108 {offsets = [2, 0], sizes = [2, 32], strides = [1, 1]} : vector<4x32xf32> to vector<2x32xf32>
    %113 = arith.index_cast %72 : i32 to index
    %c0_47 = arith.constant 0 : index
    %114 = vector.load %arg10[%113, %c0_47] : memref<16x32xf32, #tpu.memory_space<vmem>>, vector<2x32xf32>
    tpu.vector_store %arg10[%113, %c0_47], %112 {strides = array<i32>} : memref<16x32xf32, #tpu.memory_space<vmem>>, vector<2x32xf32>,
    %c2_i32_48 = arith.constant 2 : i32
    %c2_i32_49 = arith.constant 2 : i32
    %115 = arith.muli %c2_i32_48, %c2_i32_49 : i32
    %116 = tpu.assume_multiple %115, 2 : i32
    %c7_i32_50 = arith.constant 7 : i32
    %117 = arith.subi %c7_i32_50, %c2_i32_48 : i32
    %c2_i32_51 = arith.constant 2 : i32
    %118 = arith.muli %117, %c2_i32_51 : i32
    %119 = tpu.assume_multiple %118, 2 : i32
    %120 = vector.extract_strided_slice %108 {offsets = [0, 0], sizes = [2, 32], strides = [1, 1]} : vector<4x32xf32> to vector<2x32xf32>
    %cst_52 = arith.constant dense<0.000000e+00> : vector<2x128xf32>
    %121 = tpu.matmul %120, %17, %cst_52 {dimension_numbers = #tpu.dot_dimension_numbers<[1], [0], [0], [1], [0, 0, 1, 1], [], []>} : vector<2x32xf32>, vector<32x128xf32>, vector<2x128xf32> -> vector<2x128xf32>
    %122 = vector.extract_strided_slice %108 {offsets = [2, 0], sizes = [2, 32], strides = [1, 1]} : vector<4x32xf32> to vector<2x32xf32>
    %cst_53 = arith.constant dense<0.000000e+00> : vector<2x128xf32>
    %123 = tpu.matmul %122, %18, %cst_53 {dimension_numbers = #tpu.dot_dimension_numbers<[1], [0], [0], [1], [0, 0, 1, 1], [], []>} : vector<2x32xf32>, vector<32x128xf32>, vector<2x128xf32> -> vector<2x128xf32>
    %124 = arith.index_cast %116 : i32 to index
    %c0_54 = arith.constant 0 : index
    %125 = vector.load %arg13[%124, %c0_54] : memref<16x128xf32, #tpu.memory_space<vmem>>, vector<2x128xf32>
    %126 = arith.addf %125, %121 : vector<2x128xf32>
    %127 = arith.index_cast %119 : i32 to index
    %c0_55 = arith.constant 0 : index
    %128 = vector.load %arg14[%127, %c0_55] : memref<16x128xf32, #tpu.memory_space<vmem>>, vector<2x128xf32>
    %129 = arith.addf %128, %123 : vector<2x128xf32>
    %130 = tpu.concatenate %126, %129 in 0 : vector<2x128xf32>, vector<2x128xf32> -> vector<4x128xf32>
    %131 = vector.extract_strided_slice %130 {offsets = [0, 0], sizes = [4, 32], strides = [1, 1]} : vector<4x128xf32> to vector<4x32xf32>
    %132 = arith.negf %131 : vector<4x32xf32>
    %133 = math.exp %132 : vector<4x32xf32>
    %cst_56 = arith.constant 1.000000e+00 : f32
    %134 = vector.broadcast %cst_56 : f32 to vector<4x32xf32>
    %135 = arith.addf %134, %133 : vector<4x32xf32>
    %136 = arith.divf %134, %135 : vector<4x32xf32>
    %137 = vector.extract_strided_slice %130 {offsets = [0, 32], sizes = [4, 32], strides = [1, 1]} : vector<4x128xf32> to vector<4x32xf32>
    %138 = arith.negf %137 : vector<4x32xf32>
    %139 = math.exp %138 : vector<4x32xf32>
    %cst_57 = arith.constant 1.000000e+00 : f32
    %140 = vector.broadcast %cst_57 : f32 to vector<4x32xf32>
    %141 = arith.addf %140, %139 : vector<4x32xf32>
    %142 = arith.divf %140, %141 : vector<4x32xf32>
    %143 = vector.extract_strided_slice %130 {offsets = [0, 64], sizes = [4, 32], strides = [1, 1]} : vector<4x128xf32> to vector<4x32xf32>
    %144 = math.tanh %143 : vector<4x32xf32>
    %145 = vector.extract_strided_slice %130 {offsets = [0, 96], sizes = [4, 32], strides = [1, 1]} : vector<4x128xf32> to vector<4x32xf32>
    %146 = arith.negf %145 : vector<4x32xf32>
    %147 = math.exp %146 : vector<4x32xf32>
    %cst_58 = arith.constant 1.000000e+00 : f32
    %148 = vector.broadcast %cst_58 : f32 to vector<4x32xf32>
    %149 = arith.addf %148, %147 : vector<4x32xf32>
    %150 = arith.divf %148, %149 : vector<4x32xf32>
    %151 = arith.mulf %142, %106 : vector<4x32xf32>
    %152 = arith.mulf %136, %144 : vector<4x32xf32>
    %153 = arith.addf %151, %152 : vector<4x32xf32>
    %154 = math.tanh %153 : vector<4x32xf32>
    %155 = arith.mulf %150, %154 : vector<4x32xf32>
    %156 = vector.extract_strided_slice %155 {offsets = [0, 0], sizes = [2, 32], strides = [1, 1]} : vector<4x32xf32> to vector<2x32xf32>
    %157 = arith.index_cast %116 : i32 to index
    %c0_59 = arith.constant 0 : index
    %158 = vector.load %arg9[%157, %c0_59] : memref<16x32xf32, #tpu.memory_space<vmem>>, vector<2x32xf32>
    tpu.vector_store %arg9[%157, %c0_59], %156 {strides = array<i32>} : memref<16x32xf32, #tpu.memory_space<vmem>>, vector<2x32xf32>,
    %159 = vector.extract_strided_slice %155 {offsets = [2, 0], sizes = [2, 32], strides = [1, 1]} : vector<4x32xf32> to vector<2x32xf32>
    %160 = arith.index_cast %119 : i32 to index
    %c0_60 = arith.constant 0 : index
    %161 = vector.load %arg10[%160, %c0_60] : memref<16x32xf32, #tpu.memory_space<vmem>>, vector<2x32xf32>
    tpu.vector_store %arg10[%160, %c0_60], %159 {strides = array<i32>} : memref<16x32xf32, #tpu.memory_space<vmem>>, vector<2x32xf32>,
    %c3_i32 = arith.constant 3 : i32
    %c2_i32_61 = arith.constant 2 : i32
    %162 = arith.muli %c3_i32, %c2_i32_61 : i32
    %163 = tpu.assume_multiple %162, 2 : i32
    %c7_i32_62 = arith.constant 7 : i32
    %164 = arith.subi %c7_i32_62, %c3_i32 : i32
    %c2_i32_63 = arith.constant 2 : i32
    %165 = arith.muli %164, %c2_i32_63 : i32
    %166 = tpu.assume_multiple %165, 2 : i32
    %167 = vector.extract_strided_slice %155 {offsets = [0, 0], sizes = [2, 32], strides = [1, 1]} : vector<4x32xf32> to vector<2x32xf32>
    %cst_64 = arith.constant dense<0.000000e+00> : vector<2x128xf32>
    %168 = tpu.matmul %167, %17, %cst_64 {dimension_numbers = #tpu.dot_dimension_numbers<[1], [0], [0], [1], [0, 0, 1, 1], [], []>} : vector<2x32xf32>, vector<32x128xf32>, vector<2x128xf32> -> vector<2x128xf32>
    %169 = vector.extract_strided_slice %155 {offsets = [2, 0], sizes = [2, 32], strides = [1, 1]} : vector<4x32xf32> to vector<2x32xf32>
    %cst_65 = arith.constant dense<0.000000e+00> : vector<2x128xf32>
    %170 = tpu.matmul %169, %18, %cst_65 {dimension_numbers = #tpu.dot_dimension_numbers<[1], [0], [0], [1], [0, 0, 1, 1], [], []>} : vector<2x32xf32>, vector<32x128xf32>, vector<2x128xf32> -> vector<2x128xf32>
    %171 = arith.index_cast %163 : i32 to index
    %c0_66 = arith.constant 0 : index
    %172 = vector.load %arg13[%171, %c0_66] : memref<16x128xf32, #tpu.memory_space<vmem>>, vector<2x128xf32>
    %173 = arith.addf %172, %168 : vector<2x128xf32>
    %174 = arith.index_cast %166 : i32 to index
    %c0_67 = arith.constant 0 : index
    %175 = vector.load %arg14[%174, %c0_67] : memref<16x128xf32, #tpu.memory_space<vmem>>, vector<2x128xf32>
    %176 = arith.addf %175, %170 : vector<2x128xf32>
    %177 = tpu.concatenate %173, %176 in 0 : vector<2x128xf32>, vector<2x128xf32> -> vector<4x128xf32>
    %178 = vector.extract_strided_slice %177 {offsets = [0, 0], sizes = [4, 32], strides = [1, 1]} : vector<4x128xf32> to vector<4x32xf32>
    %179 = arith.negf %178 : vector<4x32xf32>
    %180 = math.exp %179 : vector<4x32xf32>
    %cst_68 = arith.constant 1.000000e+00 : f32
    %181 = vector.broadcast %cst_68 : f32 to vector<4x32xf32>
    %182 = arith.addf %181, %180 : vector<4x32xf32>
    %183 = arith.divf %181, %182 : vector<4x32xf32>
    %184 = vector.extract_strided_slice %177 {offsets = [0, 32], sizes = [4, 32], strides = [1, 1]} : vector<4x128xf32> to vector<4x32xf32>
    %185 = arith.negf %184 : vector<4x32xf32>
    %186 = math.exp %185 : vector<4x32xf32>
    %cst_69 = arith.constant 1.000000e+00 : f32
    %187 = vector.broadcast %cst_69 : f32 to vector<4x32xf32>
    %188 = arith.addf %187, %186 : vector<4x32xf32>
    %189 = arith.divf %187, %188 : vector<4x32xf32>
    %190 = vector.extract_strided_slice %177 {offsets = [0, 64], sizes = [4, 32], strides = [1, 1]} : vector<4x128xf32> to vector<4x32xf32>
    %191 = math.tanh %190 : vector<4x32xf32>
    %192 = vector.extract_strided_slice %177 {offsets = [0, 96], sizes = [4, 32], strides = [1, 1]} : vector<4x128xf32> to vector<4x32xf32>
    %193 = arith.negf %192 : vector<4x32xf32>
    %194 = math.exp %193 : vector<4x32xf32>
    %cst_70 = arith.constant 1.000000e+00 : f32
    %195 = vector.broadcast %cst_70 : f32 to vector<4x32xf32>
    %196 = arith.addf %195, %194 : vector<4x32xf32>
    %197 = arith.divf %195, %196 : vector<4x32xf32>
    %198 = arith.mulf %189, %153 : vector<4x32xf32>
    %199 = arith.mulf %183, %191 : vector<4x32xf32>
    %200 = arith.addf %198, %199 : vector<4x32xf32>
    %201 = math.tanh %200 : vector<4x32xf32>
    %202 = arith.mulf %197, %201 : vector<4x32xf32>
    %203 = vector.extract_strided_slice %202 {offsets = [0, 0], sizes = [2, 32], strides = [1, 1]} : vector<4x32xf32> to vector<2x32xf32>
    %204 = arith.index_cast %163 : i32 to index
    %c0_71 = arith.constant 0 : index
    %205 = vector.load %arg9[%204, %c0_71] : memref<16x32xf32, #tpu.memory_space<vmem>>, vector<2x32xf32>
    tpu.vector_store %arg9[%204, %c0_71], %203 {strides = array<i32>} : memref<16x32xf32, #tpu.memory_space<vmem>>, vector<2x32xf32>,
    %206 = vector.extract_strided_slice %202 {offsets = [2, 0], sizes = [2, 32], strides = [1, 1]} : vector<4x32xf32> to vector<2x32xf32>
    %207 = arith.index_cast %166 : i32 to index
    %c0_72 = arith.constant 0 : index
    %208 = vector.load %arg10[%207, %c0_72] : memref<16x32xf32, #tpu.memory_space<vmem>>, vector<2x32xf32>
    tpu.vector_store %arg10[%207, %c0_72], %206 {strides = array<i32>} : memref<16x32xf32, #tpu.memory_space<vmem>>, vector<2x32xf32>,
    %c4_i32 = arith.constant 4 : i32
    %c2_i32_73 = arith.constant 2 : i32
    %209 = arith.muli %c4_i32, %c2_i32_73 : i32
    %210 = tpu.assume_multiple %209, 2 : i32
    %c7_i32_74 = arith.constant 7 : i32
    %211 = arith.subi %c7_i32_74, %c4_i32 : i32
    %c2_i32_75 = arith.constant 2 : i32
    %212 = arith.muli %211, %c2_i32_75 : i32
    %213 = tpu.assume_multiple %212, 2 : i32
    %214 = vector.extract_strided_slice %202 {offsets = [0, 0], sizes = [2, 32], strides = [1, 1]} : vector<4x32xf32> to vector<2x32xf32>
    %cst_76 = arith.constant dense<0.000000e+00> : vector<2x128xf32>
    %215 = tpu.matmul %214, %17, %cst_76 {dimension_numbers = #tpu.dot_dimension_numbers<[1], [0], [0], [1], [0, 0, 1, 1], [], []>} : vector<2x32xf32>, vector<32x128xf32>, vector<2x128xf32> -> vector<2x128xf32>
    %216 = vector.extract_strided_slice %202 {offsets = [2, 0], sizes = [2, 32], strides = [1, 1]} : vector<4x32xf32> to vector<2x32xf32>
    %cst_77 = arith.constant dense<0.000000e+00> : vector<2x128xf32>
    %217 = tpu.matmul %216, %18, %cst_77 {dimension_numbers = #tpu.dot_dimension_numbers<[1], [0], [0], [1], [0, 0, 1, 1], [], []>} : vector<2x32xf32>, vector<32x128xf32>, vector<2x128xf32> -> vector<2x128xf32>
    %218 = arith.index_cast %210 : i32 to index
    %c0_78 = arith.constant 0 : index
    %219 = vector.load %arg13[%218, %c0_78] : memref<16x128xf32, #tpu.memory_space<vmem>>, vector<2x128xf32>
    %220 = arith.addf %219, %215 : vector<2x128xf32>
    %221 = arith.index_cast %213 : i32 to index
    %c0_79 = arith.constant 0 : index
    %222 = vector.load %arg14[%221, %c0_79] : memref<16x128xf32, #tpu.memory_space<vmem>>, vector<2x128xf32>
    %223 = arith.addf %222, %217 : vector<2x128xf32>
    %224 = tpu.concatenate %220, %223 in 0 : vector<2x128xf32>, vector<2x128xf32> -> vector<4x128xf32>
    %225 = vector.extract_strided_slice %224 {offsets = [0, 0], sizes = [4, 32], strides = [1, 1]} : vector<4x128xf32> to vector<4x32xf32>
    %226 = arith.negf %225 : vector<4x32xf32>
    %227 = math.exp %226 : vector<4x32xf32>
    %cst_80 = arith.constant 1.000000e+00 : f32
    %228 = vector.broadcast %cst_80 : f32 to vector<4x32xf32>
    %229 = arith.addf %228, %227 : vector<4x32xf32>
    %230 = arith.divf %228, %229 : vector<4x32xf32>
    %231 = vector.extract_strided_slice %224 {offsets = [0, 32], sizes = [4, 32], strides = [1, 1]} : vector<4x128xf32> to vector<4x32xf32>
    %232 = arith.negf %231 : vector<4x32xf32>
    %233 = math.exp %232 : vector<4x32xf32>
    %cst_81 = arith.constant 1.000000e+00 : f32
    %234 = vector.broadcast %cst_81 : f32 to vector<4x32xf32>
    %235 = arith.addf %234, %233 : vector<4x32xf32>
    %236 = arith.divf %234, %235 : vector<4x32xf32>
    %237 = vector.extract_strided_slice %224 {offsets = [0, 64], sizes = [4, 32], strides = [1, 1]} : vector<4x128xf32> to vector<4x32xf32>
    %238 = math.tanh %237 : vector<4x32xf32>
    %239 = vector.extract_strided_slice %224 {offsets = [0, 96], sizes = [4, 32], strides = [1, 1]} : vector<4x128xf32> to vector<4x32xf32>
    %240 = arith.negf %239 : vector<4x32xf32>
    %241 = math.exp %240 : vector<4x32xf32>
    %cst_82 = arith.constant 1.000000e+00 : f32
    %242 = vector.broadcast %cst_82 : f32 to vector<4x32xf32>
    %243 = arith.addf %242, %241 : vector<4x32xf32>
    %244 = arith.divf %242, %243 : vector<4x32xf32>
    %245 = arith.mulf %236, %200 : vector<4x32xf32>
    %246 = arith.mulf %230, %238 : vector<4x32xf32>
    %247 = arith.addf %245, %246 : vector<4x32xf32>
    %248 = math.tanh %247 : vector<4x32xf32>
    %249 = arith.mulf %244, %248 : vector<4x32xf32>
    %250 = vector.extract_strided_slice %249 {offsets = [0, 0], sizes = [2, 32], strides = [1, 1]} : vector<4x32xf32> to vector<2x32xf32>
    %251 = arith.index_cast %210 : i32 to index
    %c0_83 = arith.constant 0 : index
    %252 = vector.load %arg9[%251, %c0_83] : memref<16x32xf32, #tpu.memory_space<vmem>>, vector<2x32xf32>
    tpu.vector_store %arg9[%251, %c0_83], %250 {strides = array<i32>} : memref<16x32xf32, #tpu.memory_space<vmem>>, vector<2x32xf32>,
    %253 = vector.extract_strided_slice %249 {offsets = [2, 0], sizes = [2, 32], strides = [1, 1]} : vector<4x32xf32> to vector<2x32xf32>
    %254 = arith.index_cast %213 : i32 to index
    %c0_84 = arith.constant 0 : index
    %255 = vector.load %arg10[%254, %c0_84] : memref<16x32xf32, #tpu.memory_space<vmem>>, vector<2x32xf32>
    tpu.vector_store %arg10[%254, %c0_84], %253 {strides = array<i32>} : memref<16x32xf32, #tpu.memory_space<vmem>>, vector<2x32xf32>,
    %c5_i32 = arith.constant 5 : i32
    %c2_i32_85 = arith.constant 2 : i32
    %256 = arith.muli %c5_i32, %c2_i32_85 : i32
    %257 = tpu.assume_multiple %256, 2 : i32
    %c7_i32_86 = arith.constant 7 : i32
    %258 = arith.subi %c7_i32_86, %c5_i32 : i32
    %c2_i32_87 = arith.constant 2 : i32
    %259 = arith.muli %258, %c2_i32_87 : i32
    %260 = tpu.assume_multiple %259, 2 : i32
    %261 = vector.extract_strided_slice %249 {offsets = [0, 0], sizes = [2, 32], strides = [1, 1]} : vector<4x32xf32> to vector<2x32xf32>
    %cst_88 = arith.constant dense<0.000000e+00> : vector<2x128xf32>
    %262 = tpu.matmul %261, %17, %cst_88 {dimension_numbers = #tpu.dot_dimension_numbers<[1], [0], [0], [1], [0, 0, 1, 1], [], []>} : vector<2x32xf32>, vector<32x128xf32>, vector<2x128xf32> -> vector<2x128xf32>
    %263 = vector.extract_strided_slice %249 {offsets = [2, 0], sizes = [2, 32], strides = [1, 1]} : vector<4x32xf32> to vector<2x32xf32>
    %cst_89 = arith.constant dense<0.000000e+00> : vector<2x128xf32>
    %264 = tpu.matmul %263, %18, %cst_89 {dimension_numbers = #tpu.dot_dimension_numbers<[1], [0], [0], [1], [0, 0, 1, 1], [], []>} : vector<2x32xf32>, vector<32x128xf32>, vector<2x128xf32> -> vector<2x128xf32>
    %265 = arith.index_cast %257 : i32 to index
    %c0_90 = arith.constant 0 : index
    %266 = vector.load %arg13[%265, %c0_90] : memref<16x128xf32, #tpu.memory_space<vmem>>, vector<2x128xf32>
    %267 = arith.addf %266, %262 : vector<2x128xf32>
    %268 = arith.index_cast %260 : i32 to index
    %c0_91 = arith.constant 0 : index
    %269 = vector.load %arg14[%268, %c0_91] : memref<16x128xf32, #tpu.memory_space<vmem>>, vector<2x128xf32>
    %270 = arith.addf %269, %264 : vector<2x128xf32>
    %271 = tpu.concatenate %267, %270 in 0 : vector<2x128xf32>, vector<2x128xf32> -> vector<4x128xf32>
    %272 = vector.extract_strided_slice %271 {offsets = [0, 0], sizes = [4, 32], strides = [1, 1]} : vector<4x128xf32> to vector<4x32xf32>
    %273 = arith.negf %272 : vector<4x32xf32>
    %274 = math.exp %273 : vector<4x32xf32>
    %cst_92 = arith.constant 1.000000e+00 : f32
    %275 = vector.broadcast %cst_92 : f32 to vector<4x32xf32>
    %276 = arith.addf %275, %274 : vector<4x32xf32>
    %277 = arith.divf %275, %276 : vector<4x32xf32>
    %278 = vector.extract_strided_slice %271 {offsets = [0, 32], sizes = [4, 32], strides = [1, 1]} : vector<4x128xf32> to vector<4x32xf32>
    %279 = arith.negf %278 : vector<4x32xf32>
    %280 = math.exp %279 : vector<4x32xf32>
    %cst_93 = arith.constant 1.000000e+00 : f32
    %281 = vector.broadcast %cst_93 : f32 to vector<4x32xf32>
    %282 = arith.addf %281, %280 : vector<4x32xf32>
    %283 = arith.divf %281, %282 : vector<4x32xf32>
    %284 = vector.extract_strided_slice %271 {offsets = [0, 64], sizes = [4, 32], strides = [1, 1]} : vector<4x128xf32> to vector<4x32xf32>
    %285 = math.tanh %284 : vector<4x32xf32>
    %286 = vector.extract_strided_slice %271 {offsets = [0, 96], sizes = [4, 32], strides = [1, 1]} : vector<4x128xf32> to vector<4x32xf32>
    %287 = arith.negf %286 : vector<4x32xf32>
    %288 = math.exp %287 : vector<4x32xf32>
    %cst_94 = arith.constant 1.000000e+00 : f32
    %289 = vector.broadcast %cst_94 : f32 to vector<4x32xf32>
    %290 = arith.addf %289, %288 : vector<4x32xf32>
    %291 = arith.divf %289, %290 : vector<4x32xf32>
    %292 = arith.mulf %283, %247 : vector<4x32xf32>
    %293 = arith.mulf %277, %285 : vector<4x32xf32>
    %294 = arith.addf %292, %293 : vector<4x32xf32>
    %295 = math.tanh %294 : vector<4x32xf32>
    %296 = arith.mulf %291, %295 : vector<4x32xf32>
    %297 = vector.extract_strided_slice %296 {offsets = [0, 0], sizes = [2, 32], strides = [1, 1]} : vector<4x32xf32> to vector<2x32xf32>
    %298 = arith.index_cast %257 : i32 to index
    %c0_95 = arith.constant 0 : index
    %299 = vector.load %arg9[%298, %c0_95] : memref<16x32xf32, #tpu.memory_space<vmem>>, vector<2x32xf32>
    tpu.vector_store %arg9[%298, %c0_95], %297 {strides = array<i32>} : memref<16x32xf32, #tpu.memory_space<vmem>>, vector<2x32xf32>,
    %300 = vector.extract_strided_slice %296 {offsets = [2, 0], sizes = [2, 32], strides = [1, 1]} : vector<4x32xf32> to vector<2x32xf32>
    %301 = arith.index_cast %260 : i32 to index
    %c0_96 = arith.constant 0 : index
    %302 = vector.load %arg10[%301, %c0_96] : memref<16x32xf32, #tpu.memory_space<vmem>>, vector<2x32xf32>
    tpu.vector_store %arg10[%301, %c0_96], %300 {strides = array<i32>} : memref<16x32xf32, #tpu.memory_space<vmem>>, vector<2x32xf32>,
    %c6_i32 = arith.constant 6 : i32
    %c2_i32_97 = arith.constant 2 : i32
    %303 = arith.muli %c6_i32, %c2_i32_97 : i32
    %304 = tpu.assume_multiple %303, 2 : i32
    %c7_i32_98 = arith.constant 7 : i32
    %305 = arith.subi %c7_i32_98, %c6_i32 : i32
    %c2_i32_99 = arith.constant 2 : i32
    %306 = arith.muli %305, %c2_i32_99 : i32
    %307 = tpu.assume_multiple %306, 2 : i32
    %308 = vector.extract_strided_slice %296 {offsets = [0, 0], sizes = [2, 32], strides = [1, 1]} : vector<4x32xf32> to vector<2x32xf32>
    %cst_100 = arith.constant dense<0.000000e+00> : vector<2x128xf32>
    %309 = tpu.matmul %308, %17, %cst_100 {dimension_numbers = #tpu.dot_dimension_numbers<[1], [0], [0], [1], [0, 0, 1, 1], [], []>} : vector<2x32xf32>, vector<32x128xf32>, vector<2x128xf32> -> vector<2x128xf32>
    %310 = vector.extract_strided_slice %296 {offsets = [2, 0], sizes = [2, 32], strides = [1, 1]} : vector<4x32xf32> to vector<2x32xf32>
    %cst_101 = arith.constant dense<0.000000e+00> : vector<2x128xf32>
    %311 = tpu.matmul %310, %18, %cst_101 {dimension_numbers = #tpu.dot_dimension_numbers<[1], [0], [0], [1], [0, 0, 1, 1], [], []>} : vector<2x32xf32>, vector<32x128xf32>, vector<2x128xf32> -> vector<2x128xf32>
    %312 = arith.index_cast %304 : i32 to index
    %c0_102 = arith.constant 0 : index
    %313 = vector.load %arg13[%312, %c0_102] : memref<16x128xf32, #tpu.memory_space<vmem>>, vector<2x128xf32>
    %314 = arith.addf %313, %309 : vector<2x128xf32>
    %315 = arith.index_cast %307 : i32 to index
    %c0_103 = arith.constant 0 : index
    %316 = vector.load %arg14[%315, %c0_103] : memref<16x128xf32, #tpu.memory_space<vmem>>, vector<2x128xf32>
    %317 = arith.addf %316, %311 : vector<2x128xf32>
    %318 = tpu.concatenate %314, %317 in 0 : vector<2x128xf32>, vector<2x128xf32> -> vector<4x128xf32>
    %319 = vector.extract_strided_slice %318 {offsets = [0, 0], sizes = [4, 32], strides = [1, 1]} : vector<4x128xf32> to vector<4x32xf32>
    %320 = arith.negf %319 : vector<4x32xf32>
    %321 = math.exp %320 : vector<4x32xf32>
    %cst_104 = arith.constant 1.000000e+00 : f32
    %322 = vector.broadcast %cst_104 : f32 to vector<4x32xf32>
    %323 = arith.addf %322, %321 : vector<4x32xf32>
    %324 = arith.divf %322, %323 : vector<4x32xf32>
    %325 = vector.extract_strided_slice %318 {offsets = [0, 32], sizes = [4, 32], strides = [1, 1]} : vector<4x128xf32> to vector<4x32xf32>
    %326 = arith.negf %325 : vector<4x32xf32>
    %327 = math.exp %326 : vector<4x32xf32>
    %cst_105 = arith.constant 1.000000e+00 : f32
    %328 = vector.broadcast %cst_105 : f32 to vector<4x32xf32>
    %329 = arith.addf %328, %327 : vector<4x32xf32>
    %330 = arith.divf %328, %329 : vector<4x32xf32>
    %331 = vector.extract_strided_slice %318 {offsets = [0, 64], sizes = [4, 32], strides = [1, 1]} : vector<4x128xf32> to vector<4x32xf32>
    %332 = math.tanh %331 : vector<4x32xf32>
    %333 = vector.extract_strided_slice %318 {offsets = [0, 96], sizes = [4, 32], strides = [1, 1]} : vector<4x128xf32> to vector<4x32xf32>
    %334 = arith.negf %333 : vector<4x32xf32>
    %335 = math.exp %334 : vector<4x32xf32>
    %cst_106 = arith.constant 1.000000e+00 : f32
    %336 = vector.broadcast %cst_106 : f32 to vector<4x32xf32>
    %337 = arith.addf %336, %335 : vector<4x32xf32>
    %338 = arith.divf %336, %337 : vector<4x32xf32>
    %339 = arith.mulf %330, %294 : vector<4x32xf32>
    %340 = arith.mulf %324, %332 : vector<4x32xf32>
    %341 = arith.addf %339, %340 : vector<4x32xf32>
    %342 = math.tanh %341 : vector<4x32xf32>
    %343 = arith.mulf %338, %342 : vector<4x32xf32>
    %344 = vector.extract_strided_slice %343 {offsets = [0, 0], sizes = [2, 32], strides = [1, 1]} : vector<4x32xf32> to vector<2x32xf32>
    %345 = arith.index_cast %304 : i32 to index
    %c0_107 = arith.constant 0 : index
    %346 = vector.load %arg9[%345, %c0_107] : memref<16x32xf32, #tpu.memory_space<vmem>>, vector<2x32xf32>
    tpu.vector_store %arg9[%345, %c0_107], %344 {strides = array<i32>} : memref<16x32xf32, #tpu.memory_space<vmem>>, vector<2x32xf32>,
    %347 = vector.extract_strided_slice %343 {offsets = [2, 0], sizes = [2, 32], strides = [1, 1]} : vector<4x32xf32> to vector<2x32xf32>
    %348 = arith.index_cast %307 : i32 to index
    %c0_108 = arith.constant 0 : index
    %349 = vector.load %arg10[%348, %c0_108] : memref<16x32xf32, #tpu.memory_space<vmem>>, vector<2x32xf32>
    tpu.vector_store %arg10[%348, %c0_108], %347 {strides = array<i32>} : memref<16x32xf32, #tpu.memory_space<vmem>>, vector<2x32xf32>,
    %c7_i32_109 = arith.constant 7 : i32
    %c2_i32_110 = arith.constant 2 : i32
    %350 = arith.muli %c7_i32_109, %c2_i32_110 : i32
    %351 = tpu.assume_multiple %350, 2 : i32
    %c7_i32_111 = arith.constant 7 : i32
    %352 = arith.subi %c7_i32_111, %c7_i32_109 : i32
    %c2_i32_112 = arith.constant 2 : i32
    %353 = arith.muli %352, %c2_i32_112 : i32
    %354 = tpu.assume_multiple %353, 2 : i32
    %355 = vector.extract_strided_slice %343 {offsets = [0, 0], sizes = [2, 32], strides = [1, 1]} : vector<4x32xf32> to vector<2x32xf32>
    %cst_113 = arith.constant dense<0.000000e+00> : vector<2x128xf32>
    %356 = tpu.matmul %355, %17, %cst_113 {dimension_numbers = #tpu.dot_dimension_numbers<[1], [0], [0], [1], [0, 0, 1, 1], [], []>} : vector<2x32xf32>, vector<32x128xf32>, vector<2x128xf32> -> vector<2x128xf32>
    %357 = vector.extract_strided_slice %343 {offsets = [2, 0], sizes = [2, 32], strides = [1, 1]} : vector<4x32xf32> to vector<2x32xf32>
    %cst_114 = arith.constant dense<0.000000e+00> : vector<2x128xf32>
    %358 = tpu.matmul %357, %18, %cst_114 {dimension_numbers = #tpu.dot_dimension_numbers<[1], [0], [0], [1], [0, 0, 1, 1], [], []>} : vector<2x32xf32>, vector<32x128xf32>, vector<2x128xf32> -> vector<2x128xf32>
    %359 = arith.index_cast %351 : i32 to index
    %c0_115 = arith.constant 0 : index
    %360 = vector.load %arg13[%359, %c0_115] : memref<16x128xf32, #tpu.memory_space<vmem>>, vector<2x128xf32>
    %361 = arith.addf %360, %356 : vector<2x128xf32>
    %362 = arith.index_cast %354 : i32 to index
    %c0_116 = arith.constant 0 : index
    %363 = vector.load %arg14[%362, %c0_116] : memref<16x128xf32, #tpu.memory_space<vmem>>, vector<2x128xf32>
    %364 = arith.addf %363, %358 : vector<2x128xf32>
    %365 = tpu.concatenate %361, %364 in 0 : vector<2x128xf32>, vector<2x128xf32> -> vector<4x128xf32>
    %366 = vector.extract_strided_slice %365 {offsets = [0, 0], sizes = [4, 32], strides = [1, 1]} : vector<4x128xf32> to vector<4x32xf32>
    %367 = arith.negf %366 : vector<4x32xf32>
    %368 = math.exp %367 : vector<4x32xf32>
    %cst_117 = arith.constant 1.000000e+00 : f32
    %369 = vector.broadcast %cst_117 : f32 to vector<4x32xf32>
    %370 = arith.addf %369, %368 : vector<4x32xf32>
    %371 = arith.divf %369, %370 : vector<4x32xf32>
    %372 = vector.extract_strided_slice %365 {offsets = [0, 32], sizes = [4, 32], strides = [1, 1]} : vector<4x128xf32> to vector<4x32xf32>
    %373 = arith.negf %372 : vector<4x32xf32>
    %374 = math.exp %373 : vector<4x32xf32>
    %cst_118 = arith.constant 1.000000e+00 : f32
    %375 = vector.broadcast %cst_118 : f32 to vector<4x32xf32>
    %376 = arith.addf %375, %374 : vector<4x32xf32>
    %377 = arith.divf %375, %376 : vector<4x32xf32>
    %378 = vector.extract_strided_slice %365 {offsets = [0, 64], sizes = [4, 32], strides = [1, 1]} : vector<4x128xf32> to vector<4x32xf32>
    %379 = math.tanh %378 : vector<4x32xf32>
    %380 = vector.extract_strided_slice %365 {offsets = [0, 96], sizes = [4, 32], strides = [1, 1]} : vector<4x128xf32> to vector<4x32xf32>
    %381 = arith.negf %380 : vector<4x32xf32>
    %382 = math.exp %381 : vector<4x32xf32>
    %cst_119 = arith.constant 1.000000e+00 : f32
    %383 = vector.broadcast %cst_119 : f32 to vector<4x32xf32>
    %384 = arith.addf %383, %382 : vector<4x32xf32>
    %385 = arith.divf %383, %384 : vector<4x32xf32>
    %386 = arith.mulf %377, %341 : vector<4x32xf32>
    %387 = arith.mulf %371, %379 : vector<4x32xf32>
    %388 = arith.addf %386, %387 : vector<4x32xf32>
    %389 = math.tanh %388 : vector<4x32xf32>
    %390 = arith.mulf %385, %389 : vector<4x32xf32>
    %391 = vector.extract_strided_slice %390 {offsets = [0, 0], sizes = [2, 32], strides = [1, 1]} : vector<4x32xf32> to vector<2x32xf32>
    %392 = arith.index_cast %351 : i32 to index
    %c0_120 = arith.constant 0 : index
    %393 = vector.load %arg9[%392, %c0_120] : memref<16x32xf32, #tpu.memory_space<vmem>>, vector<2x32xf32>
    tpu.vector_store %arg9[%392, %c0_120], %391 {strides = array<i32>} : memref<16x32xf32, #tpu.memory_space<vmem>>, vector<2x32xf32>,
    %394 = vector.extract_strided_slice %390 {offsets = [2, 0], sizes = [2, 32], strides = [1, 1]} : vector<4x32xf32> to vector<2x32xf32>
    %395 = arith.index_cast %354 : i32 to index
    %c0_121 = arith.constant 0 : index
    %396 = vector.load %arg10[%395, %c0_121] : memref<16x32xf32, #tpu.memory_space<vmem>>, vector<2x32xf32>
    tpu.vector_store %arg10[%395, %c0_121], %394 {strides = array<i32>} : memref<16x32xf32, #tpu.memory_space<vmem>>, vector<2x32xf32>,
    %c8_i32 = arith.constant 8 : i32
    %c0_122 = arith.constant 0 : index
    %c0_123 = arith.constant 0 : index
    %397 = vector.load %arg11[%c0_122, %c0_123] : memref<4x32xf32, #tpu.memory_space<vmem>>, vector<4x32xf32>
    tpu.vector_store %arg11[%c0_122, %c0_123], %390 {strides = array<i32>} : memref<4x32xf32, #tpu.memory_space<vmem>>, vector<4x32xf32>,
    %c0_124 = arith.constant 0 : index
    %c0_125 = arith.constant 0 : index
    %398 = vector.load %arg12[%c0_124, %c0_125] : memref<4x32xf32, #tpu.memory_space<vmem>>, vector<4x32xf32>
    tpu.vector_store %arg12[%c0_124, %c0_125], %388 {strides = array<i32>} : memref<4x32xf32, #tpu.memory_space<vmem>>, vector<4x32xf32>,
    return
  }
  func.func @transform_0(%arg0: i32) -> (i32, i32) {
    %c0_i32 = arith.constant 0 : i32
    %c0_i32_0 = arith.constant 0 : i32
    return %arg0, %c0_i32 : i32, i32
  }
  func.func @transform_1(%arg0: i32) -> (i32, i32) {
    %c0_i32 = arith.constant 0 : i32
    %0 = arith.subi %c0_i32, %arg0 : i32
    %c0_i32_0 = arith.constant 0 : i32
    %c0_i32_1 = arith.constant 0 : i32
    return %0, %c0_i32_0 : i32, i32
  }
  func.func @transform_2(%arg0: i32) -> (i32, i32) {
    %c0_i32 = arith.constant 0 : i32
    %c0_i32_0 = arith.constant 0 : i32
    %c0_i32_1 = arith.constant 0 : i32
    return %c0_i32, %c0_i32_0 : i32, i32
  }
  func.func @transform_3(%arg0: i32) -> (i32, i32) {
    %c0_i32 = arith.constant 0 : i32
    %c0_i32_0 = arith.constant 0 : i32
    %c0_i32_1 = arith.constant 0 : i32
    return %c0_i32, %c0_i32_0 : i32, i32
  }
  func.func @transform_4(%arg0: i32) -> (i32, i32) {
    %c0_i32 = arith.constant 0 : i32
    %c0_i32_0 = arith.constant 0 : i32
    %c0_i32_1 = arith.constant 0 : i32
    return %c0_i32, %c0_i32_0 : i32, i32
  }
  func.func @transform_5(%arg0: i32) -> (i32, i32) {
    %c0_i32 = arith.constant 0 : i32
    %c0_i32_0 = arith.constant 0 : i32
    %c0_i32_1 = arith.constant 0 : i32
    return %c0_i32, %c0_i32_0 : i32, i32
  }
  func.func @transform_6(%arg0: i32) -> (i32, i32) {
    %c0_i32 = arith.constant 0 : i32
    %c0_i32_0 = arith.constant 0 : i32
    %c0_i32_1 = arith.constant 0 : i32
    return %c0_i32, %c0_i32_0 : i32, i32
  }
  func.func @transform_7(%arg0: i32) -> (i32, i32) {
    %c0_i32 = arith.constant 0 : i32
    %c0_i32_0 = arith.constant 0 : i32
    %c0_i32_1 = arith.constant 0 : i32
    return %c0_i32, %c0_i32_0 : i32, i32
  }
  func.func @transform_8(%arg0: i32) -> (i32, i32) {
    %c0_i32 = arith.constant 0 : i32
    %c0_i32_0 = arith.constant 0 : i32
    return %arg0, %c0_i32 : i32, i32
  }
  func.func @transform_9(%arg0: i32) -> (i32, i32) {
    %c0_i32 = arith.constant 0 : i32
    %0 = arith.subi %c0_i32, %arg0 : i32
    %c0_i32_0 = arith.constant 0 : i32
    %c0_i32_1 = arith.constant 0 : i32
    return %0, %c0_i32_0 : i32, i32
  }
  func.func @transform_10(%arg0: i32) -> (i32, i32) {
    %c0_i32 = arith.constant 0 : i32
    %c0_i32_0 = arith.constant 0 : i32
    %c0_i32_1 = arith.constant 0 : i32
    return %c0_i32, %c0_i32_0 : i32, i32
  }
  func.func @transform_11(%arg0: i32) -> (i32, i32) {
    %c0_i32 = arith.constant 0 : i32
    %c0_i32_0 = arith.constant 0 : i32
    %c0_i32_1 = arith.constant 0 : i32
    return %c0_i32, %c0_i32_0 : i32, i32
  }
}

</mosaic_0001>

<llo_original>
// kernel: _lambda_.2
$region0: #{_lambda_.2}
  #allocation0 [shape = 'u32[]', space=smem, size = 0x4, offset = 0x4, fixed_abs, tag = 'smem constant byte address 0x4 - core index']
  #allocation1 [shape = 'u32[72,128]{1,0:T(1,128)}', space=vmem, size = 0x9000, scoped, tag = 'internal scratch']
  #allocation2 [shape = 'f32[16,128]{1,0:T(8,128)}', space=vmem, size = 0x2000, scoped, tag = 'scratch operand']
  #allocation3 [shape = 'f32[16,128]{1,0:T(8,128)}', space=vmem, size = 0x2000, scoped, tag = 'scratch operand']
  %s0 = inlined_call_operand.vmem [shape: f32[16,32], index: 0, kind: input, shape index: {}, may-alias: {0,1}]
  %s1 = inlined_call_operand.vmem [shape: f32[16,32], index: 1, kind: input, shape index: {}, may-alias: {0,1}]
  %s2 = inlined_call_operand.vmem [shape: f32[32,128], index: 2, kind: input, shape index: {}]
  %s3 = inlined_call_operand.vmem [shape: f32[32,128], index: 3, kind: input, shape index: {}]
  %s4 = inlined_call_operand.vmem [shape: f32[32,128], index: 4, kind: input, shape index: {}]
  %s5 = inlined_call_operand.vmem [shape: f32[32,128], index: 5, kind: input, shape index: {}]
  %s6 = inlined_call_operand.vmem [shape: f32[1,128], index: 6, kind: input, shape index: {}]
  %s7 = inlined_call_operand.vmem [shape: f32[1,128], index: 7, kind: input, shape index: {}]
  %s8 = inlined_call_operand.vmem [shape: f32[16,32], index: 8, kind: output, shape index: {0}]
  %s9 = inlined_call_operand.vmem [shape: f32[16,32], index: 9, kind: output, shape index: {1}]
  %s10 = inlined_call_operand.vmem [shape: f32[4,32], index: 10, kind: output, shape index: {2}]
  %s11 = inlined_call_operand.vmem [shape: f32[4,32], index: 11, kind: output, shape index: {3}]
  %12 = xla_tuple %s8, %s9, %s10, %s11
  %s13 = sld [smem:[#allocation0]]
  $region70: #{_lambda_.2} parent=0
    _
  %s15 = ssub.s32 1, %s13
  %s16 = scalar_select 0, %s15, %s13
  // Predicated region
  $region2: #{_lambda_.2} parent=0 // pred_check
    _
  $region3: #{_lambda_.2} parent=0 // pred_check_branch
    %18 = sbr.rel (0) target = $region5
  $region4: #{_lambda_.2} parent=0 // pred_region
    _
  $region5: #{_lambda_.2} parent=0 // pred_fallthru
    _
  // Predicated region
  $region6: #{_lambda_.2} parent=0 // pred_check
    _
  $region7: #{_lambda_.2} parent=0 // pred_check_branch
    %20 = sbr.rel (0) target = $region9
  $region8: #{_lambda_.2} parent=0 // pred_region
    %s21 = ssub.s32 0, 0
    %s22 = smul.u32 2, %s21
    %p23 = scmp.lt.s32.totalorder %s22, 1
    %s24 = scalar_select %p23, %s22, 1
    %s25 = smul.addr %s24, 8
    %s26 = scalar_lea.vmem %s1, %s25
    %s27 = ssub.s32 0, 0
    %s28 = smul.u32 2, %s27
  $region9: #{_lambda_.2} parent=0 // pred_fallthru
    _
  // Predicated region
  $region10: #{_lambda_.2} parent=0 // pred_check
    _
  $region11: #{_lambda_.2} parent=0 // pred_check_branch
    %30 = sbr.rel (0) target = $region13
  $region12: #{_lambda_.2} parent=0 // pred_region
    _
  $region13: #{_lambda_.2} parent=0 // pred_fallthru
    _
  // Predicated region
  $region14: #{_lambda_.2} parent=0 // pred_check
    _
  $region15: #{_lambda_.2} parent=0 // pred_check_branch
    %32 = sbr.rel (0) target = $region17
  $region16: #{_lambda_.2} parent=0 // pred_region
    _
  $region17: #{_lambda_.2} parent=0 // pred_fallthru
    _
  // Predicated region
  $region18: #{_lambda_.2} parent=0 // pred_check
    _
  $region19: #{_lambda_.2} parent=0 // pred_check_branch
    %34 = sbr.rel (0) target = $region21
  $region20: #{_lambda_.2} parent=0 // pred_region
    _
  $region21: #{_lambda_.2} parent=0 // pred_fallthru
    _
  // Predicated region
  $region22: #{_lambda_.2} parent=0 // pred_check
    _
  $region23: #{_lambda_.2} parent=0 // pred_check_branch
    %36 = sbr.rel (0) target = $region25
  $region24: #{_lambda_.2} parent=0 // pred_region
    _
  $region25: #{_lambda_.2} parent=0 // pred_fallthru
    _
  // Predicated region
  $region26: #{_lambda_.2} parent=0 // pred_check
    _
  $region27: #{_lambda_.2} parent=0 // pred_check_branch
    %38 = sbr.rel (0) target = $region29
  $region28: #{_lambda_.2} parent=0 // pred_region
    _
  $region29: #{_lambda_.2} parent=0 // pred_fallthru
    _
  // Predicated region
  $region30: #{_lambda_.2} parent=0 // pred_check
    _
  $region31: #{_lambda_.2} parent=0 // pred_check_branch
    %40 = sbr.rel (0) target = $region33
  $region32: #{_lambda_.2} parent=0 // pred_region
    _
  $region33: #{_lambda_.2} parent=0 // pred_fallthru
    _
  %s41 = ssub.s32 0, 0
  %s42 = smul.u32 2, %s41
  %p43 = scmp.lt.s32.totalorder %s42, 1
  %s44 = scalar_select %p43, %s42, 1
  %s45 = smul.addr %s44, 8
  %s46 = scalar_lea.vmem %s1, %s45
  %s47 = ssub.s32 0, 0
  %s48 = smul.u32 2, %s47
  %p49 = scmp.lt.s32.totalorder %s48, 1
  %s50 = scalar_select %p49, %s48, 1
  %s51 = smul.addr %s50, 8
  %s52 = scalar_lea.vmem %s9, %s51
  %s53 = ssub.s32 0, 0
  %s54 = smul.u32 2, %s53
  %p55 = scmp.lt.s32.totalorder %s54, 1
  %s56 = scalar_select %p55, %s54, 1
  %s57 = smul.addr %s56, 8
  %s58 = scalar_lea.vmem %s1, %s57
  %s59 = ssub.s32 0, 0
  %s60 = smul.u32 2, %s59
  %s61 = ssub.s32 0, 0
  %s62 = smul.u32 2, %s61
  %p63 = scmp.lt.s32.totalorder %s62, 1
  %s64 = scalar_select %p63, %s62, 1
  %s65 = smul.addr %s64, 8
  %s66 = scalar_lea.vmem %s9, %s65
  %s67 = ssub.s32 0, 0
  %s68 = smul.u32 2, %s67
  %p69 = scmp.eq.s32.totalorder 0, 0
  // Predicated region
  $region34: #{_lambda_.2} parent=0 // pred_check
    %p70 = pneg %p69
  $region35: #{_lambda_.2} parent=0 // pred_check_branch
    %72 = sbr.rel (%p70) target = $region37
  $region36: #{_lambda_.2} parent=0 // pred_region
    %vm73 = vcmask 257024
    %74 = vst.msk [vmem:[%s10] sm:$0xf] %vm73, 0.0
    %75 = vst.msk [vmem:[%s11] sm:$0xf] %vm73, 0.0
  $region37: #{_lambda_.2} parent=0 // pred_fallthru
    _
  %v76 = vld [vmem:[%s0] sm:$0xff]
  %v77 = vld [vmem:[%s0 + $0x8] sm:$0xff]
  %v78 = vld [vmem:[%s2] sm:$0xff]
  %v79 = vld [vmem:[%s2 + $0x8] sm:$0xff]
  %v80 = vld [vmem:[%s2 + $0x10] sm:$0xff]
  %v81 = vld [vmem:[%s2 + $0x18] sm:$0xff]
  %v82 = vld [vmem:[%s6] sm:$0x1]
  %v84 = vperm.slane %v82, 0
  %vm86 = vcmask 261120
  %v88 = vsel %vm86, %v76, 0
  %v91 = vsel %vm86, %v77, 0
  %93 = vmatpush.msra.mxu0 0.0
  %94 = vmatpush.msra.mxu0 0.0
  %95 = vmatpush.msra.mxu0 0.0
  %96 = vmatpush.msra.mxu0 0.0
  %97 = vmatpush.msra.mxu0 0.0
  %98 = vmatpush.msra.mxu0 0.0
  %99 = vmatpush.msra.mxu0 0.0
  %100 = vmatpush.msra.mxu0 0.0
  %101 = vmatpush.msra.mxu0 0.0
  %102 = vmatpush.msra.mxu0 0.0
  %103 = vmatpush.msra.mxu0 0.0
  %104 = vmatpush.msra.mxu0 0.0
  %105 = vmatpush.msra.mxu0 %v81
  %106 = vmatpush.msra.mxu0 %v80
  %107 = vmatpush.msra.mxu0 %v79
  %108 = vmatpush.msra.mxu0 %v78
  %109 = vmatmul.f32.gmra.mxu0 %v88
  %v110 = vpop.f32.mrf.mxu0
  %v111 = vadd.f32 %v84, %v110
  %112 = vmatmul.f32.gmra.mxu0 %v91
  %v113 = vpop.f32.mrf.mxu0
  %v114 = vadd.f32 %v84, %v113
  %115 = vdwg.mxu0
  %116 = vst [vmem:[#allocation2] sm:$0xff] %v111
  %117 = vst [vmem:[#allocation2 + $0x8] sm:$0xff] %v114
  %v118 = vld [vmem:[%s58] sm:$0xff]
  %v119 = vld [vmem:[%s58 + $0x8] sm:$0xff]
  %v120 = vld [vmem:[%s3] sm:$0xff]
  %v121 = vld [vmem:[%s3 + $0x8] sm:$0xff]
  %v122 = vld [vmem:[%s3 + $0x10] sm:$0xff]
  %v123 = vld [vmem:[%s3 + $0x18] sm:$0xff]
  %v124 = vld [vmem:[%s7] sm:$0x1]
  %v126 = vperm.slane %v124, 0
  %v129 = vsel %vm86, %v118, 0
  %v132 = vsel %vm86, %v119, 0
  %134 = vmatpush.msra.mxu0 0.0
  %135 = vmatpush.msra.mxu0 0.0
  %136 = vmatpush.msra.mxu0 0.0
  %137 = vmatpush.msra.mxu0 0.0
  %138 = vmatpush.msra.mxu0 0.0
  %139 = vmatpush.msra.mxu0 0.0
  %140 = vmatpush.msra.mxu0 0.0
  %141 = vmatpush.msra.mxu0 0.0
  %142 = vmatpush.msra.mxu0 0.0
  %143 = vmatpush.msra.mxu0 0.0
  %144 = vmatpush.msra.mxu0 0.0
  %145 = vmatpush.msra.mxu0 0.0
  %146 = vmatpush.msra.mxu0 %v123
  %147 = vmatpush.msra.mxu0 %v122
  %148 = vmatpush.msra.mxu0 %v121
  %149 = vmatpush.msra.mxu0 %v120
  %150 = vmatmul.f32.gmra.mxu0 %v129
  %v151 = vpop.f32.mrf.mxu0
  %v152 = vadd.f32 %v126, %v151
  %153 = vmatmul.f32.gmra.mxu0 %v132
  %v154 = vpop.f32.mrf.mxu0
  %v155 = vadd.f32 %v126, %v154
  %156 = vdwg.mxu0
  %157 = vst [vmem:[#allocation3] sm:$0xff] %v152
  %158 = vst [vmem:[#allocation3 + $0x8] sm:$0xff] %v155
  %v159 = vld [vmem:[%s4] sm:$0xff]
  %v160 = vld [vmem:[%s4 + $0x8] sm:$0xff]
  %v161 = vld [vmem:[%s4 + $0x10] sm:$0xff]
  %v162 = vld [vmem:[%s4 + $0x18] sm:$0xff]
  %v163 = vld [vmem:[%s5] sm:$0xff]
  %v164 = vld [vmem:[%s5 + $0x8] sm:$0xff]
  %v165 = vld [vmem:[%s5 + $0x10] sm:$0xff]
  %v166 = vld [vmem:[%s5 + $0x18] sm:$0xff]
  %v167 = vld [vmem:[%s10] sm:$0xf]
  %v168 = vld [vmem:[%s11] sm:$0xf]
  %v170 = vsel %vm86, %v167, 0
  %172 = vmatpush.msra.mxu0 0.0
  %173 = vmatpush.msra.mxu0 0.0
  %174 = vmatpush.msra.mxu0 0.0
  %175 = vmatpush.msra.mxu0 0.0
  %176 = vmatpush.msra.mxu0 0.0
  %177 = vmatpush.msra.mxu0 0.0
  %178 = vmatpush.msra.mxu0 0.0
  %179 = vmatpush.msra.mxu0 0.0
  %180 = vmatpush.msra.mxu0 0.0
  %181 = vmatpush.msra.mxu0 0.0
  %182 = vmatpush.msra.mxu0 0.0
  %183 = vmatpush.msra.mxu0 0.0
  %184 = vmatpush.msra.mxu0 %v162
  %185 = vmatpush.msra.mxu0 %v161
  %186 = vmatpush.msra.mxu0 %v160
  %187 = vmatpush.msra.mxu0 %v159
  %188 = vmatmul.f32.gmra.mxu0 %v170
  %v189 = vpop.f32.mrf.mxu0
  %v190 = vadd.f32 0.0, %v189
  %191 = vdwg.mxu0
  %v192 = vrot.slane %v167, 2
  %v193 = vsel %vm86, %v192, 0
  %195 = vmatpush.msra.mxu0 0.0
  %196 = vmatpush.msra.mxu0 0.0
  %197 = vmatpush.msra.mxu0 0.0
  %198 = vmatpush.msra.mxu0 0.0
  %199 = vmatpush.msra.mxu0 0.0
  %200 = vmatpush.msra.mxu0 0.0
  %201 = vmatpush.msra.mxu0 0.0
  %202 = vmatpush.msra.mxu0 0.0
  %203 = vmatpush.msra.mxu0 0.0
  %204 = vmatpush.msra.mxu0 0.0
  %205 = vmatpush.msra.mxu0 0.0
  %206 = vmatpush.msra.mxu0 0.0
  %207 = vmatpush.msra.mxu0 %v166
  %208 = vmatpush.msra.mxu0 %v165
  %209 = vmatpush.msra.mxu0 %v164
  %210 = vmatpush.msra.mxu0 %v163
  %211 = vmatmul.f32.gmra.mxu0 %v193
  %v212 = vpop.f32.mrf.mxu0
  %v213 = vadd.f32 0.0, %v212
  %214 = vdwg.mxu0
  %v215 = vld [vmem:[#allocation2] sm:$0x3]
  %v216 = vadd.f32 %v215, %v190
  %s217 = scalar_lea.vmem [#allocation3], 14
  %v218 = vld [vmem:[%s217] sm:$0x3]
  %v219 = vadd.f32 %v218, %v213
  %v221 = vrot.slane %v219, 6
  %vm223 = vcmask 1041408
  %v224 = vsel %vm223, %v216, %v221
  %v225 = vxor.u32 %v224, 2147483648
  %v226 = vmul.f32 %v225, 1.442695
  %v227 = vpow.pop %v226
  %v228 = vadd.f32 %v227, 1.0
  %v229 = vrcp.pop %v228
  %v230 = vmul.f32 %v228, %v229
  %v231 = vsub.f32 1.0, %v230
  %v232 = vmul.f32 %v229, %v231
  %v233 = vadd.f32 %v229, %v232
  %vm234 = vweird.f32 %v228
  %vm235 = vweird.f32 %v229
  %vm236 = vmor %vm234, %vm235
  %v237 = vsel %vm236, %v229, %v233
  %v238 = vand.u32 2147483647, %v228
  %vm239 = vcmp.eq.f32.partialorder %v238, 8.507059e+37
  %v240 = vand.u32 %v228, 2147483648
  %v241 = vor.u32 1.1754944e-38, %v240
  %v242 = vsel %vm239, %v241, %v237
  %v243 = vmul.f32 1.0, %v242
  %v244 = vtanh.pop %v224
  %246 = vrot.lane.b32.xlu0 %v168, 32
  %v247 = vpop.permute.xlu0 %246
  %v249 = vmul.f32 %v243, %v247
  %251 = vrot.lane.b32.xlu0 %v244, 64
  %v252 = vpop.permute.xlu0 %251
  %v254 = vmul.f32 %v243, %v252
  %256 = vrot.lane.b32.xlu0 %v254, 32
  %v257 = vpop.permute.xlu0 %256
  %v259 = vadd.f32 %v249, %v257
  %v260 = vtanh.pop %v259
  %262 = vrot.lane.b32.xlu0 %v260, 64
  %v263 = vpop.permute.xlu0 %262
  %v265 = vmul.f32 %v243, %v263
  %267 = vrot.lane.b32.xlu0 %v265, 32
  %v268 = vpop.permute.xlu0 %267
  %vm270 = vcmask 254976
  %271 = vst.msk [vmem:[%s8] sm:$0x3] %vm270, %v268
  %s272 = scalar_lea.vmem %s66, 14
  %vm273 = vcmask 257026
  %274 = vst.msk [vmem:[%s272 - $0x2] sm:$0xc] %vm273, %v268
  %v275 = vsel %vm86, %v268, 0
  %277 = vmatpush.msra.mxu0 0.0
  %278 = vmatpush.msra.mxu0 0.0
  %279 = vmatpush.msra.mxu0 0.0
  %280 = vmatpush.msra.mxu0 0.0
  %281 = vmatpush.msra.mxu0 0.0
  %282 = vmatpush.msra.mxu0 0.0
  %283 = vmatpush.msra.mxu0 0.0
  %284 = vmatpush.msra.mxu0 0.0
  %285 = vmatpush.msra.mxu0 0.0
  %286 = vmatpush.msra.mxu0 0.0
  %287 = vmatpush.msra.mxu0 0.0
  %288 = vmatpush.msra.mxu0 0.0
  %289 = vmatpush.msra.mxu0 %v162
  %290 = vmatpush.msra.mxu0 %v161
  %291 = vmatpush.msra.mxu0 %v160
  %292 = vmatpush.msra.mxu0 %v159
  %293 = vmatmul.f32.gmra.mxu0 %v275
  %v294 = vpop.f32.mrf.mxu0
  %v295 = vadd.f32 0.0, %v294
  %296 = vdwg.mxu0
  %v297 = vrot.slane %v265, 2
  %298 = vrot.lane.b32.xlu0 %v297, 32
  %v299 = vpop.permute.xlu0 %298
  %v300 = vsel %vm86, %v299, 0
  %302 = vmatpush.msra.mxu0 0.0
  %303 = vmatpush.msra.mxu0 0.0
  %304 = vmatpush.msra.mxu0 0.0
  %305 = vmatpush.msra.mxu0 0.0
  %306 = vmatpush.msra.mxu0 0.0
  %307 = vmatpush.msra.mxu0 0.0
  %308 = vmatpush.msra.mxu0 0.0
  %309 = vmatpush.msra.mxu0 0.0
  %310 = vmatpush.msra.mxu0 0.0
  %311 = vmatpush.msra.mxu0 0.0
  %312 = vmatpush.msra.mxu0 0.0
  %313 = vmatpush.msra.mxu0 0.0
  %314 = vmatpush.msra.mxu0 %v166
  %315 = vmatpush.msra.mxu0 %v165
  %316 = vmatpush.msra.mxu0 %v164
  %317 = vmatpush.msra.mxu0 %v163
  %318 = vmatmul.f32.gmra.mxu0 %v300
  %v319 = vpop.f32.mrf.mxu0
  %v320 = vadd.f32 0.0, %v319
  %321 = vdwg.mxu0
  %s322 = scalar_lea.vmem [#allocation2], 2
  %v323 = vld [vmem:[%s322] sm:$0x3]
  %v324 = vadd.f32 %v323, %v295
  %s325 = scalar_lea.vmem [#allocation3], 12
  %v326 = vld [vmem:[%s325] sm:$0x3]
  %v327 = vadd.f32 %v326, %v320
  %v329 = vrot.slane %v327, 6
  %v331 = vsel %vm223, %v324, %v329
  %v332 = vxor.u32 %v331, 2147483648
  %v333 = vmul.f32 %v332, 1.442695
  %v334 = vpow.pop %v333
  %v335 = vadd.f32 %v334, 1.0
  %v336 = vrcp.pop %v335
  %v337 = vmul.f32 %v335, %v336
  %v338 = vsub.f32 1.0, %v337
  %v339 = vmul.f32 %v336, %v338
  %v340 = vadd.f32 %v336, %v339
  %vm341 = vweird.f32 %v335
  %vm342 = vweird.f32 %v336
  %vm343 = vmor %vm341, %vm342
  %v344 = vsel %vm343, %v336, %v340
  %v345 = vand.u32 2147483647, %v335
  %vm346 = vcmp.eq.f32.partialorder %v345, 8.507059e+37
  %v347 = vand.u32 %v335, 2147483648
  %v348 = vor.u32 1.1754944e-38, %v347
  %v349 = vsel %vm346, %v348, %v344
  %v350 = vmul.f32 1.0, %v349
  %v351 = vtanh.pop %v331
  %v352 = vmul.f32 %v350, %v259
  %354 = vrot.lane.b32.xlu0 %v351, 64
  %v355 = vpop.permute.xlu0 %354
  %v357 = vmul.f32 %v350, %v355
  %359 = vrot.lane.b32.xlu0 %v357, 32
  %v360 = vpop.permute.xlu0 %359
  %v362 = vadd.f32 %v352, %v360
  %v363 = vtanh.pop %v362
  %365 = vrot.lane.b32.xlu0 %v363, 64
  %v366 = vpop.permute.xlu0 %365
  %v368 = vmul.f32 %v350, %v366
  %370 = vrot.lane.b32.xlu0 %v368, 32
  %v371 = vpop.permute.xlu0 %370
  %s373 = scalar_lea.vmem %s8, 2
  %374 = vst.msk [vmem:[%s373] sm:$0x3] %vm270, %v371
  %s375 = scalar_lea.vmem %s66, 12
  %376 = vst.msk [vmem:[%s375 - $0x2] sm:$0xc] %vm273, %v371
  %v377 = vsel %vm86, %v371, 0
  %379 = vmatpush.msra.mxu0 0.0
  %380 = vmatpush.msra.mxu0 0.0
  %381 = vmatpush.msra.mxu0 0.0
  %382 = vmatpush.msra.mxu0 0.0
  %383 = vmatpush.msra.mxu0 0.0
  %384 = vmatpush.msra.mxu0 0.0
  %385 = vmatpush.msra.mxu0 0.0
  %386 = vmatpush.msra.mxu0 0.0
  %387 = vmatpush.msra.mxu0 0.0
  %388 = vmatpush.msra.mxu0 0.0
  %389 = vmatpush.msra.mxu0 0.0
  %390 = vmatpush.msra.mxu0 0.0
  %391 = vmatpush.msra.mxu0 %v162
  %392 = vmatpush.msra.mxu0 %v161
  %393 = vmatpush.msra.mxu0 %v160
  %394 = vmatpush.msra.mxu0 %v159
  %395 = vmatmul.f32.gmra.mxu0 %v377
  %v396 = vpop.f32.mrf.mxu0
  %v397 = vadd.f32 0.0, %v396
  %398 = vdwg.mxu0
  %v399 = vrot.slane %v368, 2
  %400 = vrot.lane.b32.xlu0 %v399, 32
  %v401 = vpop.permute.xlu0 %400
  %v402 = vsel %vm86, %v401, 0
  %404 = vmatpush.msra.mxu0 0.0
  %405 = vmatpush.msra.mxu0 0.0
  %406 = vmatpush.msra.mxu0 0.0
  %407 = vmatpush.msra.mxu0 0.0
  %408 = vmatpush.msra.mxu0 0.0
  %409 = vmatpush.msra.mxu0 0.0
  %410 = vmatpush.msra.mxu0 0.0
  %411 = vmatpush.msra.mxu0 0.0
  %412 = vmatpush.msra.mxu0 0.0
  %413 = vmatpush.msra.mxu0 0.0
  %414 = vmatpush.msra.mxu0 0.0
  %415 = vmatpush.msra.mxu0 0.0
  %416 = vmatpush.msra.mxu0 %v166
  %417 = vmatpush.msra.mxu0 %v165
  %418 = vmatpush.msra.mxu0 %v164
  %419 = vmatpush.msra.mxu0 %v163
  %420 = vmatmul.f32.gmra.mxu0 %v402
  %v421 = vpop.f32.mrf.mxu0
  %v422 = vadd.f32 0.0, %v421
  %423 = vdwg.mxu0
  %s424 = scalar_lea.vmem [#allocation2], 4
  %v425 = vld [vmem:[%s424] sm:$0x3]
  %v426 = vadd.f32 %v425, %v397
  %s427 = scalar_lea.vmem [#allocation3], 10
  %v428 = vld [vmem:[%s427] sm:$0x3]
  %v429 = vadd.f32 %v428, %v422
  %v431 = vrot.slane %v429, 6
  %v433 = vsel %vm223, %v426, %v431
  %v434 = vxor.u32 %v433, 2147483648
  %v435 = vmul.f32 %v434, 1.442695
  %v436 = vpow.pop %v435
  %v437 = vadd.f32 %v436, 1.0
  %v438 = vrcp.pop %v437
  %v439 = vmul.f32 %v437, %v438
  %v440 = vsub.f32 1.0, %v439
  %v441 = vmul.f32 %v438, %v440
  %v442 = vadd.f32 %v438, %v441
  %vm443 = vweird.f32 %v437
  %vm444 = vweird.f32 %v438
  %vm445 = vmor %vm443, %vm444
  %v446 = vsel %vm445, %v438, %v442
  %v447 = vand.u32 2147483647, %v437
  %vm448 = vcmp.eq.f32.partialorder %v447, 8.507059e+37
  %v449 = vand.u32 %v437, 2147483648
  %v450 = vor.u32 1.1754944e-38, %v449
  %v451 = vsel %vm448, %v450, %v446
  %v452 = vmul.f32 1.0, %v451
  %v453 = vtanh.pop %v433
  %v454 = vmul.f32 %v452, %v362
  %456 = vrot.lane.b32.xlu0 %v453, 64
  %v457 = vpop.permute.xlu0 %456
  %v459 = vmul.f32 %v452, %v457
  %461 = vrot.lane.b32.xlu0 %v459, 32
  %v462 = vpop.permute.xlu0 %461
  %v464 = vadd.f32 %v454, %v462
  %v465 = vtanh.pop %v464
  %467 = vrot.lane.b32.xlu0 %v465, 64
  %v468 = vpop.permute.xlu0 %467
  %v470 = vmul.f32 %v452, %v468
  %472 = vrot.lane.b32.xlu0 %v470, 32
  %v473 = vpop.permute.xlu0 %472
  %s475 = scalar_lea.vmem %s8, 4
  %476 = vst.msk [vmem:[%s475] sm:$0x3] %vm270, %v473
  %s477 = scalar_lea.vmem %s66, 10
  %478 = vst.msk [vmem:[%s477 - $0x2] sm:$0xc] %vm273, %v473
  %v479 = vsel %vm86, %v473, 0
  %481 = vmatpush.msra.mxu0 0.0
  %482 = vmatpush.msra.mxu0 0.0
  %483 = vmatpush.msra.mxu0 0.0
  %484 = vmatpush.msra.mxu0 0.0
  %485 = vmatpush.msra.mxu0 0.0
  %486 = vmatpush.msra.mxu0 0.0
  %487 = vmatpush.msra.mxu0 0.0
  %488 = vmatpush.msra.mxu0 0.0
  %489 = vmatpush.msra.mxu0 0.0
  %490 = vmatpush.msra.mxu0 0.0
  %491 = vmatpush.msra.mxu0 0.0
  %492 = vmatpush.msra.mxu0 0.0
  %493 = vmatpush.msra.mxu0 %v162
  %494 = vmatpush.msra.mxu0 %v161
  %495 = vmatpush.msra.mxu0 %v160
  %496 = vmatpush.msra.mxu0 %v159
  %497 = vmatmul.f32.gmra.mxu0 %v479
  %v498 = vpop.f32.mrf.mxu0
  %v499 = vadd.f32 0.0, %v498
  %500 = vdwg.mxu0
  %v501 = vrot.slane %v470, 2
  %502 = vrot.lane.b32.xlu0 %v501, 32
  %v503 = vpop.permute.xlu0 %502
  %v504 = vsel %vm86, %v503, 0
  %506 = vmatpush.msra.mxu0 0.0
  %507 = vmatpush.msra.mxu0 0.0
  %508 = vmatpush.msra.mxu0 0.0
  %509 = vmatpush.msra.mxu0 0.0
  %510 = vmatpush.msra.mxu0 0.0
  %511 = vmatpush.msra.mxu0 0.0
  %512 = vmatpush.msra.mxu0 0.0
  %513 = vmatpush.msra.mxu0 0.0
  %514 = vmatpush.msra.mxu0 0.0
  %515 = vmatpush.msra.mxu0 0.0
  %516 = vmatpush.msra.mxu0 0.0
  %517 = vmatpush.msra.mxu0 0.0
  %518 = vmatpush.msra.mxu0 %v166
  %519 = vmatpush.msra.mxu0 %v165
  %520 = vmatpush.msra.mxu0 %v164
  %521 = vmatpush.msra.mxu0 %v163
  %522 = vmatmul.f32.gmra.mxu0 %v504
  %v523 = vpop.f32.mrf.mxu0
  %v524 = vadd.f32 0.0, %v523
  %525 = vdwg.mxu0
  %s526 = scalar_lea.vmem [#allocation2], 6
  %v527 = vld [vmem:[%s526] sm:$0x3]
  %v528 = vadd.f32 %v527, %v499
  %s529 = scalar_lea.vmem [#allocation3], 8
  %v530 = vld [vmem:[%s529] sm:$0x3]
  %v531 = vadd.f32 %v530, %v524
  %v533 = vrot.slane %v531, 6
  %v535 = vsel %vm223, %v528, %v533
  %v536 = vxor.u32 %v535, 2147483648
  %v537 = vmul.f32 %v536, 1.442695
  %v538 = vpow.pop %v537
  %v539 = vadd.f32 %v538, 1.0
  %v540 = vrcp.pop %v539
  %v541 = vmul.f32 %v539, %v540
  %v542 = vsub.f32 1.0, %v541
  %v543 = vmul.f32 %v540, %v542
  %v544 = vadd.f32 %v540, %v543
  %vm545 = vweird.f32 %v539
  %vm546 = vweird.f32 %v540
  %vm547 = vmor %vm545, %vm546
  %v548 = vsel %vm547, %v540, %v544
  %v549 = vand.u32 2147483647, %v539
  %vm550 = vcmp.eq.f32.partialorder %v549, 8.507059e+37
  %v551 = vand.u32 %v539, 2147483648
  %v552 = vor.u32 1.1754944e-38, %v551
  %v553 = vsel %vm550, %v552, %v548
  %v554 = vmul.f32 1.0, %v553
  %v555 = vtanh.pop %v535
  %v556 = vmul.f32 %v554, %v464
  %558 = vrot.lane.b32.xlu0 %v555, 64
  %v559 = vpop.permute.xlu0 %558
  %v561 = vmul.f32 %v554, %v559
  %563 = vrot.lane.b32.xlu0 %v561, 32
  %v564 = vpop.permute.xlu0 %563
  %v566 = vadd.f32 %v556, %v564
  %v567 = vtanh.pop %v566
  %569 = vrot.lane.b32.xlu0 %v567, 64
  %v570 = vpop.permute.xlu0 %569
  %v572 = vmul.f32 %v554, %v570
  %574 = vrot.lane.b32.xlu0 %v572, 32
  %v575 = vpop.permute.xlu0 %574
  %s577 = scalar_lea.vmem %s8, 6
  %578 = vst.msk [vmem:[%s577] sm:$0x3] %vm270, %v575
  %s579 = scalar_lea.vmem %s66, 8
  %580 = vst.msk [vmem:[%s579 - $0x2] sm:$0xc] %vm273, %v575
  %v581 = vsel %vm86, %v575, 0
  %583 = vmatpush.msra.mxu0 0.0
  %584 = vmatpush.msra.mxu0 0.0
  %585 = vmatpush.msra.mxu0 0.0
  %586 = vmatpush.msra.mxu0 0.0
  %587 = vmatpush.msra.mxu0 0.0
  %588 = vmatpush.msra.mxu0 0.0
  %589 = vmatpush.msra.mxu0 0.0
  %590 = vmatpush.msra.mxu0 0.0
  %591 = vmatpush.msra.mxu0 0.0
  %592 = vmatpush.msra.mxu0 0.0
  %593 = vmatpush.msra.mxu0 0.0
  %594 = vmatpush.msra.mxu0 0.0
  %595 = vmatpush.msra.mxu0 %v162
  %596 = vmatpush.msra.mxu0 %v161
  %597 = vmatpush.msra.mxu0 %v160
  %598 = vmatpush.msra.mxu0 %v159
  %599 = vmatmul.f32.gmra.mxu0 %v581
  %v600 = vpop.f32.mrf.mxu0
  %v601 = vadd.f32 0.0, %v600
  %602 = vdwg.mxu0
  %v603 = vrot.slane %v572, 2
  %604 = vrot.lane.b32.xlu0 %v603, 32
  %v605 = vpop.permute.xlu0 %604
  %v606 = vsel %vm86, %v605, 0
  %608 = vmatpush.msra.mxu0 0.0
  %609 = vmatpush.msra.mxu0 0.0
  %610 = vmatpush.msra.mxu0 0.0
  %611 = vmatpush.msra.mxu0 0.0
  %612 = vmatpush.msra.mxu0 0.0
  %613 = vmatpush.msra.mxu0 0.0
  %614 = vmatpush.msra.mxu0 0.0
  %615 = vmatpush.msra.mxu0 0.0
  %616 = vmatpush.msra.mxu0 0.0
  %617 = vmatpush.msra.mxu0 0.0
  %618 = vmatpush.msra.mxu0 0.0
  %619 = vmatpush.msra.mxu0 0.0
  %620 = vmatpush.msra.mxu0 %v166
  %621 = vmatpush.msra.mxu0 %v165
  %622 = vmatpush.msra.mxu0 %v164
  %623 = vmatpush.msra.mxu0 %v163
  %624 = vmatmul.f32.gmra.mxu0 %v606
  %v625 = vpop.f32.mrf.mxu0
  %v626 = vadd.f32 0.0, %v625
  %627 = vdwg.mxu0
  %s628 = scalar_lea.vmem [#allocation2], 8
  %v629 = vld [vmem:[%s628] sm:$0x3]
  %v630 = vadd.f32 %v629, %v601
  %s631 = scalar_lea.vmem [#allocation3], 6
  %v632 = vld [vmem:[%s631] sm:$0x3]
  %v633 = vadd.f32 %v632, %v626
  %v635 = vrot.slane %v633, 6
  %v637 = vsel %vm223, %v630, %v635
  %v638 = vxor.u32 %v637, 2147483648
  %v639 = vmul.f32 %v638, 1.442695
  %v640 = vpow.pop %v639
  %v641 = vadd.f32 %v640, 1.0
  %v642 = vrcp.pop %v641
  %v643 = vmul.f32 %v641, %v642
  %v644 = vsub.f32 1.0, %v643
  %v645 = vmul.f32 %v642, %v644
  %v646 = vadd.f32 %v642, %v645
  %vm647 = vweird.f32 %v641
  %vm648 = vweird.f32 %v642
  %vm649 = vmor %vm647, %vm648
  %v650 = vsel %vm649, %v642, %v646
  %v651 = vand.u32 2147483647, %v641
  %vm652 = vcmp.eq.f32.partialorder %v651, 8.507059e+37
  %v653 = vand.u32 %v641, 2147483648
  %v654 = vor.u32 1.1754944e-38, %v653
  %v655 = vsel %vm652, %v654, %v650
  %v656 = vmul.f32 1.0, %v655
  %v657 = vtanh.pop %v637
  %v658 = vmul.f32 %v656, %v566
  %660 = vrot.lane.b32.xlu0 %v657, 64
  %v661 = vpop.permute.xlu0 %660
  %v663 = vmul.f32 %v656, %v661
  %665 = vrot.lane.b32.xlu0 %v663, 32
  %v666 = vpop.permute.xlu0 %665
  %v668 = vadd.f32 %v658, %v666
  %v669 = vtanh.pop %v668
  %671 = vrot.lane.b32.xlu0 %v669, 64
  %v672 = vpop.permute.xlu0 %671
  %v674 = vmul.f32 %v656, %v672
  %676 = vrot.lane.b32.xlu0 %v674, 32
  %v677 = vpop.permute.xlu0 %676
  %s679 = scalar_lea.vmem %s8, 8
  %680 = vst.msk [vmem:[%s679] sm:$0x3] %vm270, %v677
  %s681 = scalar_lea.vmem %s66, 6
  %682 = vst.msk [vmem:[%s681 - $0x2] sm:$0xc] %vm273, %v677
  %v683 = vsel %vm86, %v677, 0
  %685 = vmatpush.msra.mxu0 0.0
  %686 = vmatpush.msra.mxu0 0.0
  %687 = vmatpush.msra.mxu0 0.0
  %688 = vmatpush.msra.mxu0 0.0
  %689 = vmatpush.msra.mxu0 0.0
  %690 = vmatpush.msra.mxu0 0.0
  %691 = vmatpush.msra.mxu0 0.0
  %692 = vmatpush.msra.mxu0 0.0
  %693 = vmatpush.msra.mxu0 0.0
  %694 = vmatpush.msra.mxu0 0.0
  %695 = vmatpush.msra.mxu0 0.0
  %696 = vmatpush.msra.mxu0 0.0
  %697 = vmatpush.msra.mxu0 %v162
  %698 = vmatpush.msra.mxu0 %v161
  %699 = vmatpush.msra.mxu0 %v160
  %700 = vmatpush.msra.mxu0 %v159
  %701 = vmatmul.f32.gmra.mxu0 %v683
  %v702 = vpop.f32.mrf.mxu0
  %v703 = vadd.f32 0.0, %v702
  %704 = vdwg.mxu0
  %v705 = vrot.slane %v674, 2
  %706 = vrot.lane.b32.xlu0 %v705, 32
  %v707 = vpop.permute.xlu0 %706
  %v708 = vsel %vm86, %v707, 0
  %710 = vmatpush.msra.mxu0 0.0
  %711 = vmatpush.msra.mxu0 0.0
  %712 = vmatpush.msra.mxu0 0.0
  %713 = vmatpush.msra.mxu0 0.0
  %714 = vmatpush.msra.mxu0 0.0
  %715 = vmatpush.msra.mxu0 0.0
  %716 = vmatpush.msra.mxu0 0.0
  %717 = vmatpush.msra.mxu0 0.0
  %718 = vmatpush.msra.mxu0 0.0
  %719 = vmatpush.msra.mxu0 0.0
  %720 = vmatpush.msra.mxu0 0.0
  %721 = vmatpush.msra.mxu0 0.0
  %722 = vmatpush.msra.mxu0 %v166
  %723 = vmatpush.msra.mxu0 %v165
  %724 = vmatpush.msra.mxu0 %v164
  %725 = vmatpush.msra.mxu0 %v163
  %726 = vmatmul.f32.gmra.mxu0 %v708
  %v727 = vpop.f32.mrf.mxu0
  %v728 = vadd.f32 0.0, %v727
  %729 = vdwg.mxu0
  %s730 = scalar_lea.vmem [#allocation2], 10
  %v731 = vld [vmem:[%s730] sm:$0x3]
  %v732 = vadd.f32 %v731, %v703
  %s733 = scalar_lea.vmem [#allocation3], 4
  %v734 = vld [vmem:[%s733] sm:$0x3]
  %v735 = vadd.f32 %v734, %v728
  %v737 = vrot.slane %v735, 6
  %v739 = vsel %vm223, %v732, %v737
  %v740 = vxor.u32 %v739, 2147483648
  %v741 = vmul.f32 %v740, 1.442695
  %v742 = vpow.pop %v741
  %v743 = vadd.f32 %v742, 1.0
  %v744 = vrcp.pop %v743
  %v745 = vmul.f32 %v743, %v744
  %v746 = vsub.f32 1.0, %v745
  %v747 = vmul.f32 %v744, %v746
  %v748 = vadd.f32 %v744, %v747
  %vm749 = vweird.f32 %v743
  %vm750 = vweird.f32 %v744
  %vm751 = vmor %vm749, %vm750
  %v752 = vsel %vm751, %v744, %v748
  %v753 = vand.u32 2147483647, %v743
  %vm754 = vcmp.eq.f32.partialorder %v753, 8.507059e+37
  %v755 = vand.u32 %v743, 2147483648
  %v756 = vor.u32 1.1754944e-38, %v755
  %v757 = vsel %vm754, %v756, %v752
  %v758 = vmul.f32 1.0, %v757
  %v759 = vtanh.pop %v739
  %v760 = vmul.f32 %v758, %v668
  %762 = vrot.lane.b32.xlu0 %v759, 64
  %v763 = vpop.permute.xlu0 %762
  %v765 = vmul.f32 %v758, %v763
  %767 = vrot.lane.b32.xlu0 %v765, 32
  %v768 = vpop.permute.xlu0 %767
  %v770 = vadd.f32 %v760, %v768
  %v771 = vtanh.pop %v770
  %773 = vrot.lane.b32.xlu0 %v771, 64
  %v774 = vpop.permute.xlu0 %773
  %v776 = vmul.f32 %v758, %v774
  %778 = vrot.lane.b32.xlu0 %v776, 32
  %v779 = vpop.permute.xlu0 %778
  %s781 = scalar_lea.vmem %s8, 10
  %782 = vst.msk [vmem:[%s781] sm:$0x3] %vm270, %v779
  %s783 = scalar_lea.vmem %s66, 4
  %784 = vst.msk [vmem:[%s783 - $0x2] sm:$0xc] %vm273, %v779
  %v785 = vsel %vm86, %v779, 0
  %787 = vmatpush.msra.mxu0 0.0
  %788 = vmatpush.msra.mxu0 0.0
  %789 = vmatpush.msra.mxu0 0.0
  %790 = vmatpush.msra.mxu0 0.0
  %791 = vmatpush.msra.mxu0 0.0
  %792 = vmatpush.msra.mxu0 0.0
  %793 = vmatpush.msra.mxu0 0.0
  %794 = vmatpush.msra.mxu0 0.0
  %795 = vmatpush.msra.mxu0 0.0
  %796 = vmatpush.msra.mxu0 0.0
  %797 = vmatpush.msra.mxu0 0.0
  %798 = vmatpush.msra.mxu0 0.0
  %799 = vmatpush.msra.mxu0 %v162
  %800 = vmatpush.msra.mxu0 %v161
  %801 = vmatpush.msra.mxu0 %v160
  %802 = vmatpush.msra.mxu0 %v159
  %803 = vmatmul.f32.gmra.mxu0 %v785
  %v804 = vpop.f32.mrf.mxu0
  %v805 = vadd.f32 0.0, %v804
  %806 = vdwg.mxu0
  %v807 = vrot.slane %v776, 2
  %808 = vrot.lane.b32.xlu0 %v807, 32
  %v809 = vpop.permute.xlu0 %808
  %v810 = vsel %vm86, %v809, 0
  %812 = vmatpush.msra.mxu0 0.0
  %813 = vmatpush.msra.mxu0 0.0
  %814 = vmatpush.msra.mxu0 0.0
  %815 = vmatpush.msra.mxu0 0.0
  %816 = vmatpush.msra.mxu0 0.0
  %817 = vmatpush.msra.mxu0 0.0
  %818 = vmatpush.msra.mxu0 0.0
  %819 = vmatpush.msra.mxu0 0.0
  %820 = vmatpush.msra.mxu0 0.0
  %821 = vmatpush.msra.mxu0 0.0
  %822 = vmatpush.msra.mxu0 0.0
  %823 = vmatpush.msra.mxu0 0.0
  %824 = vmatpush.msra.mxu0 %v166
  %825 = vmatpush.msra.mxu0 %v165
  %826 = vmatpush.msra.mxu0 %v164
  %827 = vmatpush.msra.mxu0 %v163
  %828 = vmatmul.f32.gmra.mxu0 %v810
  %v829 = vpop.f32.mrf.mxu0
  %v830 = vadd.f32 0.0, %v829
  %831 = vdwg.mxu0
  %s832 = scalar_lea.vmem [#allocation2], 12
  %v833 = vld [vmem:[%s832] sm:$0x3]
  %v834 = vadd.f32 %v833, %v805
  %s835 = scalar_lea.vmem [#allocation3], 2
  %v836 = vld [vmem:[%s835] sm:$0x3]
  %v837 = vadd.f32 %v836, %v830
  %v839 = vrot.slane %v837, 6
  %v841 = vsel %vm223, %v834, %v839
  %v842 = vxor.u32 %v841, 2147483648
  %v843 = vmul.f32 %v842, 1.442695
  %v844 = vpow.pop %v843
  %v845 = vadd.f32 %v844, 1.0
  %v846 = vrcp.pop %v845
  %v847 = vmul.f32 %v845, %v846
  %v848 = vsub.f32 1.0, %v847
  %v849 = vmul.f32 %v846, %v848
  %v850 = vadd.f32 %v846, %v849
  %vm851 = vweird.f32 %v845
  %vm852 = vweird.f32 %v846
  %vm853 = vmor %vm851, %vm852
  %v854 = vsel %vm853, %v846, %v850
  %v855 = vand.u32 2147483647, %v845
  %vm856 = vcmp.eq.f32.partialorder %v855, 8.507059e+37
  %v857 = vand.u32 %v845, 2147483648
  %v858 = vor.u32 1.1754944e-38, %v857
  %v859 = vsel %vm856, %v858, %v854
  %v860 = vmul.f32 1.0, %v859
  %v861 = vtanh.pop %v841
  %v862 = vmul.f32 %v860, %v770
  %864 = vrot.lane.b32.xlu0 %v861, 64
  %v865 = vpop.permute.xlu0 %864
  %v867 = vmul.f32 %v860, %v865
  %869 = vrot.lane.b32.xlu0 %v867, 32
  %v870 = vpop.permute.xlu0 %869
  %v872 = vadd.f32 %v862, %v870
  %v873 = vtanh.pop %v872
  %875 = vrot.lane.b32.xlu0 %v873, 64
  %v876 = vpop.permute.xlu0 %875
  %v878 = vmul.f32 %v860, %v876
  %880 = vrot.lane.b32.xlu0 %v878, 32
  %v881 = vpop.permute.xlu0 %880
  %s883 = scalar_lea.vmem %s8, 12
  %884 = vst.msk [vmem:[%s883] sm:$0x3] %vm270, %v881
  %s885 = scalar_lea.vmem %s66, 2
  %886 = vst.msk [vmem:[%s885 - $0x2] sm:$0xc] %vm273, %v881
  %v887 = vsel %vm86, %v881, 0
  %889 = vmatpush.msra.mxu0 0.0
  %890 = vmatpush.msra.mxu0 0.0
  %891 = vmatpush.msra.mxu0 0.0
  %892 = vmatpush.msra.mxu0 0.0
  %893 = vmatpush.msra.mxu0 0.0
  %894 = vmatpush.msra.mxu0 0.0
  %895 = vmatpush.msra.mxu0 0.0
  %896 = vmatpush.msra.mxu0 0.0
  %897 = vmatpush.msra.mxu0 0.0
  %898 = vmatpush.msra.mxu0 0.0
  %899 = vmatpush.msra.mxu0 0.0
  %900 = vmatpush.msra.mxu0 0.0
  %901 = vmatpush.msra.mxu0 %v162
  %902 = vmatpush.msra.mxu0 %v161
  %903 = vmatpush.msra.mxu0 %v160
  %904 = vmatpush.msra.mxu0 %v159
  %905 = vmatmul.f32.gmra.mxu0 %v887
  %v906 = vpop.f32.mrf.mxu0
  %v907 = vadd.f32 0.0, %v906
  %908 = vdwg.mxu0
  %v909 = vrot.slane %v878, 2
  %910 = vrot.lane.b32.xlu0 %v909, 32
  %v911 = vpop.permute.xlu0 %910
  %v912 = vsel %vm86, %v911, 0
  %914 = vmatpush.msra.mxu0 0.0
  %915 = vmatpush.msra.mxu0 0.0
  %916 = vmatpush.msra.mxu0 0.0
  %917 = vmatpush.msra.mxu0 0.0
  %918 = vmatpush.msra.mxu0 0.0
  %919 = vmatpush.msra.mxu0 0.0
  %920 = vmatpush.msra.mxu0 0.0
  %921 = vmatpush.msra.mxu0 0.0
  %922 = vmatpush.msra.mxu0 0.0
  %923 = vmatpush.msra.mxu0 0.0
  %924 = vmatpush.msra.mxu0 0.0
  %925 = vmatpush.msra.mxu0 0.0
  %926 = vmatpush.msra.mxu0 %v166
  %927 = vmatpush.msra.mxu0 %v165
  %928 = vmatpush.msra.mxu0 %v164
  %929 = vmatpush.msra.mxu0 %v163
  %930 = vmatmul.f32.gmra.mxu0 %v912
  %v931 = vpop.f32.mrf.mxu0
  %v932 = vadd.f32 0.0, %v931
  %933 = vdwg.mxu0
  %s934 = scalar_lea.vmem [#allocation2], 14
  %v935 = vld [vmem:[%s934] sm:$0x3]
  %v936 = vadd.f32 %v935, %v907
  %v937 = vld [vmem:[#allocation3] sm:$0x3]
  %v938 = vadd.f32 %v937, %v932
  %v940 = vrot.slane %v938, 6
  %v942 = vsel %vm223, %v936, %v940
  %v943 = vxor.u32 %v942, 2147483648
  %v944 = vmul.f32 %v943, 1.442695
  %v945 = vpow.pop %v944
  %v946 = vadd.f32 %v945, 1.0
  %v947 = vrcp.pop %v946
  %v948 = vmul.f32 %v946, %v947
  %v949 = vsub.f32 1.0, %v948
  %v950 = vmul.f32 %v947, %v949
  %v951 = vadd.f32 %v947, %v950
  %vm952 = vweird.f32 %v946
  %vm953 = vweird.f32 %v947
  %vm954 = vmor %vm952, %vm953
  %v955 = vsel %vm954, %v947, %v951
  %v956 = vand.u32 2147483647, %v946
  %vm957 = vcmp.eq.f32.partialorder %v956, 8.507059e+37
  %v958 = vand.u32 %v946, 2147483648
  %v959 = vor.u32 1.1754944e-38, %v958
  %v960 = vsel %vm957, %v959, %v955
  %v961 = vmul.f32 1.0, %v960
  %v962 = vtanh.pop %v942
  %v963 = vmul.f32 %v961, %v872
  %965 = vrot.lane.b32.xlu0 %v962, 64
  %v966 = vpop.permute.xlu0 %965
  %v968 = vmul.f32 %v961, %v966
  %970 = vrot.lane.b32.xlu0 %v968, 32
  %v971 = vpop.permute.xlu0 %970
  %v973 = vadd.f32 %v963, %v971
  %v974 = vtanh.pop %v973
  %976 = vrot.lane.b32.xlu0 %v974, 64
  %v977 = vpop.permute.xlu0 %976
  %v979 = vmul.f32 %v961, %v977
  %981 = vrot.lane.b32.xlu0 %v979, 32
  %v982 = vpop.permute.xlu0 %981
  %s984 = scalar_lea.vmem %s8, 14
  %985 = vst.msk [vmem:[%s984] sm:$0x3] %vm270, %v982
  %986 = vst.msk [vmem:[%s66 - $0x2] sm:$0xc] %vm273, %v982
  %vm987 = vcmask 257024
  %988 = vst.msk [vmem:[%s10] sm:$0xf] %vm987, %v982
  %990 = vrot.lane.b32.xlu0 %v973, 96
  %v991 = vpop.permute.xlu0 %990
  %993 = vst.msk [vmem:[%s11] sm:$0xf] %vm987, %v991
  %s994 = ssub.s32 0, 0
  %s995 = smul.u32 2, %s994
  %p996 = scmp.lt.s32.totalorder %s995, 1
  %s997 = scalar_select %p996, %s995, 1
  %s998 = smul.addr %s997, 8
  %s999 = scalar_lea.vmem %s9, %s998
  // Predicated region
  $region38: #{_lambda_.2} parent=0 // pred_check
    _
  $region39: #{_lambda_.2} parent=0 // pred_check_branch
    %1001 = sbr.rel (0) target = $region41
  $region40: #{_lambda_.2} parent=0 // pred_region
    _
  $region41: #{_lambda_.2} parent=0 // pred_fallthru
    _
  // Predicated region
  $region42: #{_lambda_.2} parent=0 // pred_check
    _
  $region43: #{_lambda_.2} parent=0 // pred_check_branch
    %1003 = sbr.rel (0) target = $region45
  $region44: #{_lambda_.2} parent=0 // pred_region
    %s1004 = ssub.s32 0, 0
    %s1005 = smul.u32 2, %s1004
  $region45: #{_lambda_.2} parent=0 // pred_fallthru
    _
  // Predicated region
  $region46: #{_lambda_.2} parent=0 // pred_check
    _
  $region47: #{_lambda_.2} parent=0 // pred_check_branch
    %1007 = sbr.rel (0) target = $region49
  $region48: #{_lambda_.2} parent=0 // pred_region
    _
  $region49: #{_lambda_.2} parent=0 // pred_fallthru
    _
  // Predicated region
  $region50: #{_lambda_.2} parent=0 // pred_check
    _
  $region51: #{_lambda_.2} parent=0 // pred_check_branch
    %1009 = sbr.rel (0) target = $region53
  $region52: #{_lambda_.2} parent=0 // pred_region
    _
  $region53: #{_lambda_.2} parent=0 // pred_fallthru
    _
  // Predicated region
  $region54: #{_lambda_.2} parent=0 // pred_check
    _
  $region55: #{_lambda_.2} parent=0 // pred_check_branch
    %1011 = sbr.rel (0) target = $region57
  $region56: #{_lambda_.2} parent=0 // pred_region
    _
  $region57: #{_lambda_.2} parent=0 // pred_fallthru
    _
  // Predicated region
  $region58: #{_lambda_.2} parent=0 // pred_check
    _
  $region59: #{_lambda_.2} parent=0 // pred_check_branch
    %1013 = sbr.rel (0) target = $region61
  $region60: #{_lambda_.2} parent=0 // pred_region
    %s1014 = ssub.s32 0, 0
    %s1015 = smul.u32 2, %s1014
    %p1016 = scmp.lt.s32.totalorder %s1015, 1
    %s1017 = scalar_select %p1016, %s1015, 1
    %s1018 = smul.addr %s1017, 8
    %s1019 = scalar_lea.vmem %s9, %s1018
  $region61: #{_lambda_.2} parent=0 // pred_fallthru
    _
  // Predicated region
  $region62: #{_lambda_.2} parent=0 // pred_check
    _
  $region63: #{_lambda_.2} parent=0 // pred_check_branch
    %1021 = sbr.rel (0) target = $region65
  $region64: #{_lambda_.2} parent=0 // pred_region
    _
  $region65: #{_lambda_.2} parent=0 // pred_fallthru
    _
  // Predicated region
  $region66: #{_lambda_.2} parent=0 // pred_check
    _
  $region67: #{_lambda_.2} parent=0 // pred_check_branch
    %1023 = sbr.rel (0) target = $region69
  $region68: #{_lambda_.2} parent=0 // pred_region
    _
  $region69: #{_lambda_.2} parent=0 // pred_fallthru
    _

// kernel: _lambda_.3
$region0: #{_lambda_.3}
  #allocation0 [shape = 'u32[]', space=smem, size = 0x4, offset = 0x4, fixed_abs, tag = 'smem constant byte address 0x4 - core index']
  #allocation1 [shape = 'u32[72,128]{1,0:T(1,128)}', space=vmem, size = 0x9000, scoped, tag = 'internal scratch']
  #allocation2 [shape = 'f32[16,128]{1,0:T(8,128)}', space=vmem, size = 0x2000, scoped, tag = 'scratch operand']
  #allocation3 [shape = 'f32[16,128]{1,0:T(8,128)}', space=vmem, size = 0x2000, scoped, tag = 'scratch operand']
  %s0 = inlined_call_operand.vmem [shape: f32[16,64], index: 0, kind: input, shape index: {}, may-alias: {0,1}]
  %s1 = inlined_call_operand.vmem [shape: f32[16,64], index: 1, kind: input, shape index: {}, may-alias: {0,1}]
  %s2 = inlined_call_operand.vmem [shape: f32[64,128], index: 2, kind: input, shape index: {}]
  %s3 = inlined_call_operand.vmem [shape: f32[64,128], index: 3, kind: input, shape index: {}]
  %s4 = inlined_call_operand.vmem [shape: f32[32,128], index: 4, kind: input, shape index: {}]
  %s5 = inlined_call_operand.vmem [shape: f32[32,128], index: 5, kind: input, shape index: {}]
  %s6 = inlined_call_operand.vmem [shape: f32[1,128], index: 6, kind: input, shape index: {}]
  %s7 = inlined_call_operand.vmem [shape: f32[1,128], index: 7, kind: input, shape index: {}]
  %s8 = inlined_call_operand.hbm [shape: f32[16,32], index: 8, kind: output, shape index: {0}]
  %s9 = inlined_call_operand.hbm [shape: f32[16,32], index: 9, kind: output, shape index: {1}]
  %s10 = inlined_call_operand.vmem [shape: f32[4,32], index: 10, kind: output, shape index: {2}]
  %s11 = inlined_call_operand.vmem [shape: f32[4,32], index: 11, kind: output, shape index: {3}]
  %12 = xla_tuple %s8, %s9, %s10, %s11
  %s13 = sld [smem:[#allocation0]]
  $region70: #{_lambda_.3} parent=0
    _
  %s15 = ssub.s32 1, %s13
  %s16 = scalar_select 0, %s15, %s13
  $region1: #{_lambda_.3} parent=0
    #allocation4 [shape = 'u8[8192]{0}', space=vmem, size = 0x2000, scoped, tag = 'output window, operand 0, single buffered']
    #allocation5 [shape = 's32[1]{0}', space=sflag, size = 0x4, scoped, tag = 'scoped memory for _lambda_.3']
    #allocation6 [shape = 'u8[8192]{0}', space=vmem, size = 0x2000, scoped, tag = 'output window, operand 1, single buffered']
    #allocation7 [shape = 's32[1]{0}', space=sflag, size = 0x4, scoped, tag = 'scoped memory for _lambda_.3']
    %17 = vsyncpa [#allocation5], 0
    %18 = vsyncpa [#allocation7], 0
    // Predicated region
    $region2: #{_lambda_.3} parent=1 // pred_check
      _
    $region3: #{_lambda_.3} parent=1 // pred_check_branch
      %20 = sbr.rel (0) target = $region5
    $region4: #{_lambda_.3} parent=1 // pred_region
      _
    $region5: #{_lambda_.3} parent=1 // pred_fallthru
      _
    // Predicated region
    $region6: #{_lambda_.3} parent=1 // pred_check
      _
    $region7: #{_lambda_.3} parent=1 // pred_check_branch
      %22 = sbr.rel (0) target = $region9
    $region8: #{_lambda_.3} parent=1 // pred_region
      %s23 = ssub.s32 0, 0
      %s24 = smul.u32 2, %s23
      %p25 = scmp.lt.s32.totalorder %s24, 1
      %s26 = scalar_select %p25, %s24, 1
      %s27 = smul.addr %s26, 8
      %s28 = scalar_lea.vmem %s1, %s27
      %s29 = ssub.s32 0, 0
      %s30 = smul.u32 2, %s29
    $region9: #{_lambda_.3} parent=1 // pred_fallthru
      _
    // Predicated region
    $region10: #{_lambda_.3} parent=1 // pred_check
      _
    $region11: #{_lambda_.3} parent=1 // pred_check_branch
      %32 = sbr.rel (0) target = $region13
    $region12: #{_lambda_.3} parent=1 // pred_region
      _
    $region13: #{_lambda_.3} parent=1 // pred_fallthru
      _
    // Predicated region
    $region14: #{_lambda_.3} parent=1 // pred_check
      _
    $region15: #{_lambda_.3} parent=1 // pred_check_branch
      %34 = sbr.rel (0) target = $region17
    $region16: #{_lambda_.3} parent=1 // pred_region
      _
    $region17: #{_lambda_.3} parent=1 // pred_fallthru
      _
    // Predicated region
    $region18: #{_lambda_.3} parent=1 // pred_check
      _
    $region19: #{_lambda_.3} parent=1 // pred_check_branch
      %36 = sbr.rel (0) target = $region21
    $region20: #{_lambda_.3} parent=1 // pred_region
      _
    $region21: #{_lambda_.3} parent=1 // pred_fallthru
      _
    // Predicated region
    $region22: #{_lambda_.3} parent=1 // pred_check
      _
    $region23: #{_lambda_.3} parent=1 // pred_check_branch
      %38 = sbr.rel (0) target = $region25
    $region24: #{_lambda_.3} parent=1 // pred_region
      _
    $region25: #{_lambda_.3} parent=1 // pred_fallthru
      _
    // Predicated region
    $region26: #{_lambda_.3} parent=1 // pred_check
      _
    $region27: #{_lambda_.3} parent=1 // pred_check_branch
      %40 = sbr.rel (0) target = $region29
    $region28: #{_lambda_.3} parent=1 // pred_region
      _
    $region29: #{_lambda_.3} parent=1 // pred_fallthru
      _
    // Predicated region
    $region30: #{_lambda_.3} parent=1 // pred_check
      _
    $region31: #{_lambda_.3} parent=1 // pred_check_branch
      %42 = sbr.rel (0) target = $region33
    $region32: #{_lambda_.3} parent=1 // pred_region
      _
    $region33: #{_lambda_.3} parent=1 // pred_fallthru
      _
    %s43 = ssub.s32 0, 0
    %s44 = smul.u32 2, %s43
    %p45 = scmp.lt.s32.totalorder %s44, 1
    %s46 = scalar_select %p45, %s44, 1
    %s47 = smul.addr %s46, 8
    %s48 = scalar_lea.vmem %s1, %s47
    %s49 = ssub.s32 0, 0
    %s50 = smul.u32 2, %s49
    %p51 = scmp.lt.s32.totalorder %s50, 1
    %s52 = scalar_select %p51, %s50, 1
    %s53 = smul.addr %s52, 8
    %s54 = scalar_lea.vmem %s1, %s53
    %s55 = ssub.s32 0, 0
    %s56 = smul.u32 2, %s55
    %s57 = ssub.s32 0, 0
    %s58 = smul.u32 2, %s57
    %p59 = scmp.eq.s32.totalorder 0, 0
    // Predicated region
    $region34: #{_lambda_.3} parent=1 // pred_check
      %p60 = pneg %p59
    $region35: #{_lambda_.3} parent=1 // pred_check_branch
      %62 = sbr.rel (%p60) target = $region37
    $region36: #{_lambda_.3} parent=1 // pred_region
      %vm63 = vcmask 257024
      %64 = vst.msk [vmem:[%s10] sm:$0xf] %vm63, 0.0
      %65 = vst.msk [vmem:[%s11] sm:$0xf] %vm63, 0.0
    $region37: #{_lambda_.3} parent=1 // pred_fallthru
      _
    %v66 = vld [vmem:[%s0] sm:$0xff]
    %v67 = vld [vmem:[%s0 + $0x8] sm:$0xff]
    %v68 = vld [vmem:[%s2] sm:$0xff]
    %v69 = vld [vmem:[%s2 + $0x8] sm:$0xff]
    %v70 = vld [vmem:[%s2 + $0x10] sm:$0xff]
    %v71 = vld [vmem:[%s2 + $0x18] sm:$0xff]
    %v72 = vld [vmem:[%s2 + $0x20] sm:$0xff]
    %v73 = vld [vmem:[%s2 + $0x28] sm:$0xff]
    %v74 = vld [vmem:[%s2 + $0x30] sm:$0xff]
    %v75 = vld [vmem:[%s2 + $0x38] sm:$0xff]
    %v76 = vld [vmem:[%s6] sm:$0x1]
    %v78 = vperm.slane %v76, 0
    %vm80 = vcmask 523264
    %v82 = vsel %vm80, %v66, 0
    %v85 = vsel %vm80, %v67, 0
    %87 = vmatpush.msra.mxu0 0.0
    %88 = vmatpush.msra.mxu0 0.0
    %89 = vmatpush.msra.mxu0 0.0
    %90 = vmatpush.msra.mxu0 0.0
    %91 = vmatpush.msra.mxu0 0.0
    %92 = vmatpush.msra.mxu0 0.0
    %93 = vmatpush.msra.mxu0 0.0
    %94 = vmatpush.msra.mxu0 0.0
    %95 = vmatpush.msra.mxu0 %v75
    %96 = vmatpush.msra.mxu0 %v74
    %97 = vmatpush.msra.mxu0 %v73
    %98 = vmatpush.msra.mxu0 %v72
    %99 = vmatpush.msra.mxu0 %v71
    %100 = vmatpush.msra.mxu0 %v70
    %101 = vmatpush.msra.mxu0 %v69
    %102 = vmatpush.msra.mxu0 %v68
    %103 = vmatmul.f32.gmra.mxu0 %v82
    %v104 = vpop.f32.mrf.mxu0
    %v105 = vadd.f32 %v78, %v104
    %106 = vmatmul.f32.gmra.mxu0 %v85
    %v107 = vpop.f32.mrf.mxu0
    %v108 = vadd.f32 %v78, %v107
    %109 = vdwg.mxu0
    %110 = vst [vmem:[#allocation2] sm:$0xff] %v105
    %111 = vst [vmem:[#allocation2 + $0x8] sm:$0xff] %v108
    %v112 = vld [vmem:[%s54] sm:$0xff]
    %v113 = vld [vmem:[%s54 + $0x8] sm:$0xff]
    %v114 = vld [vmem:[%s3] sm:$0xff]
    %v115 = vld [vmem:[%s3 + $0x8] sm:$0xff]
    %v116 = vld [vmem:[%s3 + $0x10] sm:$0xff]
    %v117 = vld [vmem:[%s3 + $0x18] sm:$0xff]
    %v118 = vld [vmem:[%s3 + $0x20] sm:$0xff]
    %v119 = vld [vmem:[%s3 + $0x28] sm:$0xff]
    %v120 = vld [vmem:[%s3 + $0x30] sm:$0xff]
    %v121 = vld [vmem:[%s3 + $0x38] sm:$0xff]
    %v122 = vld [vmem:[%s7] sm:$0x1]
    %v124 = vperm.slane %v122, 0
    %v127 = vsel %vm80, %v112, 0
    %v130 = vsel %vm80, %v113, 0
    %132 = vmatpush.msra.mxu0 0.0
    %133 = vmatpush.msra.mxu0 0.0
    %134 = vmatpush.msra.mxu0 0.0
    %135 = vmatpush.msra.mxu0 0.0
    %136 = vmatpush.msra.mxu0 0.0
    %137 = vmatpush.msra.mxu0 0.0
    %138 = vmatpush.msra.mxu0 0.0
    %139 = vmatpush.msra.mxu0 0.0
    %140 = vmatpush.msra.mxu0 %v121
    %141 = vmatpush.msra.mxu0 %v120
    %142 = vmatpush.msra.mxu0 %v119
    %143 = vmatpush.msra.mxu0 %v118
    %144 = vmatpush.msra.mxu0 %v117
    %145 = vmatpush.msra.mxu0 %v116
    %146 = vmatpush.msra.mxu0 %v115
    %147 = vmatpush.msra.mxu0 %v114
    %148 = vmatmul.f32.gmra.mxu0 %v127
    %v149 = vpop.f32.mrf.mxu0
    %v150 = vadd.f32 %v124, %v149
    %151 = vmatmul.f32.gmra.mxu0 %v130
    %v152 = vpop.f32.mrf.mxu0
    %v153 = vadd.f32 %v124, %v152
    %154 = vdwg.mxu0
    %155 = vst [vmem:[#allocation3] sm:$0xff] %v150
    %156 = vst [vmem:[#allocation3 + $0x8] sm:$0xff] %v153
    %v157 = vld [vmem:[%s4] sm:$0xff]
    %v158 = vld [vmem:[%s4 + $0x8] sm:$0xff]
    %v159 = vld [vmem:[%s4 + $0x10] sm:$0xff]
    %v160 = vld [vmem:[%s4 + $0x18] sm:$0xff]
    %v161 = vld [vmem:[%s5] sm:$0xff]
    %v162 = vld [vmem:[%s5 + $0x8] sm:$0xff]
    %v163 = vld [vmem:[%s5 + $0x10] sm:$0xff]
    %v164 = vld [vmem:[%s5 + $0x18] sm:$0xff]
    %v165 = vld [vmem:[%s10] sm:$0xf]
    %v166 = vld [vmem:[%s11] sm:$0xf]
    %vm167 = vcmask 261120
    %v169 = vsel %vm167, %v165, 0
    %171 = vmatpush.msra.mxu0 0.0
    %172 = vmatpush.msra.mxu0 0.0
    %173 = vmatpush.msra.mxu0 0.0
    %174 = vmatpush.msra.mxu0 0.0
    %175 = vmatpush.msra.mxu0 0.0
    %176 = vmatpush.msra.mxu0 0.0
    %177 = vmatpush.msra.mxu0 0.0
    %178 = vmatpush.msra.mxu0 0.0
    %179 = vmatpush.msra.mxu0 0.0
    %180 = vmatpush.msra.mxu0 0.0
    %181 = vmatpush.msra.mxu0 0.0
    %182 = vmatpush.msra.mxu0 0.0
    %183 = vmatpush.msra.mxu0 %v160
    %184 = vmatpush.msra.mxu0 %v159
    %185 = vmatpush.msra.mxu0 %v158
    %186 = vmatpush.msra.mxu0 %v157
    %187 = vmatmul.f32.gmra.mxu0 %v169
    %v188 = vpop.f32.mrf.mxu0
    %v189 = vadd.f32 0.0, %v188
    %190 = vdwg.mxu0
    %v191 = vrot.slane %v165, 2
    %v192 = vsel %vm167, %v191, 0
    %194 = vmatpush.msra.mxu0 0.0
    %195 = vmatpush.msra.mxu0 0.0
    %196 = vmatpush.msra.mxu0 0.0
    %197 = vmatpush.msra.mxu0 0.0
    %198 = vmatpush.msra.mxu0 0.0
    %199 = vmatpush.msra.mxu0 0.0
    %200 = vmatpush.msra.mxu0 0.0
    %201 = vmatpush.msra.mxu0 0.0
    %202 = vmatpush.msra.mxu0 0.0
    %203 = vmatpush.msra.mxu0 0.0
    %204 = vmatpush.msra.mxu0 0.0
    %205 = vmatpush.msra.mxu0 0.0
    %206 = vmatpush.msra.mxu0 %v164
    %207 = vmatpush.msra.mxu0 %v163
    %208 = vmatpush.msra.mxu0 %v162
    %209 = vmatpush.msra.mxu0 %v161
    %210 = vmatmul.f32.gmra.mxu0 %v192
    %v211 = vpop.f32.mrf.mxu0
    %v212 = vadd.f32 0.0, %v211
    %213 = vdwg.mxu0
    %v214 = vld [vmem:[#allocation2] sm:$0x3]
    %v215 = vadd.f32 %v214, %v189
    %s216 = scalar_lea.vmem [#allocation3], 14
    %v217 = vld [vmem:[%s216] sm:$0x3]
    %v218 = vadd.f32 %v217, %v212
    %v220 = vrot.slane %v218, 6
    %vm222 = vcmask 1041408
    %v223 = vsel %vm222, %v215, %v220
    %v224 = vxor.u32 %v223, 2147483648
    %v225 = vmul.f32 %v224, 1.442695
    %v226 = vpow.pop %v225
    %v227 = vadd.f32 %v226, 1.0
    %v228 = vrcp.pop %v227
    %v229 = vmul.f32 %v227, %v228
    %v230 = vsub.f32 1.0, %v229
    %v231 = vmul.f32 %v228, %v230
    %v232 = vadd.f32 %v228, %v231
    %vm233 = vweird.f32 %v227
    %vm234 = vweird.f32 %v228
    %vm235 = vmor %vm233, %vm234
    %v236 = vsel %vm235, %v228, %v232
    %v237 = vand.u32 2147483647, %v227
    %vm238 = vcmp.eq.f32.partialorder %v237, 8.507059e+37
    %v239 = vand.u32 %v227, 2147483648
    %v240 = vor.u32 1.1754944e-38, %v239
    %v241 = vsel %vm238, %v240, %v236
    %v242 = vmul.f32 1.0, %v241
    %v243 = vtanh.pop %v223
    %245 = vrot.lane.b32.xlu0 %v166, 32
    %v246 = vpop.permute.xlu0 %245
    %v248 = vmul.f32 %v242, %v246
    %250 = vrot.lane.b32.xlu0 %v243, 64
    %v251 = vpop.permute.xlu0 %250
    %v253 = vmul.f32 %v242, %v251
    %255 = vrot.lane.b32.xlu0 %v253, 32
    %v256 = vpop.permute.xlu0 %255
    %v258 = vadd.f32 %v248, %v256
    %v259 = vtanh.pop %v258
    %261 = vrot.lane.b32.xlu0 %v259, 64
    %v262 = vpop.permute.xlu0 %261
    %v264 = vmul.f32 %v242, %v262
    %266 = vrot.lane.b32.xlu0 %v264, 32
    %v267 = vpop.permute.xlu0 %266
    %vm269 = vcmask 254976
    %270 = vst.msk [vmem:[#allocation4] sm:$0x3] %vm269, %v267
    %s271 = scalar_lea.vmem [#allocation6], 14
    %vm272 = vcmask 257026
    %273 = vst.msk [vmem:[%s271 - $0x2] sm:$0xc] %vm272, %v267
    %v274 = vsel %vm167, %v267, 0
    %276 = vmatpush.msra.mxu0 0.0
    %277 = vmatpush.msra.mxu0 0.0
    %278 = vmatpush.msra.mxu0 0.0
    %279 = vmatpush.msra.mxu0 0.0
    %280 = vmatpush.msra.mxu0 0.0
    %281 = vmatpush.msra.mxu0 0.0
    %282 = vmatpush.msra.mxu0 0.0
    %283 = vmatpush.msra.mxu0 0.0
    %284 = vmatpush.msra.mxu0 0.0
    %285 = vmatpush.msra.mxu0 0.0
    %286 = vmatpush.msra.mxu0 0.0
    %287 = vmatpush.msra.mxu0 0.0
    %288 = vmatpush.msra.mxu0 %v160
    %289 = vmatpush.msra.mxu0 %v159
    %290 = vmatpush.msra.mxu0 %v158
    %291 = vmatpush.msra.mxu0 %v157
    %292 = vmatmul.f32.gmra.mxu0 %v274
    %v293 = vpop.f32.mrf.mxu0
    %v294 = vadd.f32 0.0, %v293
    %295 = vdwg.mxu0
    %v296 = vrot.slane %v264, 2
    %297 = vrot.lane.b32.xlu0 %v296, 32
    %v298 = vpop.permute.xlu0 %297
    %v299 = vsel %vm167, %v298, 0
    %301 = vmatpush.msra.mxu0 0.0
    %302 = vmatpush.msra.mxu0 0.0
    %303 = vmatpush.msra.mxu0 0.0
    %304 = vmatpush.msra.mxu0 0.0
    %305 = vmatpush.msra.mxu0 0.0
    %306 = vmatpush.msra.mxu0 0.0
    %307 = vmatpush.msra.mxu0 0.0
    %308 = vmatpush.msra.mxu0 0.0
    %309 = vmatpush.msra.mxu0 0.0
    %310 = vmatpush.msra.mxu0 0.0
    %311 = vmatpush.msra.mxu0 0.0
    %312 = vmatpush.msra.mxu0 0.0
    %313 = vmatpush.msra.mxu0 %v164
    %314 = vmatpush.msra.mxu0 %v163
    %315 = vmatpush.msra.mxu0 %v162
    %316 = vmatpush.msra.mxu0 %v161
    %317 = vmatmul.f32.gmra.mxu0 %v299
    %v318 = vpop.f32.mrf.mxu0
    %v319 = vadd.f32 0.0, %v318
    %320 = vdwg.mxu0
    %s321 = scalar_lea.vmem [#allocation2], 2
    %v322 = vld [vmem:[%s321] sm:$0x3]
    %v323 = vadd.f32 %v322, %v294
    %s324 = scalar_lea.vmem [#allocation3], 12
    %v325 = vld [vmem:[%s324] sm:$0x3]
    %v326 = vadd.f32 %v325, %v319
    %v328 = vrot.slane %v326, 6
    %v330 = vsel %vm222, %v323, %v328
    %v331 = vxor.u32 %v330, 2147483648
    %v332 = vmul.f32 %v331, 1.442695
    %v333 = vpow.pop %v332
    %v334 = vadd.f32 %v333, 1.0
    %v335 = vrcp.pop %v334
    %v336 = vmul.f32 %v334, %v335
    %v337 = vsub.f32 1.0, %v336
    %v338 = vmul.f32 %v335, %v337
    %v339 = vadd.f32 %v335, %v338
    %vm340 = vweird.f32 %v334
    %vm341 = vweird.f32 %v335
    %vm342 = vmor %vm340, %vm341
    %v343 = vsel %vm342, %v335, %v339
    %v344 = vand.u32 2147483647, %v334
    %vm345 = vcmp.eq.f32.partialorder %v344, 8.507059e+37
    %v346 = vand.u32 %v334, 2147483648
    %v347 = vor.u32 1.1754944e-38, %v346
    %v348 = vsel %vm345, %v347, %v343
    %v349 = vmul.f32 1.0, %v348
    %v350 = vtanh.pop %v330
    %v351 = vmul.f32 %v349, %v258
    %353 = vrot.lane.b32.xlu0 %v350, 64
    %v354 = vpop.permute.xlu0 %353
    %v356 = vmul.f32 %v349, %v354
    %358 = vrot.lane.b32.xlu0 %v356, 32
    %v359 = vpop.permute.xlu0 %358
    %v361 = vadd.f32 %v351, %v359
    %v362 = vtanh.pop %v361
    %364 = vrot.lane.b32.xlu0 %v362, 64
    %v365 = vpop.permute.xlu0 %364
    %v367 = vmul.f32 %v349, %v365
    %369 = vrot.lane.b32.xlu0 %v367, 32
    %v370 = vpop.permute.xlu0 %369
    %s372 = scalar_lea.vmem [#allocation4], 2
    %373 = vst.msk [vmem:[%s372] sm:$0x3] %vm269, %v370
    %s374 = scalar_lea.vmem [#allocation6], 12
    %375 = vst.msk [vmem:[%s374 - $0x2] sm:$0xc] %vm272, %v370
    %v376 = vsel %vm167, %v370, 0
    %378 = vmatpush.msra.mxu0 0.0
    %379 = vmatpush.msra.mxu0 0.0
    %380 = vmatpush.msra.mxu0 0.0
    %381 = vmatpush.msra.mxu0 0.0
    %382 = vmatpush.msra.mxu0 0.0
    %383 = vmatpush.msra.mxu0 0.0
    %384 = vmatpush.msra.mxu0 0.0
    %385 = vmatpush.msra.mxu0 0.0
    %386 = vmatpush.msra.mxu0 0.0
    %387 = vmatpush.msra.mxu0 0.0
    %388 = vmatpush.msra.mxu0 0.0
    %389 = vmatpush.msra.mxu0 0.0
    %390 = vmatpush.msra.mxu0 %v160
    %391 = vmatpush.msra.mxu0 %v159
    %392 = vmatpush.msra.mxu0 %v158
    %393 = vmatpush.msra.mxu0 %v157
    %394 = vmatmul.f32.gmra.mxu0 %v376
    %v395 = vpop.f32.mrf.mxu0
    %v396 = vadd.f32 0.0, %v395
    %397 = vdwg.mxu0
    %v398 = vrot.slane %v367, 2
    %399 = vrot.lane.b32.xlu0 %v398, 32
    %v400 = vpop.permute.xlu0 %399
    %v401 = vsel %vm167, %v400, 0
    %403 = vmatpush.msra.mxu0 0.0
    %404 = vmatpush.msra.mxu0 0.0
    %405 = vmatpush.msra.mxu0 0.0
    %406 = vmatpush.msra.mxu0 0.0
    %407 = vmatpush.msra.mxu0 0.0
    %408 = vmatpush.msra.mxu0 0.0
    %409 = vmatpush.msra.mxu0 0.0
    %410 = vmatpush.msra.mxu0 0.0
    %411 = vmatpush.msra.mxu0 0.0
    %412 = vmatpush.msra.mxu0 0.0
    %413 = vmatpush.msra.mxu0 0.0
    %414 = vmatpush.msra.mxu0 0.0
    %415 = vmatpush.msra.mxu0 %v164
    %416 = vmatpush.msra.mxu0 %v163
    %417 = vmatpush.msra.mxu0 %v162
    %418 = vmatpush.msra.mxu0 %v161
    %419 = vmatmul.f32.gmra.mxu0 %v401
    %v420 = vpop.f32.mrf.mxu0
    %v421 = vadd.f32 0.0, %v420
    %422 = vdwg.mxu0
    %s423 = scalar_lea.vmem [#allocation2], 4
    %v424 = vld [vmem:[%s423] sm:$0x3]
    %v425 = vadd.f32 %v424, %v396
    %s426 = scalar_lea.vmem [#allocation3], 10
    %v427 = vld [vmem:[%s426] sm:$0x3]
    %v428 = vadd.f32 %v427, %v421
    %v430 = vrot.slane %v428, 6
    %v432 = vsel %vm222, %v425, %v430
    %v433 = vxor.u32 %v432, 2147483648
    %v434 = vmul.f32 %v433, 1.442695
    %v435 = vpow.pop %v434
    %v436 = vadd.f32 %v435, 1.0
    %v437 = vrcp.pop %v436
    %v438 = vmul.f32 %v436, %v437
    %v439 = vsub.f32 1.0, %v438
    %v440 = vmul.f32 %v437, %v439
    %v441 = vadd.f32 %v437, %v440
    %vm442 = vweird.f32 %v436
    %vm443 = vweird.f32 %v437
    %vm444 = vmor %vm442, %vm443
    %v445 = vsel %vm444, %v437, %v441
    %v446 = vand.u32 2147483647, %v436
    %vm447 = vcmp.eq.f32.partialorder %v446, 8.507059e+37
    %v448 = vand.u32 %v436, 2147483648
    %v449 = vor.u32 1.1754944e-38, %v448
    %v450 = vsel %vm447, %v449, %v445
    %v451 = vmul.f32 1.0, %v450
    %v452 = vtanh.pop %v432
    %v453 = vmul.f32 %v451, %v361
    %455 = vrot.lane.b32.xlu0 %v452, 64
    %v456 = vpop.permute.xlu0 %455
    %v458 = vmul.f32 %v451, %v456
    %460 = vrot.lane.b32.xlu0 %v458, 32
    %v461 = vpop.permute.xlu0 %460
    %v463 = vadd.f32 %v453, %v461
    %v464 = vtanh.pop %v463
    %466 = vrot.lane.b32.xlu0 %v464, 64
    %v467 = vpop.permute.xlu0 %466
    %v469 = vmul.f32 %v451, %v467
    %471 = vrot.lane.b32.xlu0 %v469, 32
    %v472 = vpop.permute.xlu0 %471
    %s474 = scalar_lea.vmem [#allocation4], 4
    %475 = vst.msk [vmem:[%s474] sm:$0x3] %vm269, %v472
    %s476 = scalar_lea.vmem [#allocation6], 10
    %477 = vst.msk [vmem:[%s476 - $0x2] sm:$0xc] %vm272, %v472
    %v478 = vsel %vm167, %v472, 0
    %480 = vmatpush.msra.mxu0 0.0
    %481 = vmatpush.msra.mxu0 0.0
    %482 = vmatpush.msra.mxu0 0.0
    %483 = vmatpush.msra.mxu0 0.0
    %484 = vmatpush.msra.mxu0 0.0
    %485 = vmatpush.msra.mxu0 0.0
    %486 = vmatpush.msra.mxu0 0.0
    %487 = vmatpush.msra.mxu0 0.0
    %488 = vmatpush.msra.mxu0 0.0
    %489 = vmatpush.msra.mxu0 0.0
    %490 = vmatpush.msra.mxu0 0.0
    %491 = vmatpush.msra.mxu0 0.0
    %492 = vmatpush.msra.mxu0 %v160
    %493 = vmatpush.msra.mxu0 %v159
    %494 = vmatpush.msra.mxu0 %v158
    %495 = vmatpush.msra.mxu0 %v157
    %496 = vmatmul.f32.gmra.mxu0 %v478
    %v497 = vpop.f32.mrf.mxu0
    %v498 = vadd.f32 0.0, %v497
    %499 = vdwg.mxu0
    %v500 = vrot.slane %v469, 2
    %501 = vrot.lane.b32.xlu0 %v500, 32
    %v502 = vpop.permute.xlu0 %501
    %v503 = vsel %vm167, %v502, 0
    %505 = vmatpush.msra.mxu0 0.0
    %506 = vmatpush.msra.mxu0 0.0
    %507 = vmatpush.msra.mxu0 0.0
    %508 = vmatpush.msra.mxu0 0.0
    %509 = vmatpush.msra.mxu0 0.0
    %510 = vmatpush.msra.mxu0 0.0
    %511 = vmatpush.msra.mxu0 0.0
    %512 = vmatpush.msra.mxu0 0.0
    %513 = vmatpush.msra.mxu0 0.0
    %514 = vmatpush.msra.mxu0 0.0
    %515 = vmatpush.msra.mxu0 0.0
    %516 = vmatpush.msra.mxu0 0.0
    %517 = vmatpush.msra.mxu0 %v164
    %518 = vmatpush.msra.mxu0 %v163
    %519 = vmatpush.msra.mxu0 %v162
    %520 = vmatpush.msra.mxu0 %v161
    %521 = vmatmul.f32.gmra.mxu0 %v503
    %v522 = vpop.f32.mrf.mxu0
    %v523 = vadd.f32 0.0, %v522
    %524 = vdwg.mxu0
    %s525 = scalar_lea.vmem [#allocation2], 6
    %v526 = vld [vmem:[%s525] sm:$0x3]
    %v527 = vadd.f32 %v526, %v498
    %s528 = scalar_lea.vmem [#allocation3], 8
    %v529 = vld [vmem:[%s528] sm:$0x3]
    %v530 = vadd.f32 %v529, %v523
    %v532 = vrot.slane %v530, 6
    %v534 = vsel %vm222, %v527, %v532
    %v535 = vxor.u32 %v534, 2147483648
    %v536 = vmul.f32 %v535, 1.442695
    %v537 = vpow.pop %v536
    %v538 = vadd.f32 %v537, 1.0
    %v539 = vrcp.pop %v538
    %v540 = vmul.f32 %v538, %v539
    %v541 = vsub.f32 1.0, %v540
    %v542 = vmul.f32 %v539, %v541
    %v543 = vadd.f32 %v539, %v542
    %vm544 = vweird.f32 %v538
    %vm545 = vweird.f32 %v539
    %vm546 = vmor %vm544, %vm545
    %v547 = vsel %vm546, %v539, %v543
    %v548 = vand.u32 2147483647, %v538
    %vm549 = vcmp.eq.f32.partialorder %v548, 8.507059e+37
    %v550 = vand.u32 %v538, 2147483648
    %v551 = vor.u32 1.1754944e-38, %v550
    %v552 = vsel %vm549, %v551, %v547
    %v553 = vmul.f32 1.0, %v552
    %v554 = vtanh.pop %v534
    %v555 = vmul.f32 %v553, %v463
    %557 = vrot.lane.b32.xlu0 %v554, 64
    %v558 = vpop.permute.xlu0 %557
    %v560 = vmul.f32 %v553, %v558
    %562 = vrot.lane.b32.xlu0 %v560, 32
    %v563 = vpop.permute.xlu0 %562
    %v565 = vadd.f32 %v555, %v563
    %v566 = vtanh.pop %v565
    %568 = vrot.lane.b32.xlu0 %v566, 64
    %v569 = vpop.permute.xlu0 %568
    %v571 = vmul.f32 %v553, %v569
    %573 = vrot.lane.b32.xlu0 %v571, 32
    %v574 = vpop.permute.xlu0 %573
    %s576 = scalar_lea.vmem [#allocation4], 6
    %577 = vst.msk [vmem:[%s576] sm:$0x3] %vm269, %v574
    %s578 = scalar_lea.vmem [#allocation6], 8
    %579 = vst.msk [vmem:[%s578 - $0x2] sm:$0xc] %vm272, %v574
    %v580 = vsel %vm167, %v574, 0
    %582 = vmatpush.msra.mxu0 0.0
    %583 = vmatpush.msra.mxu0 0.0
    %584 = vmatpush.msra.mxu0 0.0
    %585 = vmatpush.msra.mxu0 0.0
    %586 = vmatpush.msra.mxu0 0.0
    %587 = vmatpush.msra.mxu0 0.0
    %588 = vmatpush.msra.mxu0 0.0
    %589 = vmatpush.msra.mxu0 0.0
    %590 = vmatpush.msra.mxu0 0.0
    %591 = vmatpush.msra.mxu0 0.0
    %592 = vmatpush.msra.mxu0 0.0
    %593 = vmatpush.msra.mxu0 0.0
    %594 = vmatpush.msra.mxu0 %v160
    %595 = vmatpush.msra.mxu0 %v159
    %596 = vmatpush.msra.mxu0 %v158
    %597 = vmatpush.msra.mxu0 %v157
    %598 = vmatmul.f32.gmra.mxu0 %v580
    %v599 = vpop.f32.mrf.mxu0
    %v600 = vadd.f32 0.0, %v599
    %601 = vdwg.mxu0
    %v602 = vrot.slane %v571, 2
    %603 = vrot.lane.b32.xlu0 %v602, 32
    %v604 = vpop.permute.xlu0 %603
    %v605 = vsel %vm167, %v604, 0
    %607 = vmatpush.msra.mxu0 0.0
    %608 = vmatpush.msra.mxu0 0.0
    %609 = vmatpush.msra.mxu0 0.0
    %610 = vmatpush.msra.mxu0 0.0
    %611 = vmatpush.msra.mxu0 0.0
    %612 = vmatpush.msra.mxu0 0.0
    %613 = vmatpush.msra.mxu0 0.0
    %614 = vmatpush.msra.mxu0 0.0
    %615 = vmatpush.msra.mxu0 0.0
    %616 = vmatpush.msra.mxu0 0.0
    %617 = vmatpush.msra.mxu0 0.0
    %618 = vmatpush.msra.mxu0 0.0
    %619 = vmatpush.msra.mxu0 %v164
    %620 = vmatpush.msra.mxu0 %v163
    %621 = vmatpush.msra.mxu0 %v162
    %622 = vmatpush.msra.mxu0 %v161
    %623 = vmatmul.f32.gmra.mxu0 %v605
    %v624 = vpop.f32.mrf.mxu0
    %v625 = vadd.f32 0.0, %v624
    %626 = vdwg.mxu0
    %s627 = scalar_lea.vmem [#allocation2], 8
    %v628 = vld [vmem:[%s627] sm:$0x3]
    %v629 = vadd.f32 %v628, %v600
    %s630 = scalar_lea.vmem [#allocation3], 6
    %v631 = vld [vmem:[%s630] sm:$0x3]
    %v632 = vadd.f32 %v631, %v625
    %v634 = vrot.slane %v632, 6
    %v636 = vsel %vm222, %v629, %v634
    %v637 = vxor.u32 %v636, 2147483648
    %v638 = vmul.f32 %v637, 1.442695
    %v639 = vpow.pop %v638
    %v640 = vadd.f32 %v639, 1.0
    %v641 = vrcp.pop %v640
    %v642 = vmul.f32 %v640, %v641
    %v643 = vsub.f32 1.0, %v642
    %v644 = vmul.f32 %v641, %v643
    %v645 = vadd.f32 %v641, %v644
    %vm646 = vweird.f32 %v640
    %vm647 = vweird.f32 %v641
    %vm648 = vmor %vm646, %vm647
    %v649 = vsel %vm648, %v641, %v645
    %v650 = vand.u32 2147483647, %v640
    %vm651 = vcmp.eq.f32.partialorder %v650, 8.507059e+37
    %v652 = vand.u32 %v640, 2147483648
    %v653 = vor.u32 1.1754944e-38, %v652
    %v654 = vsel %vm651, %v653, %v649
    %v655 = vmul.f32 1.0, %v654
    %v656 = vtanh.pop %v636
    %v657 = vmul.f32 %v655, %v565
    %659 = vrot.lane.b32.xlu0 %v656, 64
    %v660 = vpop.permute.xlu0 %659
    %v662 = vmul.f32 %v655, %v660
    %664 = vrot.lane.b32.xlu0 %v662, 32
    %v665 = vpop.permute.xlu0 %664
    %v667 = vadd.f32 %v657, %v665
    %v668 = vtanh.pop %v667
    %670 = vrot.lane.b32.xlu0 %v668, 64
    %v671 = vpop.permute.xlu0 %670
    %v673 = vmul.f32 %v655, %v671
    %675 = vrot.lane.b32.xlu0 %v673, 32
    %v676 = vpop.permute.xlu0 %675
    %s678 = scalar_lea.vmem [#allocation4], 8
    %679 = vst.msk [vmem:[%s678] sm:$0x3] %vm269, %v676
    %s680 = scalar_lea.vmem [#allocation6], 6
    %681 = vst.msk [vmem:[%s680 - $0x2] sm:$0xc] %vm272, %v676
    %v682 = vsel %vm167, %v676, 0
    %684 = vmatpush.msra.mxu0 0.0
    %685 = vmatpush.msra.mxu0 0.0
    %686 = vmatpush.msra.mxu0 0.0
    %687 = vmatpush.msra.mxu0 0.0
    %688 = vmatpush.msra.mxu0 0.0
    %689 = vmatpush.msra.mxu0 0.0
    %690 = vmatpush.msra.mxu0 0.0
    %691 = vmatpush.msra.mxu0 0.0
    %692 = vmatpush.msra.mxu0 0.0
    %693 = vmatpush.msra.mxu0 0.0
    %694 = vmatpush.msra.mxu0 0.0
    %695 = vmatpush.msra.mxu0 0.0
    %696 = vmatpush.msra.mxu0 %v160
    %697 = vmatpush.msra.mxu0 %v159
    %698 = vmatpush.msra.mxu0 %v158
    %699 = vmatpush.msra.mxu0 %v157
    %700 = vmatmul.f32.gmra.mxu0 %v682
    %v701 = vpop.f32.mrf.mxu0
    %v702 = vadd.f32 0.0, %v701
    %703 = vdwg.mxu0
    %v704 = vrot.slane %v673, 2
    %705 = vrot.lane.b32.xlu0 %v704, 32
    %v706 = vpop.permute.xlu0 %705
    %v707 = vsel %vm167, %v706, 0
    %709 = vmatpush.msra.mxu0 0.0
    %710 = vmatpush.msra.mxu0 0.0
    %711 = vmatpush.msra.mxu0 0.0
    %712 = vmatpush.msra.mxu0 0.0
    %713 = vmatpush.msra.mxu0 0.0
    %714 = vmatpush.msra.mxu0 0.0
    %715 = vmatpush.msra.mxu0 0.0
    %716 = vmatpush.msra.mxu0 0.0
    %717 = vmatpush.msra.mxu0 0.0
    %718 = vmatpush.msra.mxu0 0.0
    %719 = vmatpush.msra.mxu0 0.0
    %720 = vmatpush.msra.mxu0 0.0
    %721 = vmatpush.msra.mxu0 %v164
    %722 = vmatpush.msra.mxu0 %v163
    %723 = vmatpush.msra.mxu0 %v162
    %724 = vmatpush.msra.mxu0 %v161
    %725 = vmatmul.f32.gmra.mxu0 %v707
    %v726 = vpop.f32.mrf.mxu0
    %v727 = vadd.f32 0.0, %v726
    %728 = vdwg.mxu0
    %s729 = scalar_lea.vmem [#allocation2], 10
    %v730 = vld [vmem:[%s729] sm:$0x3]
    %v731 = vadd.f32 %v730, %v702
    %s732 = scalar_lea.vmem [#allocation3], 4
    %v733 = vld [vmem:[%s732] sm:$0x3]
    %v734 = vadd.f32 %v733, %v727
    %v736 = vrot.slane %v734, 6
    %v738 = vsel %vm222, %v731, %v736
    %v739 = vxor.u32 %v738, 2147483648
    %v740 = vmul.f32 %v739, 1.442695
    %v741 = vpow.pop %v740
    %v742 = vadd.f32 %v741, 1.0
    %v743 = vrcp.pop %v742
    %v744 = vmul.f32 %v742, %v743
    %v745 = vsub.f32 1.0, %v744
    %v746 = vmul.f32 %v743, %v745
    %v747 = vadd.f32 %v743, %v746
    %vm748 = vweird.f32 %v742
    %vm749 = vweird.f32 %v743
    %vm750 = vmor %vm748, %vm749
    %v751 = vsel %vm750, %v743, %v747
    %v752 = vand.u32 2147483647, %v742
    %vm753 = vcmp.eq.f32.partialorder %v752, 8.507059e+37
    %v754 = vand.u32 %v742, 2147483648
    %v755 = vor.u32 1.1754944e-38, %v754
    %v756 = vsel %vm753, %v755, %v751
    %v757 = vmul.f32 1.0, %v756
    %v758 = vtanh.pop %v738
    %v759 = vmul.f32 %v757, %v667
    %761 = vrot.lane.b32.xlu0 %v758, 64
    %v762 = vpop.permute.xlu0 %761
    %v764 = vmul.f32 %v757, %v762
    %766 = vrot.lane.b32.xlu0 %v764, 32
    %v767 = vpop.permute.xlu0 %766
    %v769 = vadd.f32 %v759, %v767
    %v770 = vtanh.pop %v769
    %772 = vrot.lane.b32.xlu0 %v770, 64
    %v773 = vpop.permute.xlu0 %772
    %v775 = vmul.f32 %v757, %v773
    %777 = vrot.lane.b32.xlu0 %v775, 32
    %v778 = vpop.permute.xlu0 %777
    %s780 = scalar_lea.vmem [#allocation4], 10
    %781 = vst.msk [vmem:[%s780] sm:$0x3] %vm269, %v778
    %s782 = scalar_lea.vmem [#allocation6], 4
    %783 = vst.msk [vmem:[%s782 - $0x2] sm:$0xc] %vm272, %v778
    %v784 = vsel %vm167, %v778, 0
    %786 = vmatpush.msra.mxu0 0.0
    %787 = vmatpush.msra.mxu0 0.0
    %788 = vmatpush.msra.mxu0 0.0
    %789 = vmatpush.msra.mxu0 0.0
    %790 = vmatpush.msra.mxu0 0.0
    %791 = vmatpush.msra.mxu0 0.0
    %792 = vmatpush.msra.mxu0 0.0
    %793 = vmatpush.msra.mxu0 0.0
    %794 = vmatpush.msra.mxu0 0.0
    %795 = vmatpush.msra.mxu0 0.0
    %796 = vmatpush.msra.mxu0 0.0
    %797 = vmatpush.msra.mxu0 0.0
    %798 = vmatpush.msra.mxu0 %v160
    %799 = vmatpush.msra.mxu0 %v159
    %800 = vmatpush.msra.mxu0 %v158
    %801 = vmatpush.msra.mxu0 %v157
    %802 = vmatmul.f32.gmra.mxu0 %v784
    %v803 = vpop.f32.mrf.mxu0
    %v804 = vadd.f32 0.0, %v803
    %805 = vdwg.mxu0
    %v806 = vrot.slane %v775, 2
    %807 = vrot.lane.b32.xlu0 %v806, 32
    %v808 = vpop.permute.xlu0 %807
    %v809 = vsel %vm167, %v808, 0
    %811 = vmatpush.msra.mxu0 0.0
    %812 = vmatpush.msra.mxu0 0.0
    %813 = vmatpush.msra.mxu0 0.0
    %814 = vmatpush.msra.mxu0 0.0
    %815 = vmatpush.msra.mxu0 0.0
    %816 = vmatpush.msra.mxu0 0.0
    %817 = vmatpush.msra.mxu0 0.0
    %818 = vmatpush.msra.mxu0 0.0
    %819 = vmatpush.msra.mxu0 0.0
    %820 = vmatpush.msra.mxu0 0.0
    %821 = vmatpush.msra.mxu0 0.0
    %822 = vmatpush.msra.mxu0 0.0
    %823 = vmatpush.msra.mxu0 %v164
    %824 = vmatpush.msra.mxu0 %v163
    %825 = vmatpush.msra.mxu0 %v162
    %826 = vmatpush.msra.mxu0 %v161
    %827 = vmatmul.f32.gmra.mxu0 %v809
    %v828 = vpop.f32.mrf.mxu0
    %v829 = vadd.f32 0.0, %v828
    %830 = vdwg.mxu0
    %s831 = scalar_lea.vmem [#allocation2], 12
    %v832 = vld [vmem:[%s831] sm:$0x3]
    %v833 = vadd.f32 %v832, %v804
    %s834 = scalar_lea.vmem [#allocation3], 2
    %v835 = vld [vmem:[%s834] sm:$0x3]
    %v836 = vadd.f32 %v835, %v829
    %v838 = vrot.slane %v836, 6
    %v840 = vsel %vm222, %v833, %v838
    %v841 = vxor.u32 %v840, 2147483648
    %v842 = vmul.f32 %v841, 1.442695
    %v843 = vpow.pop %v842
    %v844 = vadd.f32 %v843, 1.0
    %v845 = vrcp.pop %v844
    %v846 = vmul.f32 %v844, %v845
    %v847 = vsub.f32 1.0, %v846
    %v848 = vmul.f32 %v845, %v847
    %v849 = vadd.f32 %v845, %v848
    %vm850 = vweird.f32 %v844
    %vm851 = vweird.f32 %v845
    %vm852 = vmor %vm850, %vm851
    %v853 = vsel %vm852, %v845, %v849
    %v854 = vand.u32 2147483647, %v844
    %vm855 = vcmp.eq.f32.partialorder %v854, 8.507059e+37
    %v856 = vand.u32 %v844, 2147483648
    %v857 = vor.u32 1.1754944e-38, %v856
    %v858 = vsel %vm855, %v857, %v853
    %v859 = vmul.f32 1.0, %v858
    %v860 = vtanh.pop %v840
    %v861 = vmul.f32 %v859, %v769
    %863 = vrot.lane.b32.xlu0 %v860, 64
    %v864 = vpop.permute.xlu0 %863
    %v866 = vmul.f32 %v859, %v864
    %868 = vrot.lane.b32.xlu0 %v866, 32
    %v869 = vpop.permute.xlu0 %868
    %v871 = vadd.f32 %v861, %v869
    %v872 = vtanh.pop %v871
    %874 = vrot.lane.b32.xlu0 %v872, 64
    %v875 = vpop.permute.xlu0 %874
    %v877 = vmul.f32 %v859, %v875
    %879 = vrot.lane.b32.xlu0 %v877, 32
    %v880 = vpop.permute.xlu0 %879
    %s882 = scalar_lea.vmem [#allocation4], 12
    %883 = vst.msk [vmem:[%s882] sm:$0x3] %vm269, %v880
    %s884 = scalar_lea.vmem [#allocation6], 2
    %885 = vst.msk [vmem:[%s884 - $0x2] sm:$0xc] %vm272, %v880
    %v886 = vsel %vm167, %v880, 0
    %888 = vmatpush.msra.mxu0 0.0
    %889 = vmatpush.msra.mxu0 0.0
    %890 = vmatpush.msra.mxu0 0.0
    %891 = vmatpush.msra.mxu0 0.0
    %892 = vmatpush.msra.mxu0 0.0
    %893 = vmatpush.msra.mxu0 0.0
    %894 = vmatpush.msra.mxu0 0.0
    %895 = vmatpush.msra.mxu0 0.0
    %896 = vmatpush.msra.mxu0 0.0
    %897 = vmatpush.msra.mxu0 0.0
    %898 = vmatpush.msra.mxu0 0.0
    %899 = vmatpush.msra.mxu0 0.0
    %900 = vmatpush.msra.mxu0 %v160
    %901 = vmatpush.msra.mxu0 %v159
    %902 = vmatpush.msra.mxu0 %v158
    %903 = vmatpush.msra.mxu0 %v157
    %904 = vmatmul.f32.gmra.mxu0 %v886
    %v905 = vpop.f32.mrf.mxu0
    %v906 = vadd.f32 0.0, %v905
    %907 = vdwg.mxu0
    %v908 = vrot.slane %v877, 2
    %909 = vrot.lane.b32.xlu0 %v908, 32
    %v910 = vpop.permute.xlu0 %909
    %v911 = vsel %vm167, %v910, 0
    %913 = vmatpush.msra.mxu0 0.0
    %914 = vmatpush.msra.mxu0 0.0
    %915 = vmatpush.msra.mxu0 0.0
    %916 = vmatpush.msra.mxu0 0.0
    %917 = vmatpush.msra.mxu0 0.0
    %918 = vmatpush.msra.mxu0 0.0
    %919 = vmatpush.msra.mxu0 0.0
    %920 = vmatpush.msra.mxu0 0.0
    %921 = vmatpush.msra.mxu0 0.0
    %922 = vmatpush.msra.mxu0 0.0
    %923 = vmatpush.msra.mxu0 0.0
    %924 = vmatpush.msra.mxu0 0.0
    %925 = vmatpush.msra.mxu0 %v164
    %926 = vmatpush.msra.mxu0 %v163
    %927 = vmatpush.msra.mxu0 %v162
    %928 = vmatpush.msra.mxu0 %v161
    %929 = vmatmul.f32.gmra.mxu0 %v911
    %v930 = vpop.f32.mrf.mxu0
    %v931 = vadd.f32 0.0, %v930
    %932 = vdwg.mxu0
    %s933 = scalar_lea.vmem [#allocation2], 14
    %v934 = vld [vmem:[%s933] sm:$0x3]
    %v935 = vadd.f32 %v934, %v906
    %v936 = vld [vmem:[#allocation3] sm:$0x3]
    %v937 = vadd.f32 %v936, %v931
    %v939 = vrot.slane %v937, 6
    %v941 = vsel %vm222, %v935, %v939
    %v942 = vxor.u32 %v941, 2147483648
    %v943 = vmul.f32 %v942, 1.442695
    %v944 = vpow.pop %v943
    %v945 = vadd.f32 %v944, 1.0
    %v946 = vrcp.pop %v945
    %v947 = vmul.f32 %v945, %v946
    %v948 = vsub.f32 1.0, %v947
    %v949 = vmul.f32 %v946, %v948
    %v950 = vadd.f32 %v946, %v949
    %vm951 = vweird.f32 %v945
    %vm952 = vweird.f32 %v946
    %vm953 = vmor %vm951, %vm952
    %v954 = vsel %vm953, %v946, %v950
    %v955 = vand.u32 2147483647, %v945
    %vm956 = vcmp.eq.f32.partialorder %v955, 8.507059e+37
    %v957 = vand.u32 %v945, 2147483648
    %v958 = vor.u32 1.1754944e-38, %v957
    %v959 = vsel %vm956, %v958, %v954
    %v960 = vmul.f32 1.0, %v959
    %v961 = vtanh.pop %v941
    %v962 = vmul.f32 %v960, %v871
    %964 = vrot.lane.b32.xlu0 %v961, 64
    %v965 = vpop.permute.xlu0 %964
    %v967 = vmul.f32 %v960, %v965
    %969 = vrot.lane.b32.xlu0 %v967, 32
    %v970 = vpop.permute.xlu0 %969
    %v972 = vadd.f32 %v962, %v970
    %v973 = vtanh.pop %v972
    %975 = vrot.lane.b32.xlu0 %v973, 64
    %v976 = vpop.permute.xlu0 %975
    %v978 = vmul.f32 %v960, %v976
    %980 = vrot.lane.b32.xlu0 %v978, 32
    %v981 = vpop.permute.xlu0 %980
    %s983 = scalar_lea.vmem [#allocation4], 14
    %984 = vst.msk [vmem:[%s983] sm:$0x3] %vm269, %v981
    %985 = vst.msk [vmem:[#allocation6 - $0x2] sm:$0xc] %vm272, %v981
    %vm986 = vcmask 257024
    %987 = vst.msk [vmem:[%s10] sm:$0xf] %vm986, %v981
    %989 = vrot.lane.b32.xlu0 %v972, 96
    %v990 = vpop.permute.xlu0 %989
    %992 = vst.msk [vmem:[%s11] sm:$0xf] %vm986, %v990
    // Predicated region
    $region38: #{_lambda_.3} parent=1 // pred_check
      _
    $region39: #{_lambda_.3} parent=1 // pred_check_branch
      %994 = sbr.rel (0) target = $region41
    $region40: #{_lambda_.3} parent=1 // pred_region
      %996 = vsyncadd [#allocation5], 0
      %s997 = sshll.u32 [#allocation4], 4
      %s998 = int_to_ptr.vmem [resolvable:$true] %s997
      %s999 = sshll.u32 %s8, 4
      %s1000 = int_to_ptr.hbm [resolvable:$true] %s999
      %1005 = dma.vmem_to_hbm [thread:$0]  %s998, 256, %s1000, [#allocation5], 128, 128, 8
    $region41: #{_lambda_.3} parent=1 // pred_fallthru
      _
    // Predicated region
    $region42: #{_lambda_.3} parent=1 // pred_check
      _
    $region43: #{_lambda_.3} parent=1 // pred_check_branch
      %1007 = sbr.rel (0) target = $region45
    $region44: #{_lambda_.3} parent=1 // pred_region
      %s1008 = ssub.s32 0, 0
      %s1009 = smul.u32 2, %s1008
      %1011 = vsyncadd [#allocation7], 0
      %s1012 = smul.addr %s1009, 8
      %s1013 = scalar_lea.hbm %s9, %s1012
      %s1014 = sshll.u32 [#allocation6], 4
      %s1015 = int_to_ptr.vmem [resolvable:$true] %s1014
      %s1016 = sshll.u32 %s1013, 4
      %s1017 = int_to_ptr.hbm [resolvable:$true] %s1016
      %1022 = dma.vmem_to_hbm [thread:$0]  %s1015, 256, %s1017, [#allocation7], 128, 128, 8
    $region45: #{_lambda_.3} parent=1 // pred_fallthru
      _
    // Predicated region
    $region46: #{_lambda_.3} parent=1 // pred_check
      _
    $region47: #{_lambda_.3} parent=1 // pred_check_branch
      %1024 = sbr.rel (0) target = $region49
    $region48: #{_lambda_.3} parent=1 // pred_region
      _
    $region49: #{_lambda_.3} parent=1 // pred_fallthru
      _
    // Predicated region
    $region50: #{_lambda_.3} parent=1 // pred_check
      _
    $region51: #{_lambda_.3} parent=1 // pred_check_branch
      %1026 = sbr.rel (0) target = $region53
    $region52: #{_lambda_.3} parent=1 // pred_region
      _
    $region53: #{_lambda_.3} parent=1 // pred_fallthru
      _
    // Predicated region
    $region54: #{_lambda_.3} parent=1 // pred_check
      _
    $region55: #{_lambda_.3} parent=1 // pred_check_branch
      %1028 = sbr.rel (0) target = $region57
    $region56: #{_lambda_.3} parent=1 // pred_region
      %1030 = dma.done [#allocation5], 256
    $region57: #{_lambda_.3} parent=1 // pred_fallthru
      _
    // Predicated region
    $region58: #{_lambda_.3} parent=1 // pred_check
      _
    $region59: #{_lambda_.3} parent=1 // pred_check_branch
      %1032 = sbr.rel (0) target = $region61
    $region60: #{_lambda_.3} parent=1 // pred_region
      %1034 = dma.done [#allocation7], 256
    $region61: #{_lambda_.3} parent=1 // pred_fallthru
      _
    // Predicated region
    $region62: #{_lambda_.3} parent=1 // pred_check
      _
    $region63: #{_lambda_.3} parent=1 // pred_check_branch
      %1036 = sbr.rel (0) target = $region65
    $region64: #{_lambda_.3} parent=1 // pred_region
      _
    $region65: #{_lambda_.3} parent=1 // pred_fallthru
      _
    // Predicated region
    $region66: #{_lambda_.3} parent=1 // pred_check
      _
    $region67: #{_lambda_.3} parent=1 // pred_check_branch
      %1038 = sbr.rel (0) target = $region69
    $region68: #{_lambda_.3} parent=1 // pred_region
      _
    $region69: #{_lambda_.3} parent=1 // pred_fallthru
      _
    %1039 = vsyncpa [#allocation5], 1
    %1040 = vsyncpa [#allocation7], 1

</llo_original>
